<compile_context>
chip_gen: v7x
topology: tpu7x:2x2x1
jax: 0.10.0
libtpu: 0.0.40
codegen_flags: <defaults>
</compile_context>

<pallas_src>
import functools

import jax
import jax.numpy as jnp
from jax.experimental import pallas as pl
from jax.experimental.pallas import tpu as pltpu


def _layer_norm(x, gamma, beta, eps=1e-6):
    mu = jnp.mean(x, axis=-1, keepdims=True)
    var = jnp.mean((x - mu) ** 2, axis=-1, keepdims=True)
    return (x - mu) * jax.lax.rsqrt(var + eps) * gamma + beta


def encoder_layer_kernel(
    x_ref,
    wq_ref, wk_ref, wv_ref,
    wo_ref, bo_ref,
    ln1_g_ref, ln1_b_ref,
    w1_ref, b1_ref,
    w2_ref, b2_ref,
    ln2_g_ref, ln2_b_ref,
    y_ref, attn_ref,
    kh_ref, vh_ref,
    *, num_heads, q_tile, compute_dtype,
):
    H = num_heads
    Bb, T, C = x_ref.shape
    D = C // H
    tq = q_tile
    qi = pl.program_id(1)

    def split_heads(a, rows):
        # (Bb*rows, C) -> (Bb*H, rows, D)
        a = a.reshape(Bb, rows, H, D)
        return jnp.transpose(a, (0, 2, 1, 3)).reshape(Bb * H, rows, D)

    def merge_heads(a, rows):
        # (Bb*H, rows, D) -> (Bb*rows, C)
        a = a.reshape(Bb, H, rows, D)
        return jnp.transpose(a, (0, 2, 1, 3)).reshape(Bb * rows, C)

    # --- k/v projection + head split: once per batch block, cached in VMEM scratch.
    @pl.when(qi == 0)
    def _():
        xf = x_ref[...].reshape(Bb * T, C).astype(compute_dtype)
        k = jnp.dot(xf, wk_ref[...], preferred_element_type=jnp.float32)
        v = jnp.dot(xf, wv_ref[...], preferred_element_type=jnp.float32)
        # Cast immediately: f32 copies of k/v never stay live past this point.
        kh_ref[...] = split_heads(k, T).astype(compute_dtype)
        vh_ref[...] = split_heads(v, T).astype(compute_dtype)

    # --- q projection for this query tile only.
    if tq == T:
        xq = x_ref[...]
    else:
        q_start = pl.multiple_of(qi * tq, tq)
        xq = x_ref[:, pl.ds(q_start, tq), :]
    xq = xq.reshape(Bb * tq, C).astype(compute_dtype)
    q = jnp.dot(xq, wq_ref[...], preferred_element_type=jnp.float32)
    residual = q  # residual is the *post-projection* q (matches the reference)

    # Reference divides by C**-0.5 => multiply scores by sqrt(C); fold into q.
    scale_mul = float(C) ** 0.5
    qh = split_heads(q * scale_mul, tq).astype(compute_dtype)

    # --- batched attention over g = Bb*H; softmax statistics in f32.
    s = jnp.einsum("gqd,gkd->gqk", qh, kh_ref[...],
                   preferred_element_type=jnp.float32)
    s = s - jnp.max(s, axis=-1, keepdims=True)
    e = jnp.exp(s)  # TODO(synk): bf16 exp on v6e/v7x if EUP-bound (keep f32 on v5e)
    inv = pl.reciprocal(jnp.sum(e, axis=-1, keepdims=True), approx=False)
    p = e * inv     # exact reciprocal: exported probability rows sum to 1

    # One lane-dense store of the (Bb, H, tq, T) probability tile.
    attn_ref[...] = p.reshape(Bb, H, tq, T).astype(attn_ref.dtype)

    o = jnp.einsum("gqk,gkd->gqd", p.astype(compute_dtype), vh_ref[...],
                   preferred_element_type=jnp.float32)
    o = merge_heads(o, tq)

    # --- output projection + residual + LayerNorm (f32).
    proj = jnp.dot(o.astype(compute_dtype), wo_ref[...],
                   preferred_element_type=jnp.float32) + bo_ref[...]
    y1 = _layer_norm(proj + residual, ln1_g_ref[...], ln1_b_ref[...])

    # --- FeedForward: fc1 -> relu -> fc2, residual, LayerNorm (f32).
    h1 = jnp.maximum(
        jnp.dot(y1.astype(compute_dtype), w1_ref[...],
                preferred_element_type=jnp.float32) + b1_ref[...], 0.0)
    h2 = jnp.dot(h1.astype(compute_dtype), w2_ref[...],
                 preferred_element_type=jnp.float32) + b2_ref[...]
    y2 = _layer_norm(h2 + y1, ln2_g_ref[...], ln2_b_ref[...])

    y_ref[...] = y2.reshape(Bb, tq, C).astype(y_ref.dtype)


def _vmem_budget_bytes():
    """~75% of the physical per-core VMEM (v5e/v6e: 128 MiB, v7x: 64 MiB)."""
    try:
        cap = int(pltpu.get_tpu_info().vmem_capacity_bytes)
    except Exception:
        cap = 64 * 1024 * 1024  # conservative (v7x-sized) fallback
    return max((cap * 3) // 4, 32 * 1024 * 1024)


def _divisors_desc(n):
    return [d for d in range(n, 0, -1) if n % d == 0]


def _choose_tiles(B, T, C, H, hid, compute_dtype, attn_dtype, budget):
    """Pick (block_b, q_tile) so the per-step VMEM footprint fits the budget,
    targeting >=256 matmul rows per step (v6e/v7x MXU) and >=2 parallel batch
    grid steps when B allows (megacore / v7x dual TensorCore)."""
    ci = jnp.dtype(compute_dtype).itemsize
    ai = jnp.dtype(attn_dtype).itemsize

    def footprint(bb, tq):
        rows = bb * tq
        weights = ci * (4 * C * C + 2 * C * hid)      # single-buffered residents
        x_blk = 2 * bb * T * C * ci                   # double-buffered input block
        y_blk = 2 * rows * C * 4                      # f32 output tile
        a_blk = 2 * bb * H * tq * T * ai              # attn output tile
        kv_scr = 2 * bb * T * C * ci                  # k/v head-split scratch
        attn_tmp = 3 * bb * H * tq * T * 4            # s / e / p in f32
        act_tmp = rows * (6 * C + 2 * hid) * 4 + rows * C * ci
        return weights + x_blk + y_blk + a_blk + kv_scr + attn_tmp + act_tmp

    tq_cands = [d for d in _divisors_desc(T) if d == T or d % 8 == 0]
    bb_cands = [d for d in _divisors_desc(B) if B // d >= 2] or [B]

    choices = [(bb, tq) for bb in bb_cands for tq in tq_cands]
    fitting = [c for c in choices if footprint(*c) <= budget]
    rows = lambda c: c[0] * c[1]
    big = [c for c in fitting if rows(c) >= 256]
    if big:                       # smallest config that still feeds the MXU well
        bb, tq = min(big, key=lambda c: (rows(c), -c[1]))
    elif fitting:                 # otherwise the largest that fits
        bb, tq = max(fitting, key=lambda c: (rows(c), c[1]))
    else:                         # best effort (tiny shapes always land in `fitting`)
        bb, tq = min(choices, key=lambda c: footprint(*c))
    return bb, tq


def encoder_layer(x, params, *, num_heads,
                  compute_dtype=jnp.bfloat16,   # MXU-native on v5e/v6e/v7x
                  attn_dtype=jnp.float32,       # set bf16 to halve attn writeback
                  block_b=None, q_tile=None):
    B, T, C = x.shape
    H = num_heads
    hid = params["w1"].shape[1]
    assert C % H == 0 and params["w1"].shape == (C, hid)
    D = C // H

    vmem_limit = _vmem_budget_bytes()
    auto_bb, auto_tq = _choose_tiles(B, T, C, H, hid, compute_dtype, attn_dtype,
                                     vmem_limit)
    block_b = auto_bb if block_b is None else block_b
    q_tile = auto_tq if q_tile is None else q_tile
    assert B % block_b == 0 and T % q_tile == 0

    kernel = functools.partial(
        encoder_layer_kernel, num_heads=H, q_tile=q_tile, compute_dtype=compute_dtype)

    cast = lambda w: w.astype(compute_dtype)
    ci = jnp.dtype(compute_dtype).itemsize
    ai = jnp.dtype(attn_dtype).itemsize
    flops = int(8 * B * T * C * C + 4 * B * T * T * C + 4 * B * T * C * hid)
    transcendentals = int(B * H * T * T + 2 * B * T)
    bytes_accessed = int(
        ci * B * T * C                    # x read
        + 4 * B * T * C                   # y write
        + ai * B * H * T * T              # attn write
        + ci * (4 * C * C + 2 * C * hid)  # weights (fetched once)
        + 4 * (6 * C + hid))              # biases + LN params

    def build(weight_mode):
        def cspec(shape):
            # Constant index map => fetched once, resident across the whole grid.
            if weight_mode is None:
                return pl.BlockSpec(shape, lambda b, q: (0,) * len(shape))
            return pl.BlockSpec(shape, lambda b, q: (0,) * len(shape),
                                pipeline_mode=weight_mode)

        in_specs = [
            # x: full T per batch block (needed for k/v); constant over q tiles,
            # so it is not re-fetched between q steps.
            pl.BlockSpec((block_b, T, C), lambda b, q: (b, 0, 0)),
            cspec((C, C)), cspec((C, C)), cspec((C, C)),      # wq, wk, wv
            cspec((C, C)), cspec((1, C)),                     # wo, bo
            cspec((1, C)), cspec((1, C)),                     # ln1 gamma, beta
            cspec((C, hid)), cspec((1, hid)),                 # w1, b1
            cspec((hid, C)), cspec((1, C)),                   # w2, b2
            cspec((1, C)), cspec((1, C)),                     # ln2 gamma, beta
        ]
        out_specs = [
            pl.BlockSpec((block_b, q_tile, C), lambda b, q: (b, q, 0)),
            pl.BlockSpec((block_b, H, q_tile, T), lambda b, q: (b, 0, q, 0)),
        ]
        grid_spec = pltpu.PrefetchScalarGridSpec(
            num_scalar_prefetch=0,
            grid=(B // block_b, T // q_tile),
            in_specs=in_specs,
            out_specs=out_specs,
            scratch_shapes=[pltpu.VMEM((block_b * H, T, D), compute_dtype),
                            pltpu.VMEM((block_b * H, T, D), compute_dtype)],
        )
        return pl.pallas_call(
            kernel,
            grid_spec=grid_spec,
            out_shape=(
                jax.ShapeDtypeStruct((B, T, C), jnp.float32),
                jax.ShapeDtypeStruct((B, H, T, T), attn_dtype),
            ),
            compiler_params=pltpu.CompilerParams(
                dimension_semantics=("parallel", "arbitrary"),
                vmem_limit_bytes=vmem_limit),
            cost_estimate=pl.CostEstimate(
                flops=flops, transcendentals=transcendentals,
                bytes_accessed=bytes_accessed),
        )

    args = (
        x.astype(compute_dtype),
        cast(params["wq"]), cast(params["wk"]), cast(params["wv"]),
        cast(params["wo"]), params["bo"],
        params["ln1_g"], params["ln1_b"],
        cast(params["w1"]), params["b1"],
        cast(params["w2"]), params["b2"],
        params["ln2_g"], params["ln2_b"],
    )
    try:
        return build(pl.Buffered(buffer_count=1))(*args)
    except Exception:
        # TODO(synk): jax versions without single-buffer pipeline_mode support.
        return build(None)(*args)


def init_params(key, embed_dim, hid_dim):
    C, Hd = embed_dim, hid_dim
    ks = jax.random.split(key, 8)
    s = lambda fan_in: 1.0 / jnp.sqrt(fan_in)
    return {
        # Linear weights stored as (in, out)  [= PyTorch weight.T]
        "wq": jax.random.normal(ks[0], (C, C), jnp.float32) * s(C),
        "wk": jax.random.normal(ks[1], (C, C), jnp.float32) * s(C),
        "wv": jax.random.normal(ks[2], (C, C), jnp.float32) * s(C),
        "wo": jax.random.normal(ks[3], (C, C), jnp.float32) * s(C),
        "bo": jax.random.normal(ks[4], (1, C), jnp.float32) * 0.01,
        "ln1_g": jnp.ones((1, C), jnp.float32),
        "ln1_b": jnp.zeros((1, C), jnp.float32),
        "w1": jax.random.normal(ks[5], (C, Hd), jnp.float32) * s(C),
        "b1": jax.random.normal(ks[6], (1, Hd), jnp.float32) * 0.01,
        "w2": jax.random.normal(ks[7], (Hd, C), jnp.float32) * s(Hd),
        "b2": jnp.zeros((1, C), jnp.float32),
        "ln2_g": jnp.ones((1, C), jnp.float32),
        "ln2_b": jnp.zeros((1, C), jnp.float32),
    }


def encoder_layer_ref(x, params, *, num_heads):
    """Pure-JAX reference (same math) for a correctness check."""
    B, T, C = x.shape
    D = C // num_heads
    q = x @ params["wq"]
    k = x @ params["wk"]
    v = x @ params["wv"]
    residual = q
    qh = q.reshape(B, T, num_heads, D).transpose(0, 2, 1, 3)
    kh = k.reshape(B, T, num_heads, D).transpose(0, 2, 1, 3)
    vh = v.reshape(B, T, num_heads, D).transpose(0, 2, 1, 3)
    scores = jnp.einsum("bhqd,bhkd->bhqk", qh, kh) / (C ** -0.5)
    attn = jax.nn.softmax(scores, axis=-1)
    out = jnp.einsum("bhqk,bhkd->bhqd", attn, vh).transpose(0, 2, 1, 3).reshape(B, T, C)
    proj = out @ params["wo"] + params["bo"][0]
    y = _layer_norm(proj + residual, params["ln1_g"][0], params["ln1_b"][0])
    h1 = jnp.maximum(y @ params["w1"] + params["b1"][0], 0.0)
    h2 = h1 @ params["w2"] + params["b2"][0]
    y2 = _layer_norm(h2 + y, params["ln2_g"][0], params["ln2_b"][0])
    return y2, attn


if __name__ == "__main__":
    B, T, C, H = 2, 8, 32, 4   # batch, seq, embed_dim, heads
    HID = 4 * C

    key = jax.random.PRNGKey(0)
    kx, kp = jax.random.split(key)
    x = jax.random.normal(kx, (B, T, C), jnp.float32)
    params = init_params(kp, C, HID)

    y_gold, attn_gold = encoder_layer_ref(x, params, num_heads=H)
    jax.block_until_ready((y_gold, attn_gold))

    # f32 MXU path: moderate tolerance (MXU vs XLA matmul precision/accum order).
    y32, a32 = encoder_layer(x, params, num_heads=H, compute_dtype=jnp.float32)
    jax.block_until_ready((y32, a32))
    assert jnp.allclose(a32, attn_gold, atol=2e-2, rtol=2e-2), \
        float(jnp.max(jnp.abs(a32 - attn_gold)))
    assert jnp.allclose(y32, y_gold, atol=5e-2, rtol=5e-2), \
        float(jnp.max(jnp.abs(y32 - y_gold)))

    # bf16 MXU path (default; recommended on v5e/v6e/v7x): loose sanity check.
    y16, a16 = encoder_layer(x, params, num_heads=H)
    jax.block_until_ready((y16, a16))
    assert float(jnp.max(jnp.abs(a16 - attn_gold))) < 0.3
    assert float(jnp.max(jnp.abs(y16 - y_gold))) < 0.5

    print("KERNEL_OK")
</pallas_src>

<mosaic_0001>
module attributes {stable_mosaic.version = 11 : i64} {
  func.func @encoder_layer_kernel(%arg0: i32, %arg1: i32, %arg2: memref<1x8x32xf32, #tpu.memory_space<vmem>>, %arg3: memref<32x32xf32, #tpu.memory_space<vmem>>, %arg4: memref<32x32xf32, #tpu.memory_space<vmem>>, %arg5: memref<32x32xf32, #tpu.memory_space<vmem>>, %arg6: memref<32x32xf32, #tpu.memory_space<vmem>>, %arg7: memref<1x32xf32, #tpu.memory_space<vmem>>, %arg8: memref<1x32xf32, #tpu.memory_space<vmem>>, %arg9: memref<1x32xf32, #tpu.memory_space<vmem>>, %arg10: memref<32x128xf32, #tpu.memory_space<vmem>>, %arg11: memref<1x128xf32, #tpu.memory_space<vmem>>, %arg12: memref<128x32xf32, #tpu.memory_space<vmem>>, %arg13: memref<1x32xf32, #tpu.memory_space<vmem>>, %arg14: memref<1x32xf32, #tpu.memory_space<vmem>>, %arg15: memref<1x32xf32, #tpu.memory_space<vmem>>, %arg16: memref<1x8x32xf32, #tpu.memory_space<vmem>>, %arg17: memref<1x4x8x8xf32, #tpu.memory_space<vmem>>, %arg18: memref<4x8x8xf32, #tpu.memory_space<vmem>>, %arg19: memref<4x8x8xf32, #tpu.memory_space<vmem>>) attributes {dimension_semantics = [#tpu.dimension_semantics<parallel>, #tpu.dimension_semantics<arbitrary>], iteration_bounds = array<i64: 2, 1>, scalar_prefetch = 0 : i64, scratch_operands = 2 : i64, tpu.core_type = #tpu.core_type<tc>, window_params = [{transform_indices = @transform_0, window_bounds = array<i64: 1, 8, 32>}, {pipeline_mode = #tpu.pipeline_mode<synchronous>, transform_indices = @transform_1, window_bounds = array<i64: 32, 32>}, {pipeline_mode = #tpu.pipeline_mode<synchronous>, transform_indices = @transform_2, window_bounds = array<i64: 32, 32>}, {pipeline_mode = #tpu.pipeline_mode<synchronous>, transform_indices = @transform_3, window_bounds = array<i64: 32, 32>}, {pipeline_mode = #tpu.pipeline_mode<synchronous>, transform_indices = @transform_4, window_bounds = array<i64: 32, 32>}, {pipeline_mode = #tpu.pipeline_mode<synchronous>, transform_indices = @transform_5, window_bounds = array<i64: 1, 32>}, {pipeline_mode = #tpu.pipeline_mode<synchronous>, transform_indices = @transform_6, window_bounds = array<i64: 1, 32>}, {pipeline_mode = #tpu.pipeline_mode<synchronous>, transform_indices = @transform_7, window_bounds = array<i64: 1, 32>}, {pipeline_mode = #tpu.pipeline_mode<synchronous>, transform_indices = @transform_8, window_bounds = array<i64: 32, 128>}, {pipeline_mode = #tpu.pipeline_mode<synchronous>, transform_indices = @transform_9, window_bounds = array<i64: 1, 128>}, {pipeline_mode = #tpu.pipeline_mode<synchronous>, transform_indices = @transform_10, window_bounds = array<i64: 128, 32>}, {pipeline_mode = #tpu.pipeline_mode<synchronous>, transform_indices = @transform_11, window_bounds = array<i64: 1, 32>}, {pipeline_mode = #tpu.pipeline_mode<synchronous>, transform_indices = @transform_12, window_bounds = array<i64: 1, 32>}, {pipeline_mode = #tpu.pipeline_mode<synchronous>, transform_indices = @transform_13, window_bounds = array<i64: 1, 32>}, {transform_indices = @transform_14, window_bounds = array<i64: 1, 8, 32>}, {transform_indices = @transform_15, window_bounds = array<i64: 1, 4, 8, 8>}]} {
    %c0_i32 = arith.constant 0 : i32
    %0 = arith.cmpi eq, %arg1, %c0_i32 : i32
    %1 = arith.extui %0 : i1 to i32
    %c0_i32_0 = arith.constant 0 : i32
    %2 = arith.cmpi ne, %1, %c0_i32_0 : i32
    scf.if %2 {
      %c0_57 = arith.constant 0 : index
      %c0_58 = arith.constant 0 : index
      %c0_59 = arith.constant 0 : index
      %100 = vector.load %arg2[%c0_57, %c0_58, %c0_59] : memref<1x8x32xf32, #tpu.memory_space<vmem>>, vector<1x8x32xf32>
      %101 = vector.shape_cast %100 : vector<1x8x32xf32> to vector<8x32xf32>
      %c0_60 = arith.constant 0 : index
      %c0_61 = arith.constant 0 : index
      %102 = vector.load %arg4[%c0_60, %c0_61] : memref<32x32xf32, #tpu.memory_space<vmem>>, vector<32x32xf32>
      %cst_62 = arith.constant dense<0.000000e+00> : vector<8x32xf32>
      %103 = tpu.matmul %101, %102, %cst_62 {dimension_numbers = #tpu.dot_dimension_numbers<[1], [0], [0], [1], [0, 0, 1, 1], [], []>} : vector<8x32xf32>, vector<32x32xf32>, vector<8x32xf32> -> vector<8x32xf32>
      %c0_63 = arith.constant 0 : index
      %c0_64 = arith.constant 0 : index
      %104 = vector.load %arg5[%c0_63, %c0_64] : memref<32x32xf32, #tpu.memory_space<vmem>>, vector<32x32xf32>
      %cst_65 = arith.constant dense<0.000000e+00> : vector<8x32xf32>
      %105 = tpu.matmul %101, %104, %cst_65 {dimension_numbers = #tpu.dot_dimension_numbers<[1], [0], [0], [1], [0, 0, 1, 1], [], []>} : vector<8x32xf32>, vector<32x32xf32>, vector<8x32xf32> -> vector<8x32xf32>
      %106 = vector.shape_cast %103 : vector<8x32xf32> to vector<1x8x4x8xf32>
      %107 = tpu.transpose %106, [0, 2, 1, 3] : vector<1x8x4x8xf32> -> vector<1x4x8x8xf32>
      %108 = vector.shape_cast %107 : vector<1x4x8x8xf32> to vector<4x8x8xf32>
      %c0_66 = arith.constant 0 : index
      %c0_67 = arith.constant 0 : index
      %c0_68 = arith.constant 0 : index
      %109 = vector.load %arg18[%c0_66, %c0_67, %c0_68] : memref<4x8x8xf32, #tpu.memory_space<vmem>>, vector<4x8x8xf32>
      tpu.vector_store %arg18[%c0_66, %c0_67, %c0_68], %108 {strides = array<i32>} : memref<4x8x8xf32, #tpu.memory_space<vmem>>, vector<4x8x8xf32>,
      %110 = vector.shape_cast %105 : vector<8x32xf32> to vector<1x8x4x8xf32>
      %111 = tpu.transpose %110, [0, 2, 1, 3] : vector<1x8x4x8xf32> -> vector<1x4x8x8xf32>
      %112 = vector.shape_cast %111 : vector<1x4x8x8xf32> to vector<4x8x8xf32>
      %c0_69 = arith.constant 0 : index
      %c0_70 = arith.constant 0 : index
      %c0_71 = arith.constant 0 : index
      %113 = vector.load %arg19[%c0_69, %c0_70, %c0_71] : memref<4x8x8xf32, #tpu.memory_space<vmem>>, vector<4x8x8xf32>
      tpu.vector_store %arg19[%c0_69, %c0_70, %c0_71], %112 {strides = array<i32>} : memref<4x8x8xf32, #tpu.memory_space<vmem>>, vector<4x8x8xf32>,
    } else {
    }
    %c0 = arith.constant 0 : index
    %c0_1 = arith.constant 0 : index
    %c0_2 = arith.constant 0 : index
    %3 = vector.load %arg2[%c0, %c0_1, %c0_2] : memref<1x8x32xf32, #tpu.memory_space<vmem>>, vector<1x8x32xf32>
    %4 = vector.shape_cast %3 : vector<1x8x32xf32> to vector<8x32xf32>
    %c0_3 = arith.constant 0 : index
    %c0_4 = arith.constant 0 : index
    %5 = vector.load %arg3[%c0_3, %c0_4] : memref<32x32xf32, #tpu.memory_space<vmem>>, vector<32x32xf32>
    %cst = arith.constant dense<0.000000e+00> : vector<8x32xf32>
    %6 = tpu.matmul %4, %5, %cst {dimension_numbers = #tpu.dot_dimension_numbers<[1], [0], [0], [1], [0, 0, 1, 1], [], []>} : vector<8x32xf32>, vector<32x32xf32>, vector<8x32xf32> -> vector<8x32xf32>
    %cst_5 = arith.constant 5.65685415 : f32
    %7 = vector.broadcast %cst_5 : f32 to vector<8x32xf32>
    %8 = arith.mulf %6, %7 : vector<8x32xf32>
    %9 = vector.shape_cast %8 : vector<8x32xf32> to vector<1x8x4x8xf32>
    %10 = tpu.transpose %9, [0, 2, 1, 3] : vector<1x8x4x8xf32> -> vector<1x4x8x8xf32>
    %11 = vector.shape_cast %10 : vector<1x4x8x8xf32> to vector<4x8x8xf32>
    %c0_6 = arith.constant 0 : index
    %c0_7 = arith.constant 0 : index
    %c0_8 = arith.constant 0 : index
    %12 = vector.load %arg18[%c0_6, %c0_7, %c0_8] : memref<4x8x8xf32, #tpu.memory_space<vmem>>, vector<4x8x8xf32>
    "tpu.trace_start"() <{level = 10 : i32, message = "gqd,gkd->gqk"}> : () -> ()
    %cst_9 = arith.constant dense<0.000000e+00> : vector<4x8x8xf32>
    %13 = tpu.matmul %11, %12, %cst_9 {dimension_numbers = #tpu.dot_dimension_numbers<[2], [2], [1], [1], [0, 0, 0, 1, 1, 1], [0], [0]>} : vector<4x8x8xf32>, vector<4x8x8xf32>, vector<4x8x8xf32> -> vector<4x8x8xf32>
    "tpu.trace_stop"() : () -> ()
    %cst_10 = arith.constant dense<0xFF800000> : vector<4x8xf32>
    %14 = vector.multi_reduction <maximumf>, %13, %cst_10 [2] : vector<4x8x8xf32> to vector<4x8xf32>
    %15 = vector.shape_cast %14 : vector<4x8xf32> to vector<4x8x1xf32>
    %16 = vector.broadcast %15 : vector<4x8x1xf32> to vector<4x8x8xf32>
    %17 = arith.subf %13, %16 : vector<4x8x8xf32>
    %18 = math.exp %17 : vector<4x8x8xf32>
    %cst_11 = arith.constant dense<0.000000e+00> : vector<4x8xf32>
    %19 = vector.multi_reduction <add>, %18, %cst_11 [2] : vector<4x8x8xf32> to vector<4x8xf32>
    %20 = vector.shape_cast %19 : vector<4x8xf32> to vector<4x8x1xf32>
    %21 = tpu.reciprocal %20 : vector<4x8x1xf32> -> vector<4x8x1xf32>
    %22 = vector.broadcast %21 : vector<4x8x1xf32> to vector<4x8x8xf32>
    %23 = arith.mulf %18, %22 : vector<4x8x8xf32>
    %24 = vector.shape_cast %23 : vector<4x8x8xf32> to vector<1x4x8x8xf32>
    %c0_12 = arith.constant 0 : index
    %c0_13 = arith.constant 0 : index
    %c0_14 = arith.constant 0 : index
    %c0_15 = arith.constant 0 : index
    %25 = vector.load %arg17[%c0_12, %c0_13, %c0_14, %c0_15] : memref<1x4x8x8xf32, #tpu.memory_space<vmem>>, vector<1x4x8x8xf32>
    tpu.vector_store %arg17[%c0_12, %c0_13, %c0_14, %c0_15], %24 {strides = array<i32>} : memref<1x4x8x8xf32, #tpu.memory_space<vmem>>, vector<1x4x8x8xf32>,
    %c0_16 = arith.constant 0 : index
    %c0_17 = arith.constant 0 : index
    %c0_18 = arith.constant 0 : index
    %26 = vector.load %arg19[%c0_16, %c0_17, %c0_18] : memref<4x8x8xf32, #tpu.memory_space<vmem>>, vector<4x8x8xf32>
    "tpu.trace_start"() <{level = 10 : i32, message = "gqk,gkd->gqd"}> : () -> ()
    %cst_19 = arith.constant dense<0.000000e+00> : vector<4x8x8xf32>
    %27 = tpu.matmul %23, %26, %cst_19 {dimension_numbers = #tpu.dot_dimension_numbers<[2], [1], [1], [2], [0, 0, 0, 1, 1, 2], [0], [0]>} : vector<4x8x8xf32>, vector<4x8x8xf32>, vector<4x8x8xf32> -> vector<4x8x8xf32>
    "tpu.trace_stop"() : () -> ()
    %28 = vector.shape_cast %27 : vector<4x8x8xf32> to vector<1x4x8x8xf32>
    %29 = tpu.transpose %28, [0, 2, 1, 3] : vector<1x4x8x8xf32> -> vector<1x8x4x8xf32>
    %30 = vector.shape_cast %29 : vector<1x8x4x8xf32> to vector<8x32xf32>
    %c0_20 = arith.constant 0 : index
    %c0_21 = arith.constant 0 : index
    %31 = vector.load %arg6[%c0_20, %c0_21] : memref<32x32xf32, #tpu.memory_space<vmem>>, vector<32x32xf32>
    %cst_22 = arith.constant dense<0.000000e+00> : vector<8x32xf32>
    %32 = tpu.matmul %30, %31, %cst_22 {dimension_numbers = #tpu.dot_dimension_numbers<[1], [0], [0], [1], [0, 0, 1, 1], [], []>} : vector<8x32xf32>, vector<32x32xf32>, vector<8x32xf32> -> vector<8x32xf32>
    %c0_23 = arith.constant 0 : index
    %c0_24 = arith.constant 0 : index
    %33 = vector.load %arg7[%c0_23, %c0_24] : memref<1x32xf32, #tpu.memory_space<vmem>>, vector<1x32xf32>
    %34 = vector.broadcast %33 : vector<1x32xf32> to vector<8x32xf32>
    %35 = arith.addf %32, %34 : vector<8x32xf32>
    %36 = arith.addf %35, %6 : vector<8x32xf32>
    %c0_25 = arith.constant 0 : index
    %c0_26 = arith.constant 0 : index
    %37 = vector.load %arg8[%c0_25, %c0_26] : memref<1x32xf32, #tpu.memory_space<vmem>>, vector<1x32xf32>
    %c0_27 = arith.constant 0 : index
    %c0_28 = arith.constant 0 : index
    %38 = vector.load %arg9[%c0_27, %c0_28] : memref<1x32xf32, #tpu.memory_space<vmem>>, vector<1x32xf32>
    %cst_29 = arith.constant dense<0.000000e+00> : vector<8xf32>
    %39 = vector.multi_reduction <add>, %36, %cst_29 [1] : vector<8x32xf32> to vector<8xf32>
    %40 = vector.shape_cast %39 : vector<8xf32> to vector<8x1xf32>
    %cst_30 = arith.constant 3.200000e+01 : f32
    %41 = vector.broadcast %cst_30 : f32 to vector<8x1xf32>
    %42 = arith.divf %40, %41 : vector<8x1xf32>
    %43 = vector.broadcast %42 : vector<8x1xf32> to vector<8x32xf32>
    %44 = arith.subf %36, %43 : vector<8x32xf32>
    %45 = arith.mulf %44, %44 : vector<8x32xf32>
    %cst_31 = arith.constant dense<0.000000e+00> : vector<8xf32>
    %46 = vector.multi_reduction <add>, %45, %cst_31 [1] : vector<8x32xf32> to vector<8xf32>
    %47 = vector.shape_cast %46 : vector<8xf32> to vector<8x1xf32>
    %cst_32 = arith.constant 3.200000e+01 : f32
    %48 = vector.broadcast %cst_32 : f32 to vector<8x1xf32>
    %49 = arith.divf %47, %48 : vector<8x1xf32>
    %50 = vector.broadcast %42 : vector<8x1xf32> to vector<8x32xf32>
    %51 = arith.subf %36, %50 : vector<8x32xf32>
    %cst_33 = arith.constant 9.99999997E-7 : f32
    %52 = vector.broadcast %cst_33 : f32 to vector<8x1xf32>
    %53 = arith.addf %49, %52 : vector<8x1xf32>
    %54 = math.rsqrt %53 : vector<8x1xf32>
    %55 = vector.broadcast %54 : vector<8x1xf32> to vector<8x32xf32>
    %56 = arith.mulf %51, %55 : vector<8x32xf32>
    %57 = vector.broadcast %37 : vector<1x32xf32> to vector<8x32xf32>
    %58 = arith.mulf %56, %57 : vector<8x32xf32>
    %59 = vector.broadcast %38 : vector<1x32xf32> to vector<8x32xf32>
    %60 = arith.addf %58, %59 : vector<8x32xf32>
    %c0_34 = arith.constant 0 : index
    %c0_35 = arith.constant 0 : index
    %61 = vector.load %arg10[%c0_34, %c0_35] : memref<32x128xf32, #tpu.memory_space<vmem>>, vector<32x128xf32>
    %cst_36 = arith.constant dense<0.000000e+00> : vector<8x128xf32>
    %62 = tpu.matmul %60, %61, %cst_36 {dimension_numbers = #tpu.dot_dimension_numbers<[1], [0], [0], [1], [0, 0, 1, 1], [], []>} : vector<8x32xf32>, vector<32x128xf32>, vector<8x128xf32> -> vector<8x128xf32>
    %c0_37 = arith.constant 0 : index
    %c0_38 = arith.constant 0 : index
    %63 = vector.load %arg11[%c0_37, %c0_38] : memref<1x128xf32, #tpu.memory_space<vmem>>, vector<1x128xf32>
    %64 = vector.broadcast %63 : vector<1x128xf32> to vector<8x128xf32>
    %65 = arith.addf %62, %64 : vector<8x128xf32>
    %cst_39 = arith.constant 0.000000e+00 : f32
    %66 = vector.broadcast %cst_39 : f32 to vector<8x128xf32>
    %67 = arith.maximumf %65, %66 : vector<8x128xf32>
    %c0_40 = arith.constant 0 : index
    %c0_41 = arith.constant 0 : index
    %68 = vector.load %arg12[%c0_40, %c0_41] : memref<128x32xf32, #tpu.memory_space<vmem>>, vector<128x32xf32>
    %cst_42 = arith.constant dense<0.000000e+00> : vector<8x32xf32>
    %69 = tpu.matmul %67, %68, %cst_42 {dimension_numbers = #tpu.dot_dimension_numbers<[1], [0], [0], [1], [0, 0, 1, 1], [], []>} : vector<8x128xf32>, vector<128x32xf32>, vector<8x32xf32> -> vector<8x32xf32>
    %c0_43 = arith.constant 0 : index
    %c0_44 = arith.constant 0 : index
    %70 = vector.load %arg13[%c0_43, %c0_44] : memref<1x32xf32, #tpu.memory_space<vmem>>, vector<1x32xf32>
    %71 = vector.broadcast %70 : vector<1x32xf32> to vector<8x32xf32>
    %72 = arith.addf %69, %71 : vector<8x32xf32>
    %73 = arith.addf %72, %60 : vector<8x32xf32>
    %c0_45 = arith.constant 0 : index
    %c0_46 = arith.constant 0 : index
    %74 = vector.load %arg14[%c0_45, %c0_46] : memref<1x32xf32, #tpu.memory_space<vmem>>, vector<1x32xf32>
    %c0_47 = arith.constant 0 : index
    %c0_48 = arith.constant 0 : index
    %75 = vector.load %arg15[%c0_47, %c0_48] : memref<1x32xf32, #tpu.memory_space<vmem>>, vector<1x32xf32>
    %cst_49 = arith.constant dense<0.000000e+00> : vector<8xf32>
    %76 = vector.multi_reduction <add>, %73, %cst_49 [1] : vector<8x32xf32> to vector<8xf32>
    %77 = vector.shape_cast %76 : vector<8xf32> to vector<8x1xf32>
    %cst_50 = arith.constant 3.200000e+01 : f32
    %78 = vector.broadcast %cst_50 : f32 to vector<8x1xf32>
    %79 = arith.divf %77, %78 : vector<8x1xf32>
    %80 = vector.broadcast %79 : vector<8x1xf32> to vector<8x32xf32>
    %81 = arith.subf %73, %80 : vector<8x32xf32>
    %82 = arith.mulf %81, %81 : vector<8x32xf32>
    %cst_51 = arith.constant dense<0.000000e+00> : vector<8xf32>
    %83 = vector.multi_reduction <add>, %82, %cst_51 [1] : vector<8x32xf32> to vector<8xf32>
    %84 = vector.shape_cast %83 : vector<8xf32> to vector<8x1xf32>
    %cst_52 = arith.constant 3.200000e+01 : f32
    %85 = vector.broadcast %cst_52 : f32 to vector<8x1xf32>
    %86 = arith.divf %84, %85 : vector<8x1xf32>
    %87 = vector.broadcast %79 : vector<8x1xf32> to vector<8x32xf32>
    %88 = arith.subf %73, %87 : vector<8x32xf32>
    %cst_53 = arith.constant 9.99999997E-7 : f32
    %89 = vector.broadcast %cst_53 : f32 to vector<8x1xf32>
    %90 = arith.addf %86, %89 : vector<8x1xf32>
    %91 = math.rsqrt %90 : vector<8x1xf32>
    %92 = vector.broadcast %91 : vector<8x1xf32> to vector<8x32xf32>
    %93 = arith.mulf %88, %92 : vector<8x32xf32>
    %94 = vector.broadcast %74 : vector<1x32xf32> to vector<8x32xf32>
    %95 = arith.mulf %93, %94 : vector<8x32xf32>
    %96 = vector.broadcast %75 : vector<1x32xf32> to vector<8x32xf32>
    %97 = arith.addf %95, %96 : vector<8x32xf32>
    %98 = vector.shape_cast %97 : vector<8x32xf32> to vector<1x8x32xf32>
    %c0_54 = arith.constant 0 : index
    %c0_55 = arith.constant 0 : index
    %c0_56 = arith.constant 0 : index
    %99 = vector.load %arg16[%c0_54, %c0_55, %c0_56] : memref<1x8x32xf32, #tpu.memory_space<vmem>>, vector<1x8x32xf32>
    tpu.vector_store %arg16[%c0_54, %c0_55, %c0_56], %98 {strides = array<i32>} : memref<1x8x32xf32, #tpu.memory_space<vmem>>, vector<1x8x32xf32>,
    return
  }
  func.func @transform_0(%arg0: i32, %arg1: i32) -> (i32, i32, i32) {
    %c0_i32 = arith.constant 0 : i32
    %c0_i32_0 = arith.constant 0 : i32
    %c0_i32_1 = arith.constant 0 : i32
    return %arg0, %c0_i32, %c0_i32_0 : i32, i32, i32
  }
  func.func @transform_1(%arg0: i32, %arg1: i32) -> (i32, i32) {
    %c0_i32 = arith.constant 0 : i32
    %c0_i32_0 = arith.constant 0 : i32
    %c0_i32_1 = arith.constant 0 : i32
    return %c0_i32, %c0_i32_0 : i32, i32
  }
  func.func @transform_2(%arg0: i32, %arg1: i32) -> (i32, i32) {
    %c0_i32 = arith.constant 0 : i32
    %c0_i32_0 = arith.constant 0 : i32
    %c0_i32_1 = arith.constant 0 : i32
    return %c0_i32, %c0_i32_0 : i32, i32
  }
  func.func @transform_3(%arg0: i32, %arg1: i32) -> (i32, i32) {
    %c0_i32 = arith.constant 0 : i32
    %c0_i32_0 = arith.constant 0 : i32
    %c0_i32_1 = arith.constant 0 : i32
    return %c0_i32, %c0_i32_0 : i32, i32
  }
  func.func @transform_4(%arg0: i32, %arg1: i32) -> (i32, i32) {
    %c0_i32 = arith.constant 0 : i32
    %c0_i32_0 = arith.constant 0 : i32
    %c0_i32_1 = arith.constant 0 : i32
    return %c0_i32, %c0_i32_0 : i32, i32
  }
  func.func @transform_5(%arg0: i32, %arg1: i32) -> (i32, i32) {
    %c0_i32 = arith.constant 0 : i32
    %c0_i32_0 = arith.constant 0 : i32
    %c0_i32_1 = arith.constant 0 : i32
    return %c0_i32, %c0_i32_0 : i32, i32
  }
  func.func @transform_6(%arg0: i32, %arg1: i32) -> (i32, i32) {
    %c0_i32 = arith.constant 0 : i32
    %c0_i32_0 = arith.constant 0 : i32
    %c0_i32_1 = arith.constant 0 : i32
    return %c0_i32, %c0_i32_0 : i32, i32
  }
  func.func @transform_7(%arg0: i32, %arg1: i32) -> (i32, i32) {
    %c0_i32 = arith.constant 0 : i32
    %c0_i32_0 = arith.constant 0 : i32
    %c0_i32_1 = arith.constant 0 : i32
    return %c0_i32, %c0_i32_0 : i32, i32
  }
  func.func @transform_8(%arg0: i32, %arg1: i32) -> (i32, i32) {
    %c0_i32 = arith.constant 0 : i32
    %c0_i32_0 = arith.constant 0 : i32
    %c0_i32_1 = arith.constant 0 : i32
    return %c0_i32, %c0_i32_0 : i32, i32
  }
  func.func @transform_9(%arg0: i32, %arg1: i32) -> (i32, i32) {
    %c0_i32 = arith.constant 0 : i32
    %c0_i32_0 = arith.constant 0 : i32
    %c0_i32_1 = arith.constant 0 : i32
    return %c0_i32, %c0_i32_0 : i32, i32
  }
  func.func @transform_10(%arg0: i32, %arg1: i32) -> (i32, i32) {
    %c0_i32 = arith.constant 0 : i32
    %c0_i32_0 = arith.constant 0 : i32
    %c0_i32_1 = arith.constant 0 : i32
    return %c0_i32, %c0_i32_0 : i32, i32
  }
  func.func @transform_11(%arg0: i32, %arg1: i32) -> (i32, i32) {
    %c0_i32 = arith.constant 0 : i32
    %c0_i32_0 = arith.constant 0 : i32
    %c0_i32_1 = arith.constant 0 : i32
    return %c0_i32, %c0_i32_0 : i32, i32
  }
  func.func @transform_12(%arg0: i32, %arg1: i32) -> (i32, i32) {
    %c0_i32 = arith.constant 0 : i32
    %c0_i32_0 = arith.constant 0 : i32
    %c0_i32_1 = arith.constant 0 : i32
    return %c0_i32, %c0_i32_0 : i32, i32
  }
  func.func @transform_13(%arg0: i32, %arg1: i32) -> (i32, i32) {
    %c0_i32 = arith.constant 0 : i32
    %c0_i32_0 = arith.constant 0 : i32
    %c0_i32_1 = arith.constant 0 : i32
    return %c0_i32, %c0_i32_0 : i32, i32
  }
  func.func @transform_14(%arg0: i32, %arg1: i32) -> (i32, i32, i32) {
    %c0_i32 = arith.constant 0 : i32
    %c0_i32_0 = arith.constant 0 : i32
    return %arg0, %arg1, %c0_i32 : i32, i32, i32
  }
  func.func @transform_15(%arg0: i32, %arg1: i32) -> (i32, i32, i32, i32) {
    %c0_i32 = arith.constant 0 : i32
    %c0_i32_0 = arith.constant 0 : i32
    %c0_i32_1 = arith.constant 0 : i32
    return %arg0, %c0_i32, %arg1, %c0_i32_0 : i32, i32, i32, i32
  }
}

module attributes {stable_mosaic.version = 11 : i64} {
  func.func @encoder_layer_kernel(%arg0: i32, %arg1: i32, %arg2: memref<1x8x32xf32, #tpu.memory_space<vmem>>, %arg3: memref<32x32xf32, #tpu.memory_space<vmem>>, %arg4: memref<32x32xf32, #tpu.memory_space<vmem>>, %arg5: memref<32x32xf32, #tpu.memory_space<vmem>>, %arg6: memref<32x32xf32, #tpu.memory_space<vmem>>, %arg7: memref<1x32xf32, #tpu.memory_space<vmem>>, %arg8: memref<1x32xf32, #tpu.memory_space<vmem>>, %arg9: memref<1x32xf32, #tpu.memory_space<vmem>>, %arg10: memref<32x128xf32, #tpu.memory_space<vmem>>, %arg11: memref<1x128xf32, #tpu.memory_space<vmem>>, %arg12: memref<128x32xf32, #tpu.memory_space<vmem>>, %arg13: memref<1x32xf32, #tpu.memory_space<vmem>>, %arg14: memref<1x32xf32, #tpu.memory_space<vmem>>, %arg15: memref<1x32xf32, #tpu.memory_space<vmem>>, %arg16: memref<1x8x32xf32, #tpu.memory_space<vmem>>, %arg17: memref<1x4x8x8xf32, #tpu.memory_space<vmem>>, %arg18: memref<4x8x8xf32, #tpu.memory_space<vmem>>, %arg19: memref<4x8x8xf32, #tpu.memory_space<vmem>>) attributes {dimension_semantics = [#tpu.dimension_semantics<parallel>, #tpu.dimension_semantics<arbitrary>], iteration_bounds = array<i64: 2, 1>, scalar_prefetch = 0 : i64, scratch_operands = 2 : i64, tpu.core_type = #tpu.core_type<tc>, window_params = [{transform_indices = @transform_0, window_bounds = array<i64: 1, 8, 32>}, {pipeline_mode = #tpu.pipeline_mode<synchronous>, transform_indices = @transform_1, window_bounds = array<i64: 32, 32>}, {pipeline_mode = #tpu.pipeline_mode<synchronous>, transform_indices = @transform_2, window_bounds = array<i64: 32, 32>}, {pipeline_mode = #tpu.pipeline_mode<synchronous>, transform_indices = @transform_3, window_bounds = array<i64: 32, 32>}, {pipeline_mode = #tpu.pipeline_mode<synchronous>, transform_indices = @transform_4, window_bounds = array<i64: 32, 32>}, {pipeline_mode = #tpu.pipeline_mode<synchronous>, transform_indices = @transform_5, window_bounds = array<i64: 1, 32>}, {pipeline_mode = #tpu.pipeline_mode<synchronous>, transform_indices = @transform_6, window_bounds = array<i64: 1, 32>}, {pipeline_mode = #tpu.pipeline_mode<synchronous>, transform_indices = @transform_7, window_bounds = array<i64: 1, 32>}, {pipeline_mode = #tpu.pipeline_mode<synchronous>, transform_indices = @transform_8, window_bounds = array<i64: 32, 128>}, {pipeline_mode = #tpu.pipeline_mode<synchronous>, transform_indices = @transform_9, window_bounds = array<i64: 1, 128>}, {pipeline_mode = #tpu.pipeline_mode<synchronous>, transform_indices = @transform_10, window_bounds = array<i64: 128, 32>}, {pipeline_mode = #tpu.pipeline_mode<synchronous>, transform_indices = @transform_11, window_bounds = array<i64: 1, 32>}, {pipeline_mode = #tpu.pipeline_mode<synchronous>, transform_indices = @transform_12, window_bounds = array<i64: 1, 32>}, {pipeline_mode = #tpu.pipeline_mode<synchronous>, transform_indices = @transform_13, window_bounds = array<i64: 1, 32>}, {transform_indices = @transform_14, window_bounds = array<i64: 1, 8, 32>}, {transform_indices = @transform_15, window_bounds = array<i64: 1, 4, 8, 8>}]} {
    %c0_i32 = arith.constant 0 : i32
    %0 = arith.cmpi eq, %arg1, %c0_i32 : i32
    %1 = arith.extui %0 : i1 to i32
    %c0_i32_0 = arith.constant 0 : i32
    %2 = arith.cmpi ne, %1, %c0_i32_0 : i32
    scf.if %2 {
      %c0_57 = arith.constant 0 : index
      %c0_58 = arith.constant 0 : index
      %c0_59 = arith.constant 0 : index
      %100 = vector.load %arg2[%c0_57, %c0_58, %c0_59] : memref<1x8x32xf32, #tpu.memory_space<vmem>>, vector<1x8x32xf32>
      %101 = vector.shape_cast %100 : vector<1x8x32xf32> to vector<8x32xf32>
      %c0_60 = arith.constant 0 : index
      %c0_61 = arith.constant 0 : index
      %102 = vector.load %arg4[%c0_60, %c0_61] : memref<32x32xf32, #tpu.memory_space<vmem>>, vector<32x32xf32>
      %cst_62 = arith.constant dense<0.000000e+00> : vector<8x32xf32>
      %103 = tpu.matmul %101, %102, %cst_62 {dimension_numbers = #tpu.dot_dimension_numbers<[1], [0], [0], [1], [0, 0, 1, 1], [], []>} : vector<8x32xf32>, vector<32x32xf32>, vector<8x32xf32> -> vector<8x32xf32>
      %c0_63 = arith.constant 0 : index
      %c0_64 = arith.constant 0 : index
      %104 = vector.load %arg5[%c0_63, %c0_64] : memref<32x32xf32, #tpu.memory_space<vmem>>, vector<32x32xf32>
      %cst_65 = arith.constant dense<0.000000e+00> : vector<8x32xf32>
      %105 = tpu.matmul %101, %104, %cst_65 {dimension_numbers = #tpu.dot_dimension_numbers<[1], [0], [0], [1], [0, 0, 1, 1], [], []>} : vector<8x32xf32>, vector<32x32xf32>, vector<8x32xf32> -> vector<8x32xf32>
      %106 = vector.shape_cast %103 : vector<8x32xf32> to vector<1x8x4x8xf32>
      %107 = tpu.transpose %106, [0, 2, 1, 3] : vector<1x8x4x8xf32> -> vector<1x4x8x8xf32>
      %108 = vector.shape_cast %107 : vector<1x4x8x8xf32> to vector<4x8x8xf32>
      %c0_66 = arith.constant 0 : index
      %c0_67 = arith.constant 0 : index
      %c0_68 = arith.constant 0 : index
      %109 = vector.load %arg18[%c0_66, %c0_67, %c0_68] : memref<4x8x8xf32, #tpu.memory_space<vmem>>, vector<4x8x8xf32>
      tpu.vector_store %arg18[%c0_66, %c0_67, %c0_68], %108 {strides = array<i32>} : memref<4x8x8xf32, #tpu.memory_space<vmem>>, vector<4x8x8xf32>,
      %110 = vector.shape_cast %105 : vector<8x32xf32> to vector<1x8x4x8xf32>
      %111 = tpu.transpose %110, [0, 2, 1, 3] : vector<1x8x4x8xf32> -> vector<1x4x8x8xf32>
      %112 = vector.shape_cast %111 : vector<1x4x8x8xf32> to vector<4x8x8xf32>
      %c0_69 = arith.constant 0 : index
      %c0_70 = arith.constant 0 : index
      %c0_71 = arith.constant 0 : index
      %113 = vector.load %arg19[%c0_69, %c0_70, %c0_71] : memref<4x8x8xf32, #tpu.memory_space<vmem>>, vector<4x8x8xf32>
      tpu.vector_store %arg19[%c0_69, %c0_70, %c0_71], %112 {strides = array<i32>} : memref<4x8x8xf32, #tpu.memory_space<vmem>>, vector<4x8x8xf32>,
    } else {
    }
    %c0 = arith.constant 0 : index
    %c0_1 = arith.constant 0 : index
    %c0_2 = arith.constant 0 : index
    %3 = vector.load %arg2[%c0, %c0_1, %c0_2] : memref<1x8x32xf32, #tpu.memory_space<vmem>>, vector<1x8x32xf32>
    %4 = vector.shape_cast %3 : vector<1x8x32xf32> to vector<8x32xf32>
    %c0_3 = arith.constant 0 : index
    %c0_4 = arith.constant 0 : index
    %5 = vector.load %arg3[%c0_3, %c0_4] : memref<32x32xf32, #tpu.memory_space<vmem>>, vector<32x32xf32>
    %cst = arith.constant dense<0.000000e+00> : vector<8x32xf32>
    %6 = tpu.matmul %4, %5, %cst {dimension_numbers = #tpu.dot_dimension_numbers<[1], [0], [0], [1], [0, 0, 1, 1], [], []>} : vector<8x32xf32>, vector<32x32xf32>, vector<8x32xf32> -> vector<8x32xf32>
    %cst_5 = arith.constant 5.65685415 : f32
    %7 = vector.broadcast %cst_5 : f32 to vector<8x32xf32>
    %8 = arith.mulf %6, %7 : vector<8x32xf32>
    %9 = vector.shape_cast %8 : vector<8x32xf32> to vector<1x8x4x8xf32>
    %10 = tpu.transpose %9, [0, 2, 1, 3] : vector<1x8x4x8xf32> -> vector<1x4x8x8xf32>
    %11 = vector.shape_cast %10 : vector<1x4x8x8xf32> to vector<4x8x8xf32>
    %c0_6 = arith.constant 0 : index
    %c0_7 = arith.constant 0 : index
    %c0_8 = arith.constant 0 : index
    %12 = vector.load %arg18[%c0_6, %c0_7, %c0_8] : memref<4x8x8xf32, #tpu.memory_space<vmem>>, vector<4x8x8xf32>
    "tpu.trace_start"() <{level = 10 : i32, message = "gqd,gkd->gqk"}> : () -> ()
    %cst_9 = arith.constant dense<0.000000e+00> : vector<4x8x8xf32>
    %13 = tpu.matmul %11, %12, %cst_9 {dimension_numbers = #tpu.dot_dimension_numbers<[2], [2], [1], [1], [0, 0, 0, 1, 1, 1], [0], [0]>} : vector<4x8x8xf32>, vector<4x8x8xf32>, vector<4x8x8xf32> -> vector<4x8x8xf32>
    "tpu.trace_stop"() : () -> ()
    %cst_10 = arith.constant dense<0xFF800000> : vector<4x8xf32>
    %14 = vector.multi_reduction <maximumf>, %13, %cst_10 [2] : vector<4x8x8xf32> to vector<4x8xf32>
    %15 = vector.shape_cast %14 : vector<4x8xf32> to vector<4x8x1xf32>
    %16 = vector.broadcast %15 : vector<4x8x1xf32> to vector<4x8x8xf32>
    %17 = arith.subf %13, %16 : vector<4x8x8xf32>
    %18 = math.exp %17 : vector<4x8x8xf32>
    %cst_11 = arith.constant dense<0.000000e+00> : vector<4x8xf32>
    %19 = vector.multi_reduction <add>, %18, %cst_11 [2] : vector<4x8x8xf32> to vector<4x8xf32>
    %20 = vector.shape_cast %19 : vector<4x8xf32> to vector<4x8x1xf32>
    %21 = tpu.reciprocal %20 : vector<4x8x1xf32> -> vector<4x8x1xf32>
    %22 = vector.broadcast %21 : vector<4x8x1xf32> to vector<4x8x8xf32>
    %23 = arith.mulf %18, %22 : vector<4x8x8xf32>
    %24 = vector.shape_cast %23 : vector<4x8x8xf32> to vector<1x4x8x8xf32>
    %c0_12 = arith.constant 0 : index
    %c0_13 = arith.constant 0 : index
    %c0_14 = arith.constant 0 : index
    %c0_15 = arith.constant 0 : index
    %25 = vector.load %arg17[%c0_12, %c0_13, %c0_14, %c0_15] : memref<1x4x8x8xf32, #tpu.memory_space<vmem>>, vector<1x4x8x8xf32>
    tpu.vector_store %arg17[%c0_12, %c0_13, %c0_14, %c0_15], %24 {strides = array<i32>} : memref<1x4x8x8xf32, #tpu.memory_space<vmem>>, vector<1x4x8x8xf32>,
    %c0_16 = arith.constant 0 : index
    %c0_17 = arith.constant 0 : index
    %c0_18 = arith.constant 0 : index
    %26 = vector.load %arg19[%c0_16, %c0_17, %c0_18] : memref<4x8x8xf32, #tpu.memory_space<vmem>>, vector<4x8x8xf32>
    "tpu.trace_start"() <{level = 10 : i32, message = "gqk,gkd->gqd"}> : () -> ()
    %cst_19 = arith.constant dense<0.000000e+00> : vector<4x8x8xf32>
    %27 = tpu.matmul %23, %26, %cst_19 {dimension_numbers = #tpu.dot_dimension_numbers<[2], [1], [1], [2], [0, 0, 0, 1, 1, 2], [0], [0]>} : vector<4x8x8xf32>, vector<4x8x8xf32>, vector<4x8x8xf32> -> vector<4x8x8xf32>
    "tpu.trace_stop"() : () -> ()
    %28 = vector.shape_cast %27 : vector<4x8x8xf32> to vector<1x4x8x8xf32>
    %29 = tpu.transpose %28, [0, 2, 1, 3] : vector<1x4x8x8xf32> -> vector<1x8x4x8xf32>
    %30 = vector.shape_cast %29 : vector<1x8x4x8xf32> to vector<8x32xf32>
    %c0_20 = arith.constant 0 : index
    %c0_21 = arith.constant 0 : index
    %31 = vector.load %arg6[%c0_20, %c0_21] : memref<32x32xf32, #tpu.memory_space<vmem>>, vector<32x32xf32>
    %cst_22 = arith.constant dense<0.000000e+00> : vector<8x32xf32>
    %32 = tpu.matmul %30, %31, %cst_22 {dimension_numbers = #tpu.dot_dimension_numbers<[1], [0], [0], [1], [0, 0, 1, 1], [], []>} : vector<8x32xf32>, vector<32x32xf32>, vector<8x32xf32> -> vector<8x32xf32>
    %c0_23 = arith.constant 0 : index
    %c0_24 = arith.constant 0 : index
    %33 = vector.load %arg7[%c0_23, %c0_24] : memref<1x32xf32, #tpu.memory_space<vmem>>, vector<1x32xf32>
    %34 = vector.broadcast %33 : vector<1x32xf32> to vector<8x32xf32>
    %35 = arith.addf %32, %34 : vector<8x32xf32>
    %36 = arith.addf %35, %6 : vector<8x32xf32>
    %c0_25 = arith.constant 0 : index
    %c0_26 = arith.constant 0 : index
    %37 = vector.load %arg8[%c0_25, %c0_26] : memref<1x32xf32, #tpu.memory_space<vmem>>, vector<1x32xf32>
    %c0_27 = arith.constant 0 : index
    %c0_28 = arith.constant 0 : index
    %38 = vector.load %arg9[%c0_27, %c0_28] : memref<1x32xf32, #tpu.memory_space<vmem>>, vector<1x32xf32>
    %cst_29 = arith.constant dense<0.000000e+00> : vector<8xf32>
    %39 = vector.multi_reduction <add>, %36, %cst_29 [1] : vector<8x32xf32> to vector<8xf32>
    %40 = vector.shape_cast %39 : vector<8xf32> to vector<8x1xf32>
    %cst_30 = arith.constant 3.200000e+01 : f32
    %41 = vector.broadcast %cst_30 : f32 to vector<8x1xf32>
    %42 = arith.divf %40, %41 : vector<8x1xf32>
    %43 = vector.broadcast %42 : vector<8x1xf32> to vector<8x32xf32>
    %44 = arith.subf %36, %43 : vector<8x32xf32>
    %45 = arith.mulf %44, %44 : vector<8x32xf32>
    %cst_31 = arith.constant dense<0.000000e+00> : vector<8xf32>
    %46 = vector.multi_reduction <add>, %45, %cst_31 [1] : vector<8x32xf32> to vector<8xf32>
    %47 = vector.shape_cast %46 : vector<8xf32> to vector<8x1xf32>
    %cst_32 = arith.constant 3.200000e+01 : f32
    %48 = vector.broadcast %cst_32 : f32 to vector<8x1xf32>
    %49 = arith.divf %47, %48 : vector<8x1xf32>
    %50 = vector.broadcast %42 : vector<8x1xf32> to vector<8x32xf32>
    %51 = arith.subf %36, %50 : vector<8x32xf32>
    %cst_33 = arith.constant 9.99999997E-7 : f32
    %52 = vector.broadcast %cst_33 : f32 to vector<8x1xf32>
    %53 = arith.addf %49, %52 : vector<8x1xf32>
    %54 = math.rsqrt %53 : vector<8x1xf32>
    %55 = vector.broadcast %54 : vector<8x1xf32> to vector<8x32xf32>
    %56 = arith.mulf %51, %55 : vector<8x32xf32>
    %57 = vector.broadcast %37 : vector<1x32xf32> to vector<8x32xf32>
    %58 = arith.mulf %56, %57 : vector<8x32xf32>
    %59 = vector.broadcast %38 : vector<1x32xf32> to vector<8x32xf32>
    %60 = arith.addf %58, %59 : vector<8x32xf32>
    %c0_34 = arith.constant 0 : index
    %c0_35 = arith.constant 0 : index
    %61 = vector.load %arg10[%c0_34, %c0_35] : memref<32x128xf32, #tpu.memory_space<vmem>>, vector<32x128xf32>
    %cst_36 = arith.constant dense<0.000000e+00> : vector<8x128xf32>
    %62 = tpu.matmul %60, %61, %cst_36 {dimension_numbers = #tpu.dot_dimension_numbers<[1], [0], [0], [1], [0, 0, 1, 1], [], []>} : vector<8x32xf32>, vector<32x128xf32>, vector<8x128xf32> -> vector<8x128xf32>
    %c0_37 = arith.constant 0 : index
    %c0_38 = arith.constant 0 : index
    %63 = vector.load %arg11[%c0_37, %c0_38] : memref<1x128xf32, #tpu.memory_space<vmem>>, vector<1x128xf32>
    %64 = vector.broadcast %63 : vector<1x128xf32> to vector<8x128xf32>
    %65 = arith.addf %62, %64 : vector<8x128xf32>
    %cst_39 = arith.constant 0.000000e+00 : f32
    %66 = vector.broadcast %cst_39 : f32 to vector<8x128xf32>
    %67 = arith.maximumf %65, %66 : vector<8x128xf32>
    %c0_40 = arith.constant 0 : index
    %c0_41 = arith.constant 0 : index
    %68 = vector.load %arg12[%c0_40, %c0_41] : memref<128x32xf32, #tpu.memory_space<vmem>>, vector<128x32xf32>
    %cst_42 = arith.constant dense<0.000000e+00> : vector<8x32xf32>
    %69 = tpu.matmul %67, %68, %cst_42 {dimension_numbers = #tpu.dot_dimension_numbers<[1], [0], [0], [1], [0, 0, 1, 1], [], []>} : vector<8x128xf32>, vector<128x32xf32>, vector<8x32xf32> -> vector<8x32xf32>
    %c0_43 = arith.constant 0 : index
    %c0_44 = arith.constant 0 : index
    %70 = vector.load %arg13[%c0_43, %c0_44] : memref<1x32xf32, #tpu.memory_space<vmem>>, vector<1x32xf32>
    %71 = vector.broadcast %70 : vector<1x32xf32> to vector<8x32xf32>
    %72 = arith.addf %69, %71 : vector<8x32xf32>
    %73 = arith.addf %72, %60 : vector<8x32xf32>
    %c0_45 = arith.constant 0 : index
    %c0_46 = arith.constant 0 : index
    %74 = vector.load %arg14[%c0_45, %c0_46] : memref<1x32xf32, #tpu.memory_space<vmem>>, vector<1x32xf32>
    %c0_47 = arith.constant 0 : index
    %c0_48 = arith.constant 0 : index
    %75 = vector.load %arg15[%c0_47, %c0_48] : memref<1x32xf32, #tpu.memory_space<vmem>>, vector<1x32xf32>
    %cst_49 = arith.constant dense<0.000000e+00> : vector<8xf32>
    %76 = vector.multi_reduction <add>, %73, %cst_49 [1] : vector<8x32xf32> to vector<8xf32>
    %77 = vector.shape_cast %76 : vector<8xf32> to vector<8x1xf32>
    %cst_50 = arith.constant 3.200000e+01 : f32
    %78 = vector.broadcast %cst_50 : f32 to vector<8x1xf32>
    %79 = arith.divf %77, %78 : vector<8x1xf32>
    %80 = vector.broadcast %79 : vector<8x1xf32> to vector<8x32xf32>
    %81 = arith.subf %73, %80 : vector<8x32xf32>
    %82 = arith.mulf %81, %81 : vector<8x32xf32>
    %cst_51 = arith.constant dense<0.000000e+00> : vector<8xf32>
    %83 = vector.multi_reduction <add>, %82, %cst_51 [1] : vector<8x32xf32> to vector<8xf32>
    %84 = vector.shape_cast %83 : vector<8xf32> to vector<8x1xf32>
    %cst_52 = arith.constant 3.200000e+01 : f32
    %85 = vector.broadcast %cst_52 : f32 to vector<8x1xf32>
    %86 = arith.divf %84, %85 : vector<8x1xf32>
    %87 = vector.broadcast %79 : vector<8x1xf32> to vector<8x32xf32>
    %88 = arith.subf %73, %87 : vector<8x32xf32>
    %cst_53 = arith.constant 9.99999997E-7 : f32
    %89 = vector.broadcast %cst_53 : f32 to vector<8x1xf32>
    %90 = arith.addf %86, %89 : vector<8x1xf32>
    %91 = math.rsqrt %90 : vector<8x1xf32>
    %92 = vector.broadcast %91 : vector<8x1xf32> to vector<8x32xf32>
    %93 = arith.mulf %88, %92 : vector<8x32xf32>
    %94 = vector.broadcast %74 : vector<1x32xf32> to vector<8x32xf32>
    %95 = arith.mulf %93, %94 : vector<8x32xf32>
    %96 = vector.broadcast %75 : vector<1x32xf32> to vector<8x32xf32>
    %97 = arith.addf %95, %96 : vector<8x32xf32>
    %98 = vector.shape_cast %97 : vector<8x32xf32> to vector<1x8x32xf32>
    %c0_54 = arith.constant 0 : index
    %c0_55 = arith.constant 0 : index
    %c0_56 = arith.constant 0 : index
    %99 = vector.load %arg16[%c0_54, %c0_55, %c0_56] : memref<1x8x32xf32, #tpu.memory_space<vmem>>, vector<1x8x32xf32>
    tpu.vector_store %arg16[%c0_54, %c0_55, %c0_56], %98 {strides = array<i32>} : memref<1x8x32xf32, #tpu.memory_space<vmem>>, vector<1x8x32xf32>,
    return
  }
  func.func @transform_0(%arg0: i32, %arg1: i32) -> (i32, i32, i32) {
    %c0_i32 = arith.constant 0 : i32
    %c0_i32_0 = arith.constant 0 : i32
    %c0_i32_1 = arith.constant 0 : i32
    return %arg0, %c0_i32, %c0_i32_0 : i32, i32, i32
  }
  func.func @transform_1(%arg0: i32, %arg1: i32) -> (i32, i32) {
    %c0_i32 = arith.constant 0 : i32
    %c0_i32_0 = arith.constant 0 : i32
    %c0_i32_1 = arith.constant 0 : i32
    return %c0_i32, %c0_i32_0 : i32, i32
  }
  func.func @transform_2(%arg0: i32, %arg1: i32) -> (i32, i32) {
    %c0_i32 = arith.constant 0 : i32
    %c0_i32_0 = arith.constant 0 : i32
    %c0_i32_1 = arith.constant 0 : i32
    return %c0_i32, %c0_i32_0 : i32, i32
  }
  func.func @transform_3(%arg0: i32, %arg1: i32) -> (i32, i32) {
    %c0_i32 = arith.constant 0 : i32
    %c0_i32_0 = arith.constant 0 : i32
    %c0_i32_1 = arith.constant 0 : i32
    return %c0_i32, %c0_i32_0 : i32, i32
  }
  func.func @transform_4(%arg0: i32, %arg1: i32) -> (i32, i32) {
    %c0_i32 = arith.constant 0 : i32
    %c0_i32_0 = arith.constant 0 : i32
    %c0_i32_1 = arith.constant 0 : i32
    return %c0_i32, %c0_i32_0 : i32, i32
  }
  func.func @transform_5(%arg0: i32, %arg1: i32) -> (i32, i32) {
    %c0_i32 = arith.constant 0 : i32
    %c0_i32_0 = arith.constant 0 : i32
    %c0_i32_1 = arith.constant 0 : i32
    return %c0_i32, %c0_i32_0 : i32, i32
  }
  func.func @transform_6(%arg0: i32, %arg1: i32) -> (i32, i32) {
    %c0_i32 = arith.constant 0 : i32
    %c0_i32_0 = arith.constant 0 : i32
    %c0_i32_1 = arith.constant 0 : i32
    return %c0_i32, %c0_i32_0 : i32, i32
  }
  func.func @transform_7(%arg0: i32, %arg1: i32) -> (i32, i32) {
    %c0_i32 = arith.constant 0 : i32
    %c0_i32_0 = arith.constant 0 : i32
    %c0_i32_1 = arith.constant 0 : i32
    return %c0_i32, %c0_i32_0 : i32, i32
  }
  func.func @transform_8(%arg0: i32, %arg1: i32) -> (i32, i32) {
    %c0_i32 = arith.constant 0 : i32
    %c0_i32_0 = arith.constant 0 : i32
    %c0_i32_1 = arith.constant 0 : i32
    return %c0_i32, %c0_i32_0 : i32, i32
  }
  func.func @transform_9(%arg0: i32, %arg1: i32) -> (i32, i32) {
    %c0_i32 = arith.constant 0 : i32
    %c0_i32_0 = arith.constant 0 : i32
    %c0_i32_1 = arith.constant 0 : i32
    return %c0_i32, %c0_i32_0 : i32, i32
  }
  func.func @transform_10(%arg0: i32, %arg1: i32) -> (i32, i32) {
    %c0_i32 = arith.constant 0 : i32
    %c0_i32_0 = arith.constant 0 : i32
    %c0_i32_1 = arith.constant 0 : i32
    return %c0_i32, %c0_i32_0 : i32, i32
  }
  func.func @transform_11(%arg0: i32, %arg1: i32) -> (i32, i32) {
    %c0_i32 = arith.constant 0 : i32
    %c0_i32_0 = arith.constant 0 : i32
    %c0_i32_1 = arith.constant 0 : i32
    return %c0_i32, %c0_i32_0 : i32, i32
  }
  func.func @transform_12(%arg0: i32, %arg1: i32) -> (i32, i32) {
    %c0_i32 = arith.constant 0 : i32
    %c0_i32_0 = arith.constant 0 : i32
    %c0_i32_1 = arith.constant 0 : i32
    return %c0_i32, %c0_i32_0 : i32, i32
  }
  func.func @transform_13(%arg0: i32, %arg1: i32) -> (i32, i32) {
    %c0_i32 = arith.constant 0 : i32
    %c0_i32_0 = arith.constant 0 : i32
    %c0_i32_1 = arith.constant 0 : i32
    return %c0_i32, %c0_i32_0 : i32, i32
  }
  func.func @transform_14(%arg0: i32, %arg1: i32) -> (i32, i32, i32) {
    %c0_i32 = arith.constant 0 : i32
    %c0_i32_0 = arith.constant 0 : i32
    return %arg0, %arg1, %c0_i32 : i32, i32, i32
  }
  func.func @transform_15(%arg0: i32, %arg1: i32) -> (i32, i32, i32, i32) {
    %c0_i32 = arith.constant 0 : i32
    %c0_i32_0 = arith.constant 0 : i32
    %c0_i32_1 = arith.constant 0 : i32
    return %arg0, %c0_i32, %arg1, %c0_i32_0 : i32, i32, i32, i32
  }
}

</mosaic_0001>

<llo_original>
// kernel: tpu_custom_call.1
$region0: #{tpu_custom_call.1}
  #allocation0 [shape = 'u32[]', space=smem, size = 0x4, offset = 0x4, fixed_abs, tag = 'smem constant byte address 0x4 - core index']
  #allocation1 [shape = 'u32[144,128]{1,0:T(1,128)}', space=vmem, size = 0x12000, scoped, tag = 'internal scratch']
  #allocation2 [shape = 'f32[4,8,8]{2,1,0:T(8,128)}', space=vmem, size = 0x4000, scoped, tag = 'scratch operand']
  #allocation3 [shape = 'f32[4,8,8]{2,1,0:T(8,128)}', space=vmem, size = 0x4000, scoped, tag = 'scratch operand']
  %s0 = inlined_call_operand.hbm [shape: f32[2,8,32], index: 0, kind: input, shape index: {}]
  %s1 = inlined_call_operand.vmem [shape: f32[32,32], index: 1, kind: input, shape index: {}]
  %s2 = inlined_call_operand.vmem [shape: f32[32,32], index: 2, kind: input, shape index: {}]
  %s3 = inlined_call_operand.vmem [shape: f32[32,32], index: 3, kind: input, shape index: {}]
  %s4 = inlined_call_operand.vmem [shape: f32[32,32], index: 4, kind: input, shape index: {}]
  %s5 = inlined_call_operand.vmem [shape: f32[1,32], index: 5, kind: input, shape index: {}]
  %s6 = inlined_call_operand.vmem [shape: f32[1,32], index: 6, kind: input, shape index: {}]
  %s7 = inlined_call_operand.vmem [shape: f32[1,32], index: 7, kind: input, shape index: {}]
  %s8 = inlined_call_operand.vmem [shape: f32[32,128], index: 8, kind: input, shape index: {}]
  %s9 = inlined_call_operand.vmem [shape: f32[1,128], index: 9, kind: input, shape index: {}]
  %s10 = inlined_call_operand.vmem [shape: f32[128,32], index: 10, kind: input, shape index: {}]
  %s11 = inlined_call_operand.vmem [shape: f32[1,32], index: 11, kind: input, shape index: {}]
  %s12 = inlined_call_operand.vmem [shape: f32[1,32], index: 12, kind: input, shape index: {}]
  %s13 = inlined_call_operand.vmem [shape: f32[1,32], index: 13, kind: input, shape index: {}]
  %s14 = inlined_call_operand.hbm [shape: f32[2,8,32], index: 14, kind: output, shape index: {0}]
  %s15 = inlined_call_operand.hbm [shape: f32[2,4,8,8], index: 15, kind: output, shape index: {1}]
  %16 = xla_tuple %s14, %s15
  %s17 = sld [smem:[#allocation0]]
  $region105: #{tpu_custom_call.1} parent=0
    _
  %s19 = ssub.s32 1, %s17
  %s20 = scalar_select 0, %s19, %s17
  $region1: #{tpu_custom_call.1} parent=0
    #allocation4 [shape = 'u8[8192]{0}', space=vmem, size = 0x2000, scoped, tag = 'input window, operand 0']
    #allocation5 [shape = 's32[2]{0}', space=sflag, size = 0x8, scoped, tag = 'scoped memory for tpu_custom_call.1']
    #allocation6 [shape = 's32[2]{0}', space=sflag, size = 0x8, scoped, tag = 'scoped memory for tpu_custom_call.1']
    #allocation7 [shape = 'u8[8192]{0}', space=vmem, size = 0x2000, scoped, tag = 'output window, operand 0']
    #allocation8 [shape = 'u8[32768]{0}', space=vmem, size = 0x8000, scoped, tag = 'output window, operand 1']
    #allocation9 [shape = 's32[2]{0}', space=sflag, size = 0x8, scoped, tag = 'scoped memory for tpu_custom_call.1']
    %21 = vsyncpa [#allocation5], 0
    %s22 = scalar_lea.sflag [#allocation5], 1
    %23 = vsyncpa %s22, 0
    %24 = vsyncpa [#allocation6], 0
    %s25 = scalar_lea.sflag [#allocation6], 1
    %26 = vsyncpa %s25, 0
    %27 = vsyncpa [#allocation9], 0
    %s28 = scalar_lea.sflag [#allocation9], 1
    %29 = vsyncpa %s28, 0
    loop: start=0, step=1, limit=4
    $region2: #{tpu_custom_call.1} parent=1 // loop_pre_header
      _
    $region3: #{tpu_custom_call.1} parent=1 // loop_header
      %s31 = sphi 0, %s35
      %p32 = scmp.ge.s32.totalorder %s31, 4
      %s38 = sphi 0, %s50
      %s39 = sphi 0, %s46
      %s40 = sphi 0, %s38
      %s41 = sphi 0, %s39
      %s42 = sphi 0, %s40
      %s43 = sphi 0, %s41
      %s53 = sphi 0, %s55
      %s56 = sphi 0, %s53
      %s57 = sphi 0, %s56
      %s73 = sphi 0, %s57
      %s77 = sphi 0, %s77
      %s79 = sphi 0, %s77
      %s80 = sphi 0, %s79
      %s94 = sphi 0, %s80
      %s98 = sphi 0, %s98
      %s100 = sphi 0, %s98
      %s101 = sphi 0, %s100
      %s115 = sphi 0, %s101
      %s119 = sphi 0, %s119
      %s121 = sphi 0, %s119
      %s122 = sphi 0, %s121
      %s136 = sphi 0, %s122
      %s140 = sphi 0, %s140
      %s142 = sphi 0, %s140
      %s143 = sphi 0, %s142
      %s157 = sphi 0, %s143
      %s161 = sphi 0, %s161
      %s163 = sphi 0, %s161
      %s164 = sphi 0, %s163
      %s178 = sphi 0, %s164
      %s182 = sphi 0, %s182
      %s184 = sphi 0, %s182
      %s185 = sphi 0, %s184
      %s199 = sphi 0, %s185
      %s203 = sphi 0, %s203
      %s205 = sphi 0, %s203
      %s206 = sphi 0, %s205
      %s220 = sphi 0, %s206
      %s224 = sphi 0, %s224
      %s226 = sphi 0, %s224
      %s227 = sphi 0, %s226
      %s241 = sphi 0, %s227
      %s245 = sphi 0, %s245
      %s247 = sphi 0, %s245
      %s248 = sphi 0, %s247
      %s262 = sphi 0, %s248
      %s266 = sphi 0, %s266
      %s268 = sphi 0, %s266
      %s269 = sphi 0, %s268
      %s283 = sphi 0, %s269
      %s287 = sphi 0, %s287
      %s289 = sphi 0, %s287
      %s290 = sphi 0, %s289
      %s304 = sphi 0, %s290
      %s308 = sphi 0, %s308
      %s310 = sphi 0, %s308
      %s311 = sphi 0, %s310
      %s325 = sphi 0, %s311
      %s329 = sphi 0, %s329
      %s331 = sphi 0, %s329
      %s332 = sphi 0, %s331
      %s346 = sphi 0, %s332
      %s354 = sphi 0, %s356
      %s357 = sphi 0, %s354
      %s358 = sphi 0, %s357
      %s374 = sphi 0, %s358
      %s382 = sphi 0, %s384
      %s385 = sphi 0, %s382
      %s386 = sphi 0, %s385
      %s402 = sphi 0, %s386
    $region4: #{tpu_custom_call.1} parent=1 // loop_header_branch
      %34 = sbr.rel (%p32) target = $region8
    $region5: #{tpu_custom_call.1} parent=1 // loop_body
      %s36 = ssub.s32 %s31, 1
      %s37 = ssub.s32 %s31, 2
      %s44 = sadd.s32 1, %s39
      %p45 = scmp.ge.s32.totalorder %s44, 1
      %s46 = scalar_select %p45, 0, %s44
      %s47 = sadd.s32 1, %s38
      %s48 = scalar_select %p45, %s47, %s38
      %p49 = scmp.ge.s32.totalorder %s48, 2
      %s50 = scalar_select %p49, 0, %s48
      %s51 = ssub.s32 %s38, %s50
      %p52 = scmp.eq.s32.totalorder %s51, 0
      %s54 = sadd.s32 %s53, 1
      %s55 = scalar_select %p52, %s53, %s54
      %p58 = pneg %p52
      %p59 = scmp.eq.s32.totalorder %s31, 1
      %p60 = por %p58, %p59
      %p61 = scmp.ne.s32.totalorder %s53, %s56
      %p62 = scmp.eq.s32.totalorder %s31, 0
      %p63 = por %p61, %p62
      %p64 = scmp.ne.s32.totalorder %s53, %s56
      %p65 = scmp.eq.s32.totalorder %s36, 1
      %p66 = por %p64, %p65
      %p67 = scmp.ne.s32.totalorder %s56, %s57
      %p68 = scmp.eq.s32.totalorder %s36, 0
      %p69 = por %p67, %p68
      %p70 = scmp.ne.s32.totalorder %s56, %s57
      %p71 = scmp.eq.s32.totalorder %s37, 1
      %p72 = por %p70, %p71
      %p74 = scmp.ne.s32.totalorder %s57, %s73
      %p75 = scmp.eq.s32.totalorder %s37, 0
      %p76 = por %p74, %p75
      %s78 = sadd.s32 %s77, 1
      %p81 = scmp.eq.s32.totalorder %s31, 1
      %p82 = scmp.ne.s32.totalorder %s77, %s79
      %p83 = scmp.eq.s32.totalorder %s31, 0
      %p84 = por %p82, %p83
      %p85 = scmp.ne.s32.totalorder %s77, %s79
      %p86 = scmp.eq.s32.totalorder %s36, 1
      %p87 = por %p85, %p86
      %p88 = scmp.ne.s32.totalorder %s79, %s80
      %p89 = scmp.eq.s32.totalorder %s36, 0
      %p90 = por %p88, %p89
      %p91 = scmp.ne.s32.totalorder %s79, %s80
      %p92 = scmp.eq.s32.totalorder %s37, 1
      %p93 = por %p91, %p92
      %p95 = scmp.ne.s32.totalorder %s80, %s94
      %p96 = scmp.eq.s32.totalorder %s37, 0
      %p97 = por %p95, %p96
      %s99 = sadd.s32 %s98, 1
      %p102 = scmp.eq.s32.totalorder %s31, 1
      %p103 = scmp.ne.s32.totalorder %s98, %s100
      %p104 = scmp.eq.s32.totalorder %s31, 0
      %p105 = por %p103, %p104
      %p106 = scmp.ne.s32.totalorder %s98, %s100
      %p107 = scmp.eq.s32.totalorder %s36, 1
      %p108 = por %p106, %p107
      %p109 = scmp.ne.s32.totalorder %s100, %s101
      %p110 = scmp.eq.s32.totalorder %s36, 0
      %p111 = por %p109, %p110
      %p112 = scmp.ne.s32.totalorder %s100, %s101
      %p113 = scmp.eq.s32.totalorder %s37, 1
      %p114 = por %p112, %p113
      %p116 = scmp.ne.s32.totalorder %s101, %s115
      %p117 = scmp.eq.s32.totalorder %s37, 0
      %p118 = por %p116, %p117
      %s120 = sadd.s32 %s119, 1
      %p123 = scmp.eq.s32.totalorder %s31, 1
      %p124 = scmp.ne.s32.totalorder %s119, %s121
      %p125 = scmp.eq.s32.totalorder %s31, 0
      %p126 = por %p124, %p125
      %p127 = scmp.ne.s32.totalorder %s119, %s121
      %p128 = scmp.eq.s32.totalorder %s36, 1
      %p129 = por %p127, %p128
      %p130 = scmp.ne.s32.totalorder %s121, %s122
      %p131 = scmp.eq.s32.totalorder %s36, 0
      %p132 = por %p130, %p131
      %p133 = scmp.ne.s32.totalorder %s121, %s122
      %p134 = scmp.eq.s32.totalorder %s37, 1
      %p135 = por %p133, %p134
      %p137 = scmp.ne.s32.totalorder %s122, %s136
      %p138 = scmp.eq.s32.totalorder %s37, 0
      %p139 = por %p137, %p138
      %s141 = sadd.s32 %s140, 1
      %p144 = scmp.eq.s32.totalorder %s31, 1
      %p145 = scmp.ne.s32.totalorder %s140, %s142
      %p146 = scmp.eq.s32.totalorder %s31, 0
      %p147 = por %p145, %p146
      %p148 = scmp.ne.s32.totalorder %s140, %s142
      %p149 = scmp.eq.s32.totalorder %s36, 1
      %p150 = por %p148, %p149
      %p151 = scmp.ne.s32.totalorder %s142, %s143
      %p152 = scmp.eq.s32.totalorder %s36, 0
      %p153 = por %p151, %p152
      %p154 = scmp.ne.s32.totalorder %s142, %s143
      %p155 = scmp.eq.s32.totalorder %s37, 1
      %p156 = por %p154, %p155
      %p158 = scmp.ne.s32.totalorder %s143, %s157
      %p159 = scmp.eq.s32.totalorder %s37, 0
      %p160 = por %p158, %p159
      %s162 = sadd.s32 %s161, 1
      %p165 = scmp.eq.s32.totalorder %s31, 1
      %p166 = scmp.ne.s32.totalorder %s161, %s163
      %p167 = scmp.eq.s32.totalorder %s31, 0
      %p168 = por %p166, %p167
      %p169 = scmp.ne.s32.totalorder %s161, %s163
      %p170 = scmp.eq.s32.totalorder %s36, 1
      %p171 = por %p169, %p170
      %p172 = scmp.ne.s32.totalorder %s163, %s164
      %p173 = scmp.eq.s32.totalorder %s36, 0
      %p174 = por %p172, %p173
      %p175 = scmp.ne.s32.totalorder %s163, %s164
      %p176 = scmp.eq.s32.totalorder %s37, 1
      %p177 = por %p175, %p176
      %p179 = scmp.ne.s32.totalorder %s164, %s178
      %p180 = scmp.eq.s32.totalorder %s37, 0
      %p181 = por %p179, %p180
      %s183 = sadd.s32 %s182, 1
      %p186 = scmp.eq.s32.totalorder %s31, 1
      %p187 = scmp.ne.s32.totalorder %s182, %s184
      %p188 = scmp.eq.s32.totalorder %s31, 0
      %p189 = por %p187, %p188
      %p190 = scmp.ne.s32.totalorder %s182, %s184
      %p191 = scmp.eq.s32.totalorder %s36, 1
      %p192 = por %p190, %p191
      %p193 = scmp.ne.s32.totalorder %s184, %s185
      %p194 = scmp.eq.s32.totalorder %s36, 0
      %p195 = por %p193, %p194
      %p196 = scmp.ne.s32.totalorder %s184, %s185
      %p197 = scmp.eq.s32.totalorder %s37, 1
      %p198 = por %p196, %p197
      %p200 = scmp.ne.s32.totalorder %s185, %s199
      %p201 = scmp.eq.s32.totalorder %s37, 0
      %p202 = por %p200, %p201
      %s204 = sadd.s32 %s203, 1
      %p207 = scmp.eq.s32.totalorder %s31, 1
      %p208 = scmp.ne.s32.totalorder %s203, %s205
      %p209 = scmp.eq.s32.totalorder %s31, 0
      %p210 = por %p208, %p209
      %p211 = scmp.ne.s32.totalorder %s203, %s205
      %p212 = scmp.eq.s32.totalorder %s36, 1
      %p213 = por %p211, %p212
      %p214 = scmp.ne.s32.totalorder %s205, %s206
      %p215 = scmp.eq.s32.totalorder %s36, 0
      %p216 = por %p214, %p215
      %p217 = scmp.ne.s32.totalorder %s205, %s206
      %p218 = scmp.eq.s32.totalorder %s37, 1
      %p219 = por %p217, %p218
      %p221 = scmp.ne.s32.totalorder %s206, %s220
      %p222 = scmp.eq.s32.totalorder %s37, 0
      %p223 = por %p221, %p222
      %s225 = sadd.s32 %s224, 1
      %p228 = scmp.eq.s32.totalorder %s31, 1
      %p229 = scmp.ne.s32.totalorder %s224, %s226
      %p230 = scmp.eq.s32.totalorder %s31, 0
      %p231 = por %p229, %p230
      %p232 = scmp.ne.s32.totalorder %s224, %s226
      %p233 = scmp.eq.s32.totalorder %s36, 1
      %p234 = por %p232, %p233
      %p235 = scmp.ne.s32.totalorder %s226, %s227
      %p236 = scmp.eq.s32.totalorder %s36, 0
      %p237 = por %p235, %p236
      %p238 = scmp.ne.s32.totalorder %s226, %s227
      %p239 = scmp.eq.s32.totalorder %s37, 1
      %p240 = por %p238, %p239
      %p242 = scmp.ne.s32.totalorder %s227, %s241
      %p243 = scmp.eq.s32.totalorder %s37, 0
      %p244 = por %p242, %p243
      %s246 = sadd.s32 %s245, 1
      %p249 = scmp.eq.s32.totalorder %s31, 1
      %p250 = scmp.ne.s32.totalorder %s245, %s247
      %p251 = scmp.eq.s32.totalorder %s31, 0
      %p252 = por %p250, %p251
      %p253 = scmp.ne.s32.totalorder %s245, %s247
      %p254 = scmp.eq.s32.totalorder %s36, 1
      %p255 = por %p253, %p254
      %p256 = scmp.ne.s32.totalorder %s247, %s248
      %p257 = scmp.eq.s32.totalorder %s36, 0
      %p258 = por %p256, %p257
      %p259 = scmp.ne.s32.totalorder %s247, %s248
      %p260 = scmp.eq.s32.totalorder %s37, 1
      %p261 = por %p259, %p260
      %p263 = scmp.ne.s32.totalorder %s248, %s262
      %p264 = scmp.eq.s32.totalorder %s37, 0
      %p265 = por %p263, %p264
      %s267 = sadd.s32 %s266, 1
      %p270 = scmp.eq.s32.totalorder %s31, 1
      %p271 = scmp.ne.s32.totalorder %s266, %s268
      %p272 = scmp.eq.s32.totalorder %s31, 0
      %p273 = por %p271, %p272
      %p274 = scmp.ne.s32.totalorder %s266, %s268
      %p275 = scmp.eq.s32.totalorder %s36, 1
      %p276 = por %p274, %p275
      %p277 = scmp.ne.s32.totalorder %s268, %s269
      %p278 = scmp.eq.s32.totalorder %s36, 0
      %p279 = por %p277, %p278
      %p280 = scmp.ne.s32.totalorder %s268, %s269
      %p281 = scmp.eq.s32.totalorder %s37, 1
      %p282 = por %p280, %p281
      %p284 = scmp.ne.s32.totalorder %s269, %s283
      %p285 = scmp.eq.s32.totalorder %s37, 0
      %p286 = por %p284, %p285
      %s288 = sadd.s32 %s287, 1
      %p291 = scmp.eq.s32.totalorder %s31, 1
      %p292 = scmp.ne.s32.totalorder %s287, %s289
      %p293 = scmp.eq.s32.totalorder %s31, 0
      %p294 = por %p292, %p293
      %p295 = scmp.ne.s32.totalorder %s287, %s289
      %p296 = scmp.eq.s32.totalorder %s36, 1
      %p297 = por %p295, %p296
      %p298 = scmp.ne.s32.totalorder %s289, %s290
      %p299 = scmp.eq.s32.totalorder %s36, 0
      %p300 = por %p298, %p299
      %p301 = scmp.ne.s32.totalorder %s289, %s290
      %p302 = scmp.eq.s32.totalorder %s37, 1
      %p303 = por %p301, %p302
      %p305 = scmp.ne.s32.totalorder %s290, %s304
      %p306 = scmp.eq.s32.totalorder %s37, 0
      %p307 = por %p305, %p306
      %s309 = sadd.s32 %s308, 1
      %p312 = scmp.eq.s32.totalorder %s31, 1
      %p313 = scmp.ne.s32.totalorder %s308, %s310
      %p314 = scmp.eq.s32.totalorder %s31, 0
      %p315 = por %p313, %p314
      %p316 = scmp.ne.s32.totalorder %s308, %s310
      %p317 = scmp.eq.s32.totalorder %s36, 1
      %p318 = por %p316, %p317
      %p319 = scmp.ne.s32.totalorder %s310, %s311
      %p320 = scmp.eq.s32.totalorder %s36, 0
      %p321 = por %p319, %p320
      %p322 = scmp.ne.s32.totalorder %s310, %s311
      %p323 = scmp.eq.s32.totalorder %s37, 1
      %p324 = por %p322, %p323
      %p326 = scmp.ne.s32.totalorder %s311, %s325
      %p327 = scmp.eq.s32.totalorder %s37, 0
      %p328 = por %p326, %p327
      %s330 = sadd.s32 %s329, 1
      %p333 = scmp.eq.s32.totalorder %s31, 1
      %p334 = scmp.ne.s32.totalorder %s329, %s331
      %p335 = scmp.eq.s32.totalorder %s31, 0
      %p336 = por %p334, %p335
      %p337 = scmp.ne.s32.totalorder %s329, %s331
      %p338 = scmp.eq.s32.totalorder %s36, 1
      %p339 = por %p337, %p338
      %p340 = scmp.ne.s32.totalorder %s331, %s332
      %p341 = scmp.eq.s32.totalorder %s36, 0
      %p342 = por %p340, %p341
      %p343 = scmp.ne.s32.totalorder %s331, %s332
      %p344 = scmp.eq.s32.totalorder %s37, 1
      %p345 = por %p343, %p344
      %p347 = scmp.ne.s32.totalorder %s332, %s346
      %p348 = scmp.eq.s32.totalorder %s37, 0
      %p349 = por %p347, %p348
      %s350 = ssub.s32 %s38, %s50
      %s351 = ssub.s32 %s39, %s46
      %s352 = sor.u32 %s350, %s351
      %p353 = scmp.eq.s32.totalorder %s352, 0
      %s355 = sadd.s32 %s354, 1
      %s356 = scalar_select %p353, %s354, %s355
      %p359 = pneg %p353
      %p360 = scmp.eq.s32.totalorder %s31, 1
      %p361 = por %p359, %p360
      %p362 = scmp.ne.s32.totalorder %s354, %s357
      %p363 = scmp.eq.s32.totalorder %s31, 0
      %p364 = por %p362, %p363
      %p365 = scmp.ne.s32.totalorder %s354, %s357
      %p366 = scmp.eq.s32.totalorder %s36, 1
      %p367 = por %p365, %p366
      %p368 = scmp.ne.s32.totalorder %s357, %s358
      %p369 = scmp.eq.s32.totalorder %s36, 0
      %p370 = por %p368, %p369
      %p371 = scmp.ne.s32.totalorder %s357, %s358
      %p372 = scmp.eq.s32.totalorder %s37, 1
      %p373 = por %p371, %p372
      %p375 = scmp.ne.s32.totalorder %s358, %s374
      %p376 = scmp.eq.s32.totalorder %s37, 0
      %p377 = por %p375, %p376
      %s378 = ssub.s32 %s38, %s50
      %s379 = ssub.s32 %s39, %s46
      %s380 = sor.u32 %s378, %s379
      %p381 = scmp.eq.s32.totalorder %s380, 0
      %s383 = sadd.s32 %s382, 1
      %s384 = scalar_select %p381, %s382, %s383
      %p387 = pneg %p381
      %p388 = scmp.eq.s32.totalorder %s31, 1
      %p389 = por %p387, %p388
      %p390 = scmp.ne.s32.totalorder %s382, %s385
      %p391 = scmp.eq.s32.totalorder %s31, 0
      %p392 = por %p390, %p391
      %p393 = scmp.ne.s32.totalorder %s382, %s385
      %p394 = scmp.eq.s32.totalorder %s36, 1
      %p395 = por %p393, %p394
      %p396 = scmp.ne.s32.totalorder %s385, %s386
      %p397 = scmp.eq.s32.totalorder %s36, 0
      %p398 = por %p396, %p397
      %p399 = scmp.ne.s32.totalorder %s385, %s386
      %p400 = scmp.eq.s32.totalorder %s37, 1
      %p401 = por %p399, %p400
      %p403 = scmp.ne.s32.totalorder %s386, %s402
      %p404 = scmp.eq.s32.totalorder %s37, 0
      %p405 = por %p403, %p404
      %p406 = scmp.le.s32.totalorder 1, %s31
      %p407 = scmp.lt.s32.totalorder %s31, 3
      %p408 = pnand %p406, %p407
      %p409 = pneg %p408
      // Predicated region
      $region9: #{tpu_custom_call.1} parent=5 // pred_check
        _
      $region10: #{tpu_custom_call.1} parent=5 // pred_check_branch
        %411 = sbr.rel (%p408) target = $region12
      $region11: #{tpu_custom_call.1} parent=5 // pred_region
        %s412 = ssub.s32 %s31, 1
        // Predicated region
        $region13: #{tpu_custom_call.1} parent=11 // pred_check
          %p413 = pneg %p90
        $region14: #{tpu_custom_call.1} parent=11 // pred_check_branch
          %415 = sbr.rel (%p413) target = $region16
        $region15: #{tpu_custom_call.1} parent=11 // pred_region
          _
        $region16: #{tpu_custom_call.1} parent=11 // pred_fallthru
          _
        // Predicated region
        $region17: #{tpu_custom_call.1} parent=11 // pred_check
          %p416 = pneg %p111
        $region18: #{tpu_custom_call.1} parent=11 // pred_check_branch
          %418 = sbr.rel (%p416) target = $region20
        $region19: #{tpu_custom_call.1} parent=11 // pred_region
          _
        $region20: #{tpu_custom_call.1} parent=11 // pred_fallthru
          _
        // Predicated region
        $region21: #{tpu_custom_call.1} parent=11 // pred_check
          %p419 = pneg %p132
        $region22: #{tpu_custom_call.1} parent=11 // pred_check_branch
          %421 = sbr.rel (%p419) target = $region24
        $region23: #{tpu_custom_call.1} parent=11 // pred_region
          _
        $region24: #{tpu_custom_call.1} parent=11 // pred_fallthru
          _
        // Predicated region
        $region25: #{tpu_custom_call.1} parent=11 // pred_check
          %p422 = pneg %p153
        $region26: #{tpu_custom_call.1} parent=11 // pred_check_branch
          %424 = sbr.rel (%p422) target = $region28
        $region27: #{tpu_custom_call.1} parent=11 // pred_region
          _
        $region28: #{tpu_custom_call.1} parent=11 // pred_fallthru
          _
        // Predicated region
        $region29: #{tpu_custom_call.1} parent=11 // pred_check
          %p425 = pneg %p174
        $region30: #{tpu_custom_call.1} parent=11 // pred_check_branch
          %427 = sbr.rel (%p425) target = $region32
        $region31: #{tpu_custom_call.1} parent=11 // pred_region
          _
        $region32: #{tpu_custom_call.1} parent=11 // pred_fallthru
          _
        // Predicated region
        $region33: #{tpu_custom_call.1} parent=11 // pred_check
          %p428 = pneg %p195
        $region34: #{tpu_custom_call.1} parent=11 // pred_check_branch
          %430 = sbr.rel (%p428) target = $region36
        $region35: #{tpu_custom_call.1} parent=11 // pred_region
          _
        $region36: #{tpu_custom_call.1} parent=11 // pred_fallthru
          _
        // Predicated region
        $region37: #{tpu_custom_call.1} parent=11 // pred_check
          %p431 = pneg %p216
        $region38: #{tpu_custom_call.1} parent=11 // pred_check_branch
          %433 = sbr.rel (%p431) target = $region40
        $region39: #{tpu_custom_call.1} parent=11 // pred_region
          _
        $region40: #{tpu_custom_call.1} parent=11 // pred_fallthru
          _
        // Predicated region
        $region41: #{tpu_custom_call.1} parent=11 // pred_check
          %p434 = pneg %p237
        $region42: #{tpu_custom_call.1} parent=11 // pred_check_branch
          %436 = sbr.rel (%p434) target = $region44
        $region43: #{tpu_custom_call.1} parent=11 // pred_region
          _
        $region44: #{tpu_custom_call.1} parent=11 // pred_fallthru
          _
        // Predicated region
        $region45: #{tpu_custom_call.1} parent=11 // pred_check
          %p437 = pneg %p258
        $region46: #{tpu_custom_call.1} parent=11 // pred_check_branch
          %439 = sbr.rel (%p437) target = $region48
        $region47: #{tpu_custom_call.1} parent=11 // pred_region
          _
        $region48: #{tpu_custom_call.1} parent=11 // pred_fallthru
          _
        // Predicated region
        $region49: #{tpu_custom_call.1} parent=11 // pred_check
          %p440 = pneg %p279
        $region50: #{tpu_custom_call.1} parent=11 // pred_check_branch
          %442 = sbr.rel (%p440) target = $region52
        $region51: #{tpu_custom_call.1} parent=11 // pred_region
          _
        $region52: #{tpu_custom_call.1} parent=11 // pred_fallthru
          _
        // Predicated region
        $region53: #{tpu_custom_call.1} parent=11 // pred_check
          %p443 = pneg %p300
        $region54: #{tpu_custom_call.1} parent=11 // pred_check_branch
          %445 = sbr.rel (%p443) target = $region56
        $region55: #{tpu_custom_call.1} parent=11 // pred_region
          _
        $region56: #{tpu_custom_call.1} parent=11 // pred_fallthru
          _
        // Predicated region
        $region57: #{tpu_custom_call.1} parent=11 // pred_check
          %p446 = pneg %p321
        $region58: #{tpu_custom_call.1} parent=11 // pred_check_branch
          %448 = sbr.rel (%p446) target = $region60
        $region59: #{tpu_custom_call.1} parent=11 // pred_region
          _
        $region60: #{tpu_custom_call.1} parent=11 // pred_fallthru
          _
        // Predicated region
        $region61: #{tpu_custom_call.1} parent=11 // pred_check
          %p449 = pneg %p342
        $region62: #{tpu_custom_call.1} parent=11 // pred_check_branch
          %451 = sbr.rel (%p449) target = $region64
        $region63: #{tpu_custom_call.1} parent=11 // pred_region
          _
        $region64: #{tpu_custom_call.1} parent=11 // pred_fallthru
          _
      $region12: #{tpu_custom_call.1} parent=5 // pred_fallthru
        _
      %p452 = scmp.lt.s32.totalorder %s31, 2
      // Predicated region
      $region65: #{tpu_custom_call.1} parent=5 // pred_check
        %p453 = pneg %p452
      $region66: #{tpu_custom_call.1} parent=5 // pred_check_branch
        %455 = sbr.rel (%p453) target = $region68
      $region67: #{tpu_custom_call.1} parent=5 // pred_region
        // Predicated region
        $region69: #{tpu_custom_call.1} parent=67 // pred_check
          %p456 = pneg %p63
        $region70: #{tpu_custom_call.1} parent=67 // pred_check_branch
          %458 = sbr.rel (%p456) target = $region72
        $region71: #{tpu_custom_call.1} parent=67 // pred_region
          %s459 = sand.u32 %s53, 1
          %s460 = scalar_lea.sflag [#allocation5], %s459
          %s461 = sand.u32 %s53, 1
          %s462 = smul.addr %s461, 8
          %s463 = scalar_lea.vmem [#allocation4], %s462
          %s465 = ssub.s32 128, 128
          %466 = vsyncadd %s460, %s465
          %s467 = smul.addr %s38, 128
          %s468 = scalar_lea.hbm %s0, %s467
          %s470 = sshll.u32 %s463, 4
          %s471 = int_to_ptr.vmem [resolvable:$true] %s470
          %473 = dma.hbm_to_vmem [thread:$0]  %s468, 128, %s471, %s460
        $region72: #{tpu_custom_call.1} parent=67 // pred_fallthru
          _
      $region68: #{tpu_custom_call.1} parent=5 // pred_fallthru
        _
      %p474 = scmp.le.s32.totalorder 1, %s31
      %p475 = scmp.lt.s32.totalorder %s31, 3
      %p476 = pnand %p474, %p475
      %p477 = pneg %p476
      // Predicated region
      $region73: #{tpu_custom_call.1} parent=5 // pred_check
        _
      $region74: #{tpu_custom_call.1} parent=5 // pred_check_branch
        %479 = sbr.rel (%p476) target = $region76
      $region75: #{tpu_custom_call.1} parent=5 // pred_region
        %s480 = ssub.s32 %s31, 1
        %s481 = sand.u32 %s56, 1
        %s482 = scalar_lea.sflag [#allocation5], %s481
        %s483 = sand.u32 %s56, 1
        %s484 = smul.addr %s483, 8
        %s485 = scalar_lea.vmem [#allocation4], %s484
        // Predicated region
        $region77: #{tpu_custom_call.1} parent=75 // pred_check
          %p486 = pneg %p69
        $region78: #{tpu_custom_call.1} parent=75 // pred_check_branch
          %488 = sbr.rel (%p486) target = $region80
        $region79: #{tpu_custom_call.1} parent=75 // pred_region
          %489 = dma.done %s482, 128
        $region80: #{tpu_custom_call.1} parent=75 // pred_fallthru
          _
        %s490 = sand.u32 %s56, 1
        %s491 = scalar_lea.sflag [#allocation5], %s490
        %s492 = sand.u32 %s56, 1
        %s493 = smul.addr %s492, 8
        %s494 = scalar_lea.vmem [#allocation4], %s493
        %p495 = pneg %p69
        %p496 = pneg %p66
        %p497 = pneg %p90
        %p498 = pneg %p87
        %p499 = pneg %p111
        %p500 = pneg %p108
        %p501 = pneg %p132
        %p502 = pneg %p129
        %p503 = pneg %p153
        %p504 = pneg %p150
        %p505 = pneg %p174
        %p506 = pneg %p171
        %p507 = pneg %p195
        %p508 = pneg %p192
        %p509 = pneg %p216
        %p510 = pneg %p213
        %p511 = pneg %p237
        %p512 = pneg %p234
        %p513 = pneg %p258
        %p514 = pneg %p255
        %p515 = pneg %p279
        %p516 = pneg %p276
        %p517 = pneg %p300
        %p518 = pneg %p297
        %p519 = pneg %p321
        %p520 = pneg %p318
        %p521 = pneg %p342
        %p522 = pneg %p339
        %p523 = pneg %p370
        %p524 = pneg %p367
        %s525 = sand.u32 %s357, 1
        %s526 = scalar_lea.sflag [#allocation6], %s525
        %s527 = sand.u32 %s357, 1
        %s528 = smul.addr %s527, 8
        %s529 = scalar_lea.vmem [#allocation7], %s528
        %p530 = pneg %p398
        %p531 = pneg %p395
        %s532 = sand.u32 %s385, 1
        %s533 = scalar_lea.sflag [#allocation9], %s532
        %s534 = sand.u32 %s385, 1
        %s535 = smul.addr %s534, 32
        %s536 = scalar_lea.vmem [#allocation8], %s535
        %p537 = scmp.eq.s32.totalorder %s41, 0
        // Predicated region
        $region81: #{tpu_custom_call.1} parent=75 // pred_check
          %p538 = pneg %p537
        $region82: #{tpu_custom_call.1} parent=75 // pred_check_branch
          %540 = sbr.rel (%p538) target = $region84
        $region83: #{tpu_custom_call.1} parent=75 // pred_region
          %v541 = vld [vmem:[%s485] sm:$0xff]
          %v542 = vld [vmem:[%s2] sm:$0xff]
          %v543 = vld [vmem:[%s2 + $0x8] sm:$0xff]
          %v544 = vld [vmem:[%s2 + $0x10] sm:$0xff]
          %v545 = vld [vmem:[%s2 + $0x18] sm:$0xff]
          %vm546 = vcmask 261120
          %v548 = vsel %vm546, %v541, 0
          %550 = vmatprep.subr.mxu0 0.0
          %551 = vmatpush1.msra.mxu0 %v542
          %552 = vmatprep.subr.mxu0 0.0
          %553 = vmatpush1.msra.mxu0 %v543
          %554 = vmatprep.subr.mxu0 0.0
          %555 = vmatpush1.msra.mxu0 %v544
          %556 = vmatprep.subr.mxu0 0.0
          %557 = vmatpush1.msra.mxu0 %v545
          %558 = vmatprep.subr.mxu0 0.0
          %559 = vmatpush1.msra.mxu0 0.0
          %560 = vmatprep.subr.mxu0 0.0
          %561 = vmatpush1.msra.mxu0 0.0
          %562 = vmatprep.subr.mxu0 0.0
          %563 = vmatpush1.msra.mxu0 0.0
          %564 = vmatprep.subr.mxu0 0.0
          %565 = vmatpush1.msra.mxu0 0.0
          %566 = vmatprep.subr.mxu0 0.0
          %567 = vmatpush1.msra.mxu0 0.0
          %568 = vmatprep.subr.mxu0 0.0
          %569 = vmatpush1.msra.mxu0 0.0
          %570 = vmatprep.subr.mxu0 0.0
          %571 = vmatpush1.msra.mxu0 0.0
          %572 = vmatprep.subr.mxu0 0.0
          %573 = vmatpush1.msra.mxu0 0.0
          %574 = vmatprep.subr.mxu0 0.0
          %575 = vmatpush1.msra.mxu0 0.0
          %576 = vmatprep.subr.mxu0 0.0
          %577 = vmatpush1.msra.mxu0 0.0
          %578 = vmatprep.subr.mxu0 0.0
          %579 = vmatpush1.msra.mxu0 0.0
          %580 = vmatprep.subr.mxu0 0.0
          %581 = vmatpush1.msra.mxu0 0.0
          %582 = vmatprep.subr.mxu0 0.0
          %583 = vmatpush1.msra.mxu0 0.0
          %584 = vmatprep.subr.mxu0 0.0
          %585 = vmatpush1.msra.mxu0 0.0
          %586 = vmatprep.subr.mxu0 0.0
          %587 = vmatpush1.msra.mxu0 0.0
          %588 = vmatprep.subr.mxu0 0.0
          %589 = vmatpush1.msra.mxu0 0.0
          %590 = vmatprep.subr.mxu0 0.0
          %591 = vmatpush1.msra.mxu0 0.0
          %592 = vmatprep.subr.mxu0 0.0
          %593 = vmatpush1.msra.mxu0 0.0
          %594 = vmatprep.subr.mxu0 0.0
          %595 = vmatpush1.msra.mxu0 0.0
          %596 = vmatprep.subr.mxu0 0.0
          %597 = vmatpush1.msra.mxu0 0.0
          %598 = vmatprep.subr.mxu0 0.0
          %599 = vmatpush1.msra.mxu0 0.0
          %600 = vmatprep.subr.mxu0 0.0
          %601 = vmatpush1.msra.mxu0 0.0
          %602 = vmatprep.subr.mxu0 0.0
          %603 = vmatpush1.msra.mxu0 0.0
          %604 = vmatprep.subr.mxu0 0.0
          %605 = vmatpush1.msra.mxu0 0.0
          %606 = vmatprep.subr.mxu0 0.0
          %607 = vmatpush1.msra.mxu0 0.0
          %608 = vmatprep.subr.mxu0 0.0
          %609 = vmatpush1.msra.mxu0 0.0
          %610 = vmatprep.subr.mxu0 0.0
          %611 = vmatpush1.msra.mxu0 0.0
          %612 = vmatprep.subr.mxu0 0.0
          %613 = vmatpush1.msra.mxu0 0.0
          %614 = vmatprep.mubr.f32.mxu0 0.0
          %615 = vmatmul.mubr.f32.gmra.mrb[0].mxu0 %v548
          %v616 = vpop.f32.mrb[0].mxu0
          %v617 = vadd.f32 0.0, %v616
          %v618 = vpop.f32.mrb[0].mxu0
          %619 = vdwg.mxu0
          %v620 = vld [vmem:[%s3] sm:$0xff]
          %v621 = vld [vmem:[%s3 + $0x8] sm:$0xff]
          %v622 = vld [vmem:[%s3 + $0x10] sm:$0xff]
          %v623 = vld [vmem:[%s3 + $0x18] sm:$0xff]
          %624 = vmatprep.subr.mxu0 0.0
          %625 = vmatpush1.msra.mxu0 %v620
          %626 = vmatprep.subr.mxu0 0.0
          %627 = vmatpush1.msra.mxu0 %v621
          %628 = vmatprep.subr.mxu0 0.0
          %629 = vmatpush1.msra.mxu0 %v622
          %630 = vmatprep.subr.mxu0 0.0
          %631 = vmatpush1.msra.mxu0 %v623
          %632 = vmatprep.subr.mxu0 0.0
          %633 = vmatpush1.msra.mxu0 0.0
          %634 = vmatprep.subr.mxu0 0.0
          %635 = vmatpush1.msra.mxu0 0.0
          %636 = vmatprep.subr.mxu0 0.0
          %637 = vmatpush1.msra.mxu0 0.0
          %638 = vmatprep.subr.mxu0 0.0
          %639 = vmatpush1.msra.mxu0 0.0
          %640 = vmatprep.subr.mxu0 0.0
          %641 = vmatpush1.msra.mxu0 0.0
          %642 = vmatprep.subr.mxu0 0.0
          %643 = vmatpush1.msra.mxu0 0.0
          %644 = vmatprep.subr.mxu0 0.0
          %645 = vmatpush1.msra.mxu0 0.0
          %646 = vmatprep.subr.mxu0 0.0
          %647 = vmatpush1.msra.mxu0 0.0
          %648 = vmatprep.subr.mxu0 0.0
          %649 = vmatpush1.msra.mxu0 0.0
          %650 = vmatprep.subr.mxu0 0.0
          %651 = vmatpush1.msra.mxu0 0.0
          %652 = vmatprep.subr.mxu0 0.0
          %653 = vmatpush1.msra.mxu0 0.0
          %654 = vmatprep.subr.mxu0 0.0
          %655 = vmatpush1.msra.mxu0 0.0
          %656 = vmatprep.subr.mxu0 0.0
          %657 = vmatpush1.msra.mxu0 0.0
          %658 = vmatprep.subr.mxu0 0.0
          %659 = vmatpush1.msra.mxu0 0.0
          %660 = vmatprep.subr.mxu0 0.0
          %661 = vmatpush1.msra.mxu0 0.0
          %662 = vmatprep.subr.mxu0 0.0
          %663 = vmatpush1.msra.mxu0 0.0
          %664 = vmatprep.subr.mxu0 0.0
          %665 = vmatpush1.msra.mxu0 0.0
          %666 = vmatprep.subr.mxu0 0.0
          %667 = vmatpush1.msra.mxu0 0.0
          %668 = vmatprep.subr.mxu0 0.0
          %669 = vmatpush1.msra.mxu0 0.0
          %670 = vmatprep.subr.mxu0 0.0
          %671 = vmatpush1.msra.mxu0 0.0
          %672 = vmatprep.subr.mxu0 0.0
          %673 = vmatpush1.msra.mxu0 0.0
          %674 = vmatprep.subr.mxu0 0.0
          %675 = vmatpush1.msra.mxu0 0.0
          %676 = vmatprep.subr.mxu0 0.0
          %677 = vmatpush1.msra.mxu0 0.0
          %678 = vmatprep.subr.mxu0 0.0
          %679 = vmatpush1.msra.mxu0 0.0
          %680 = vmatprep.subr.mxu0 0.0
          %681 = vmatpush1.msra.mxu0 0.0
          %682 = vmatprep.subr.mxu0 0.0
          %683 = vmatpush1.msra.mxu0 0.0
          %684 = vmatprep.subr.mxu0 0.0
          %685 = vmatpush1.msra.mxu0 0.0
          %686 = vmatprep.subr.mxu0 0.0
          %687 = vmatpush1.msra.mxu0 0.0
          %688 = vmatprep.mubr.f32.mxu0 0.0
          %689 = vmatmul.mubr.f32.gmra.mrb[0].mxu0 %v548
          %v690 = vpop.f32.mrb[0].mxu0
          %v691 = vadd.f32 0.0, %v690
          %v692 = vpop.f32.mrb[0].mxu0
          %693 = vdwg.mxu0
          %695 = vrot.lane.b32.xlu0 %v617, 120
          %v696 = vpop.permute.xlu0 %695
          %698 = vrot.lane.b32.xlu0 %v617, 112
          %v699 = vpop.permute.xlu0 %698
          %701 = vrot.lane.b32.xlu0 %v617, 104
          %v702 = vpop.permute.xlu0 %701
          %v704 = vcombine.low %v617, %v699
          %v705 = vcombine.high %v617, %v699
          %v707 = vunpack.c.l.s4 1983009808
          %v708 = vunpack.c.0.s8 %v707
          %v709 = vlaneseq
          %v710 = vshrl.u32 %v709, 7
          %v711 = vsub.s32 %v708, %v710
          %v712 = vrot.slane %v704, %v711
          %v714 = vunpack.c.l.s4 1983009808
          %v715 = vunpack.c.0.s8 %v714
          %v716 = vlaneseq
          %v717 = vshrl.u32 %v716, 7
          %v718 = vsub.s32 %v715, %v717
          %v719 = vrot.slane %v705, %v718
          %v720 = vcombine.low %v696, %v702
          %v721 = vcombine.high %v696, %v702
          %v723 = vunpack.c.l.s4 1983009808
          %v724 = vunpack.c.0.s8 %v723
          %v725 = vlaneseq
          %v726 = vshrl.u32 %v725, 7
          %v727 = vsub.s32 %v724, %v726
          %v728 = vrot.slane %v720, %v727
          %v730 = vunpack.c.l.s4 1983009808
          %v731 = vunpack.c.0.s8 %v730
          %v732 = vlaneseq
          %v733 = vshrl.u32 %v732, 7
          %v734 = vsub.s32 %v731, %v733
          %v735 = vrot.slane %v721, %v734
          %v736 = vcombine.low %v712, %v728
          %v737 = vcombine.high %v712, %v728
          %v739 = vunpack.c.l.s4 1934713408
          %v740 = vunpack.c.0.s8 %v739
          %v741 = vlaneseq
          %v742 = vshrl.u32 %v741, 7
          %v743 = vsub.s32 %v740, %v742
          %v744 = vrot.slane %v736, %v743
          %v746 = vunpack.c.l.s4 1934713408
          %v747 = vunpack.c.0.s8 %v746
          %v748 = vlaneseq
          %v749 = vshrl.u32 %v748, 7
          %v750 = vsub.s32 %v747, %v749
          %v751 = vrot.slane %v737, %v750
          %v752 = vcombine.low %v719, %v735
          %v753 = vcombine.high %v719, %v735
          %v755 = vunpack.c.l.s4 1934713408
          %v756 = vunpack.c.0.s8 %v755
          %v757 = vlaneseq
          %v758 = vshrl.u32 %v757, 7
          %v759 = vsub.s32 %v756, %v758
          %v760 = vrot.slane %v752, %v759
          %v762 = vunpack.c.l.s4 1934713408
          %v763 = vunpack.c.0.s8 %v762
          %v764 = vlaneseq
          %v765 = vshrl.u32 %v764, 7
          %v766 = vsub.s32 %v763, %v765
          %v767 = vrot.slane %v753, %v766
          %v768 = vcombine.high %v744, 0.0
          %v769 = vcombine.high %v751, 0.0
          %v770 = vcombine.high %v760, 0.0
          %v771 = vcombine.high %v767, 0.0
          %v772 = vcombine.low %v744, %v751
          %v774 = vunpack.c.l.s4 1983009808
          %v775 = vunpack.c.0.s8 %v774
          %v776 = vlaneseq
          %v777 = vshrl.u32 %v776, 7
          %v778 = vsub.s32 %v775, %v777
          %v779 = vrot.slane %v772, %v778
          %v780 = vcombine.low %v768, %v769
          %v782 = vunpack.c.l.s4 1983009808
          %v783 = vunpack.c.0.s8 %v782
          %v784 = vlaneseq
          %v785 = vshrl.u32 %v784, 7
          %v786 = vsub.s32 %v783, %v785
          %v787 = vrot.slane %v780, %v786
          %v788 = vcombine.low %v760, %v767
          %v790 = vunpack.c.l.s4 1983009808
          %v791 = vunpack.c.0.s8 %v790
          %v792 = vlaneseq
          %v793 = vshrl.u32 %v792, 7
          %v794 = vsub.s32 %v791, %v793
          %v795 = vrot.slane %v788, %v794
          %v796 = vcombine.low %v770, %v771
          %v798 = vunpack.c.l.s4 1983009808
          %v799 = vunpack.c.0.s8 %v798
          %v800 = vlaneseq
          %v801 = vshrl.u32 %v800, 7
          %v802 = vsub.s32 %v799, %v801
          %v803 = vrot.slane %v796, %v802
          %v804 = vcombine.low %v779, %v787
          %v805 = vcombine.high %v779, %v787
          %v807 = vunpack.c.l.s4 1934713408
          %v808 = vunpack.c.0.s8 %v807
          %v809 = vlaneseq
          %v810 = vshrl.u32 %v809, 7
          %v811 = vsub.s32 %v808, %v810
          %v812 = vrot.slane %v804, %v811
          %v814 = vunpack.c.l.s4 1934713408
          %v815 = vunpack.c.0.s8 %v814
          %v816 = vlaneseq
          %v817 = vshrl.u32 %v816, 7
          %v818 = vsub.s32 %v815, %v817
          %v819 = vrot.slane %v805, %v818
          %v820 = vcombine.low %v795, %v803
          %v821 = vcombine.high %v795, %v803
          %v823 = vunpack.c.l.s4 1934713408
          %v824 = vunpack.c.0.s8 %v823
          %v825 = vlaneseq
          %v826 = vshrl.u32 %v825, 7
          %v827 = vsub.s32 %v824, %v826
          %v828 = vrot.slane %v820, %v827
          %v830 = vunpack.c.l.s4 1934713408
          %v831 = vunpack.c.0.s8 %v830
          %v832 = vlaneseq
          %v833 = vshrl.u32 %v832, 7
          %v834 = vsub.s32 %v831, %v833
          %v835 = vrot.slane %v821, %v834
          %v836 = vcombine.low %v812, %v828
          %v837 = vcombine.high %v812, %v828
          %v838 = vcombine.low %v819, %v835
          %v839 = vcombine.high %v819, %v835
          %vm840 = vcmask 64512
          %841 = vst.msk [vmem:[#allocation2] sm:$0xff] %vm840, %v836
          %842 = vst.msk [vmem:[#allocation2 + $0x8] sm:$0xff] %vm840, %v837
          %843 = vst.msk [vmem:[#allocation2 + $0x10] sm:$0xff] %vm840, %v838
          %844 = vst.msk [vmem:[#allocation2 + $0x18] sm:$0xff] %vm840, %v839
          %846 = vrot.lane.b32.xlu0 %v691, 120
          %v847 = vpop.permute.xlu0 %846
          %849 = vrot.lane.b32.xlu0 %v691, 112
          %v850 = vpop.permute.xlu0 %849
          %852 = vrot.lane.b32.xlu0 %v691, 104
          %v853 = vpop.permute.xlu0 %852
          %v855 = vcombine.low %v691, %v850
          %v856 = vcombine.high %v691, %v850
          %v858 = vunpack.c.l.s4 1983009808
          %v859 = vunpack.c.0.s8 %v858
          %v860 = vlaneseq
          %v861 = vshrl.u32 %v860, 7
          %v862 = vsub.s32 %v859, %v861
          %v863 = vrot.slane %v855, %v862
          %v865 = vunpack.c.l.s4 1983009808
          %v866 = vunpack.c.0.s8 %v865
          %v867 = vlaneseq
          %v868 = vshrl.u32 %v867, 7
          %v869 = vsub.s32 %v866, %v868
          %v870 = vrot.slane %v856, %v869
          %v871 = vcombine.low %v847, %v853
          %v872 = vcombine.high %v847, %v853
          %v874 = vunpack.c.l.s4 1983009808
          %v875 = vunpack.c.0.s8 %v874
          %v876 = vlaneseq
          %v877 = vshrl.u32 %v876, 7
          %v878 = vsub.s32 %v875, %v877
          %v879 = vrot.slane %v871, %v878
          %v881 = vunpack.c.l.s4 1983009808
          %v882 = vunpack.c.0.s8 %v881
          %v883 = vlaneseq
          %v884 = vshrl.u32 %v883, 7
          %v885 = vsub.s32 %v882, %v884
          %v886 = vrot.slane %v872, %v885
          %v887 = vcombine.low %v863, %v879
          %v888 = vcombine.high %v863, %v879
          %v890 = vunpack.c.l.s4 1934713408
          %v891 = vunpack.c.0.s8 %v890
          %v892 = vlaneseq
          %v893 = vshrl.u32 %v892, 7
          %v894 = vsub.s32 %v891, %v893
          %v895 = vrot.slane %v887, %v894
          %v897 = vunpack.c.l.s4 1934713408
          %v898 = vunpack.c.0.s8 %v897
          %v899 = vlaneseq
          %v900 = vshrl.u32 %v899, 7
          %v901 = vsub.s32 %v898, %v900
          %v902 = vrot.slane %v888, %v901
          %v903 = vcombine.low %v870, %v886
          %v904 = vcombine.high %v870, %v886
          %v906 = vunpack.c.l.s4 1934713408
          %v907 = vunpack.c.0.s8 %v906
          %v908 = vlaneseq
          %v909 = vshrl.u32 %v908, 7
          %v910 = vsub.s32 %v907, %v909
          %v911 = vrot.slane %v903, %v910
          %v913 = vunpack.c.l.s4 1934713408
          %v914 = vunpack.c.0.s8 %v913
          %v915 = vlaneseq
          %v916 = vshrl.u32 %v915, 7
          %v917 = vsub.s32 %v914, %v916
          %v918 = vrot.slane %v904, %v917
          %v919 = vcombine.high %v895, 0.0
          %v920 = vcombine.high %v902, 0.0
          %v921 = vcombine.high %v911, 0.0
          %v922 = vcombine.high %v918, 0.0
          %v923 = vcombine.low %v895, %v902
          %v925 = vunpack.c.l.s4 1983009808
          %v926 = vunpack.c.0.s8 %v925
          %v927 = vlaneseq
          %v928 = vshrl.u32 %v927, 7
          %v929 = vsub.s32 %v926, %v928
          %v930 = vrot.slane %v923, %v929
          %v931 = vcombine.low %v919, %v920
          %v933 = vunpack.c.l.s4 1983009808
          %v934 = vunpack.c.0.s8 %v933
          %v935 = vlaneseq
          %v936 = vshrl.u32 %v935, 7
          %v937 = vsub.s32 %v934, %v936
          %v938 = vrot.slane %v931, %v937
          %v939 = vcombine.low %v911, %v918
          %v941 = vunpack.c.l.s4 1983009808
          %v942 = vunpack.c.0.s8 %v941
          %v943 = vlaneseq
          %v944 = vshrl.u32 %v943, 7
          %v945 = vsub.s32 %v942, %v944
          %v946 = vrot.slane %v939, %v945
          %v947 = vcombine.low %v921, %v922
          %v949 = vunpack.c.l.s4 1983009808
          %v950 = vunpack.c.0.s8 %v949
          %v951 = vlaneseq
          %v952 = vshrl.u32 %v951, 7
          %v953 = vsub.s32 %v950, %v952
          %v954 = vrot.slane %v947, %v953
          %v955 = vcombine.low %v930, %v938
          %v956 = vcombine.high %v930, %v938
          %v958 = vunpack.c.l.s4 1934713408
          %v959 = vunpack.c.0.s8 %v958
          %v960 = vlaneseq
          %v961 = vshrl.u32 %v960, 7
          %v962 = vsub.s32 %v959, %v961
          %v963 = vrot.slane %v955, %v962
          %v965 = vunpack.c.l.s4 1934713408
          %v966 = vunpack.c.0.s8 %v965
          %v967 = vlaneseq
          %v968 = vshrl.u32 %v967, 7
          %v969 = vsub.s32 %v966, %v968
          %v970 = vrot.slane %v956, %v969
          %v971 = vcombine.low %v946, %v954
          %v972 = vcombine.high %v946, %v954
          %v974 = vunpack.c.l.s4 1934713408
          %v975 = vunpack.c.0.s8 %v974
          %v976 = vlaneseq
          %v977 = vshrl.u32 %v976, 7
          %v978 = vsub.s32 %v975, %v977
          %v979 = vrot.slane %v971, %v978
          %v981 = vunpack.c.l.s4 1934713408
          %v982 = vunpack.c.0.s8 %v981
          %v983 = vlaneseq
          %v984 = vshrl.u32 %v983, 7
          %v985 = vsub.s32 %v982, %v984
          %v986 = vrot.slane %v972, %v985
          %v987 = vcombine.low %v963, %v979
          %v988 = vcombine.high %v963, %v979
          %v989 = vcombine.low %v970, %v986
          %v990 = vcombine.high %v970, %v986
          %991 = vst.msk [vmem:[#allocation3] sm:$0xff] %vm840, %v987
          %992 = vst.msk [vmem:[#allocation3 + $0x8] sm:$0xff] %vm840, %v988
          %993 = vst.msk [vmem:[#allocation3 + $0x10] sm:$0xff] %vm840, %v989
          %994 = vst.msk [vmem:[#allocation3 + $0x18] sm:$0xff] %vm840, %v990
        $region84: #{tpu_custom_call.1} parent=75 // pred_fallthru
          _
        %v995 = vld [vmem:[%s485] sm:$0xff]
        %v996 = vld [vmem:[%s1] sm:$0xff]
        %v997 = vld [vmem:[%s1 + $0x8] sm:$0xff]
        %v998 = vld [vmem:[%s1 + $0x10] sm:$0xff]
        %v999 = vld [vmem:[%s1 + $0x18] sm:$0xff]
        %vm1000 = vcmask 261120
        %v1002 = vsel %vm1000, %v995, 0
        %1004 = vmatprep.subr.mxu0 0.0
        %1005 = vmatpush1.msra.mxu0 %v996
        %1006 = vmatprep.subr.mxu0 0.0
        %1007 = vmatpush1.msra.mxu0 %v997
        %1008 = vmatprep.subr.mxu0 0.0
        %1009 = vmatpush1.msra.mxu0 %v998
        %1010 = vmatprep.subr.mxu0 0.0
        %1011 = vmatpush1.msra.mxu0 %v999
        %1012 = vmatprep.subr.mxu0 0.0
        %1013 = vmatpush1.msra.mxu0 0.0
        %1014 = vmatprep.subr.mxu0 0.0
        %1015 = vmatpush1.msra.mxu0 0.0
        %1016 = vmatprep.subr.mxu0 0.0
        %1017 = vmatpush1.msra.mxu0 0.0
        %1018 = vmatprep.subr.mxu0 0.0
        %1019 = vmatpush1.msra.mxu0 0.0
        %1020 = vmatprep.subr.mxu0 0.0
        %1021 = vmatpush1.msra.mxu0 0.0
        %1022 = vmatprep.subr.mxu0 0.0
        %1023 = vmatpush1.msra.mxu0 0.0
        %1024 = vmatprep.subr.mxu0 0.0
        %1025 = vmatpush1.msra.mxu0 0.0
        %1026 = vmatprep.subr.mxu0 0.0
        %1027 = vmatpush1.msra.mxu0 0.0
        %1028 = vmatprep.subr.mxu0 0.0
        %1029 = vmatpush1.msra.mxu0 0.0
        %1030 = vmatprep.subr.mxu0 0.0
        %1031 = vmatpush1.msra.mxu0 0.0
        %1032 = vmatprep.subr.mxu0 0.0
        %1033 = vmatpush1.msra.mxu0 0.0
        %1034 = vmatprep.subr.mxu0 0.0
        %1035 = vmatpush1.msra.mxu0 0.0
        %1036 = vmatprep.subr.mxu0 0.0
        %1037 = vmatpush1.msra.mxu0 0.0
        %1038 = vmatprep.subr.mxu0 0.0
        %1039 = vmatpush1.msra.mxu0 0.0
        %1040 = vmatprep.subr.mxu0 0.0
        %1041 = vmatpush1.msra.mxu0 0.0
        %1042 = vmatprep.subr.mxu0 0.0
        %1043 = vmatpush1.msra.mxu0 0.0
        %1044 = vmatprep.subr.mxu0 0.0
        %1045 = vmatpush1.msra.mxu0 0.0
        %1046 = vmatprep.subr.mxu0 0.0
        %1047 = vmatpush1.msra.mxu0 0.0
        %1048 = vmatprep.subr.mxu0 0.0
        %1049 = vmatpush1.msra.mxu0 0.0
        %1050 = vmatprep.subr.mxu0 0.0
        %1051 = vmatpush1.msra.mxu0 0.0
        %1052 = vmatprep.subr.mxu0 0.0
        %1053 = vmatpush1.msra.mxu0 0.0
        %1054 = vmatprep.subr.mxu0 0.0
        %1055 = vmatpush1.msra.mxu0 0.0
        %1056 = vmatprep.subr.mxu0 0.0
        %1057 = vmatpush1.msra.mxu0 0.0
        %1058 = vmatprep.subr.mxu0 0.0
        %1059 = vmatpush1.msra.mxu0 0.0
        %1060 = vmatprep.subr.mxu0 0.0
        %1061 = vmatpush1.msra.mxu0 0.0
        %1062 = vmatprep.subr.mxu0 0.0
        %1063 = vmatpush1.msra.mxu0 0.0
        %1064 = vmatprep.subr.mxu0 0.0
        %1065 = vmatpush1.msra.mxu0 0.0
        %1066 = vmatprep.subr.mxu0 0.0
        %1067 = vmatpush1.msra.mxu0 0.0
        %1068 = vmatprep.mubr.f32.mxu0 0.0
        %1069 = vmatmul.mubr.f32.gmra.mrb[0].mxu0 %v1002
        %v1070 = vpop.f32.mrb[0].mxu0
        %v1071 = vadd.f32 0.0, %v1070
        %v1072 = vpop.f32.mrb[0].mxu0
        %1073 = vdwg.mxu0
        %v1074 = vmul.f32 %v1071, 5.656854
        %1076 = vrot.lane.b32.xlu0 %v1074, 120
        %v1077 = vpop.permute.xlu0 %1076
        %1079 = vrot.lane.b32.xlu0 %v1074, 112
        %v1080 = vpop.permute.xlu0 %1079
        %1082 = vrot.lane.b32.xlu0 %v1074, 104
        %v1083 = vpop.permute.xlu0 %1082
        %v1085 = vcombine.low %v1074, %v1080
        %v1086 = vcombine.high %v1074, %v1080
        %v1088 = vunpack.c.l.s4 1983009808
        %v1089 = vunpack.c.0.s8 %v1088
        %v1090 = vlaneseq
        %v1091 = vshrl.u32 %v1090, 7
        %v1092 = vsub.s32 %v1089, %v1091
        %v1093 = vrot.slane %v1085, %v1092
        %v1095 = vunpack.c.l.s4 1983009808
        %v1096 = vunpack.c.0.s8 %v1095
        %v1097 = vlaneseq
        %v1098 = vshrl.u32 %v1097, 7
        %v1099 = vsub.s32 %v1096, %v1098
        %v1100 = vrot.slane %v1086, %v1099
        %v1101 = vcombine.low %v1077, %v1083
        %v1102 = vcombine.high %v1077, %v1083
        %v1104 = vunpack.c.l.s4 1983009808
        %v1105 = vunpack.c.0.s8 %v1104
        %v1106 = vlaneseq
        %v1107 = vshrl.u32 %v1106, 7
        %v1108 = vsub.s32 %v1105, %v1107
        %v1109 = vrot.slane %v1101, %v1108
        %v1111 = vunpack.c.l.s4 1983009808
        %v1112 = vunpack.c.0.s8 %v1111
        %v1113 = vlaneseq
        %v1114 = vshrl.u32 %v1113, 7
        %v1115 = vsub.s32 %v1112, %v1114
        %v1116 = vrot.slane %v1102, %v1115
        %v1117 = vcombine.low %v1093, %v1109
        %v1118 = vcombine.high %v1093, %v1109
        %v1120 = vunpack.c.l.s4 1934713408
        %v1121 = vunpack.c.0.s8 %v1120
        %v1122 = vlaneseq
        %v1123 = vshrl.u32 %v1122, 7
        %v1124 = vsub.s32 %v1121, %v1123
        %v1125 = vrot.slane %v1117, %v1124
        %v1127 = vunpack.c.l.s4 1934713408
        %v1128 = vunpack.c.0.s8 %v1127
        %v1129 = vlaneseq
        %v1130 = vshrl.u32 %v1129, 7
        %v1131 = vsub.s32 %v1128, %v1130
        %v1132 = vrot.slane %v1118, %v1131
        %v1133 = vcombine.low %v1100, %v1116
        %v1134 = vcombine.high %v1100, %v1116
        %v1136 = vunpack.c.l.s4 1934713408
        %v1137 = vunpack.c.0.s8 %v1136
        %v1138 = vlaneseq
        %v1139 = vshrl.u32 %v1138, 7
        %v1140 = vsub.s32 %v1137, %v1139
        %v1141 = vrot.slane %v1133, %v1140
        %v1143 = vunpack.c.l.s4 1934713408
        %v1144 = vunpack.c.0.s8 %v1143
        %v1145 = vlaneseq
        %v1146 = vshrl.u32 %v1145, 7
        %v1147 = vsub.s32 %v1144, %v1146
        %v1148 = vrot.slane %v1134, %v1147
        %v1149 = vcombine.high %v1125, 0.0
        %v1150 = vcombine.high %v1132, 0.0
        %v1151 = vcombine.high %v1141, 0.0
        %v1152 = vcombine.high %v1148, 0.0
        %v1153 = vcombine.low %v1125, %v1132
        %v1155 = vunpack.c.l.s4 1983009808
        %v1156 = vunpack.c.0.s8 %v1155
        %v1157 = vlaneseq
        %v1158 = vshrl.u32 %v1157, 7
        %v1159 = vsub.s32 %v1156, %v1158
        %v1160 = vrot.slane %v1153, %v1159
        %v1161 = vcombine.low %v1149, %v1150
        %v1163 = vunpack.c.l.s4 1983009808
        %v1164 = vunpack.c.0.s8 %v1163
        %v1165 = vlaneseq
        %v1166 = vshrl.u32 %v1165, 7
        %v1167 = vsub.s32 %v1164, %v1166
        %v1168 = vrot.slane %v1161, %v1167
        %v1169 = vcombine.low %v1141, %v1148
        %v1171 = vunpack.c.l.s4 1983009808
        %v1172 = vunpack.c.0.s8 %v1171
        %v1173 = vlaneseq
        %v1174 = vshrl.u32 %v1173, 7
        %v1175 = vsub.s32 %v1172, %v1174
        %v1176 = vrot.slane %v1169, %v1175
        %v1177 = vcombine.low %v1151, %v1152
        %v1179 = vunpack.c.l.s4 1983009808
        %v1180 = vunpack.c.0.s8 %v1179
        %v1181 = vlaneseq
        %v1182 = vshrl.u32 %v1181, 7
        %v1183 = vsub.s32 %v1180, %v1182
        %v1184 = vrot.slane %v1177, %v1183
        %v1185 = vcombine.low %v1160, %v1168
        %v1186 = vcombine.high %v1160, %v1168
        %v1188 = vunpack.c.l.s4 1934713408
        %v1189 = vunpack.c.0.s8 %v1188
        %v1190 = vlaneseq
        %v1191 = vshrl.u32 %v1190, 7
        %v1192 = vsub.s32 %v1189, %v1191
        %v1193 = vrot.slane %v1185, %v1192
        %v1195 = vunpack.c.l.s4 1934713408
        %v1196 = vunpack.c.0.s8 %v1195
        %v1197 = vlaneseq
        %v1198 = vshrl.u32 %v1197, 7
        %v1199 = vsub.s32 %v1196, %v1198
        %v1200 = vrot.slane %v1186, %v1199
        %v1201 = vcombine.low %v1176, %v1184
        %v1202 = vcombine.high %v1176, %v1184
        %v1204 = vunpack.c.l.s4 1934713408
        %v1205 = vunpack.c.0.s8 %v1204
        %v1206 = vlaneseq
        %v1207 = vshrl.u32 %v1206, 7
        %v1208 = vsub.s32 %v1205, %v1207
        %v1209 = vrot.slane %v1201, %v1208
        %v1211 = vunpack.c.l.s4 1934713408
        %v1212 = vunpack.c.0.s8 %v1211
        %v1213 = vlaneseq
        %v1214 = vshrl.u32 %v1213, 7
        %v1215 = vsub.s32 %v1212, %v1214
        %v1216 = vrot.slane %v1202, %v1215
        %v1217 = vcombine.low %v1193, %v1209
        %v1218 = vcombine.high %v1193, %v1209
        %v1219 = vcombine.low %v1200, %v1216
        %v1220 = vcombine.high %v1200, %v1216
        %v1221 = vld [vmem:[#allocation2] sm:$0xff]
        %v1222 = vld [vmem:[#allocation2 + $0x8] sm:$0xff]
        %v1223 = vld [vmem:[#allocation2 + $0x10] sm:$0xff]
        %v1224 = vld [vmem:[#allocation2 + $0x18] sm:$0xff]
        %vm1225 = vcmask 64512
        %v1227 = vsel %vm1225, %v1217, 0
        %v1230 = vsel %vm1225, %v1221, 0
        %1232 = vmatprep.subr.mxu0 0.0
        %1233 = vmatpush1.xpose.msra.mxu0 %v1230
        %1234 = vmatprep.subr.mxu0 0.0
        %1235 = vmatpush1.xpose.msra.mxu0 0.0
        %1236 = vmatprep.subr.mxu0 0.0
        %1237 = vmatpush1.xpose.msra.mxu0 0.0
        %1238 = vmatprep.subr.mxu0 0.0
        %1239 = vmatpush1.xpose.msra.mxu0 0.0
        %1240 = vmatprep.subr.mxu0 0.0
        %1241 = vmatpush1.xpose.msra.mxu0 0.0
        %1242 = vmatprep.subr.mxu0 0.0
        %1243 = vmatpush1.xpose.msra.mxu0 0.0
        %1244 = vmatprep.subr.mxu0 0.0
        %1245 = vmatpush1.xpose.msra.mxu0 0.0
        %1246 = vmatprep.subr.mxu0 0.0
        %1247 = vmatpush1.xpose.msra.mxu0 0.0
        %1248 = vmatprep.subr.mxu0 0.0
        %1249 = vmatpush1.xpose.msra.mxu0 0.0
        %1250 = vmatprep.subr.mxu0 0.0
        %1251 = vmatpush1.xpose.msra.mxu0 0.0
        %1252 = vmatprep.subr.mxu0 0.0
        %1253 = vmatpush1.xpose.msra.mxu0 0.0
        %1254 = vmatprep.subr.mxu0 0.0
        %1255 = vmatpush1.xpose.msra.mxu0 0.0
        %1256 = vmatprep.subr.mxu0 0.0
        %1257 = vmatpush1.xpose.msra.mxu0 0.0
        %1258 = vmatprep.subr.mxu0 0.0
        %1259 = vmatpush1.xpose.msra.mxu0 0.0
        %1260 = vmatprep.subr.mxu0 0.0
        %1261 = vmatpush1.xpose.msra.mxu0 0.0
        %1262 = vmatprep.subr.mxu0 0.0
        %1263 = vmatpush1.xpose.msra.mxu0 0.0
        %1264 = vmatprep.subr.mxu0 0.0
        %1265 = vmatpush1.xpose.msra.mxu0 0.0
        %1266 = vmatprep.subr.mxu0 0.0
        %1267 = vmatpush1.xpose.msra.mxu0 0.0
        %1268 = vmatprep.subr.mxu0 0.0
        %1269 = vmatpush1.xpose.msra.mxu0 0.0
        %1270 = vmatprep.subr.mxu0 0.0
        %1271 = vmatpush1.xpose.msra.mxu0 0.0
        %1272 = vmatprep.subr.mxu0 0.0
        %1273 = vmatpush1.xpose.msra.mxu0 0.0
        %1274 = vmatprep.subr.mxu0 0.0
        %1275 = vmatpush1.xpose.msra.mxu0 0.0
        %1276 = vmatprep.subr.mxu0 0.0
        %1277 = vmatpush1.xpose.msra.mxu0 0.0
        %1278 = vmatprep.subr.mxu0 0.0
        %1279 = vmatpush1.xpose.msra.mxu0 0.0
        %1280 = vmatprep.subr.mxu0 0.0
        %1281 = vmatpush1.xpose.msra.mxu0 0.0
        %1282 = vmatprep.subr.mxu0 0.0
        %1283 = vmatpush1.xpose.msra.mxu0 0.0
        %1284 = vmatprep.subr.mxu0 0.0
        %1285 = vmatpush1.xpose.msra.mxu0 0.0
        %1286 = vmatprep.subr.mxu0 0.0
        %1287 = vmatpush1.xpose.msra.mxu0 0.0
        %1288 = vmatprep.subr.mxu0 0.0
        %1289 = vmatpush1.xpose.msra.mxu0 0.0
        %1290 = vmatprep.subr.mxu0 0.0
        %1291 = vmatpush1.xpose.msra.mxu0 0.0
        %1292 = vmatprep.subr.mxu0 0.0
        %1293 = vmatpush1.xpose.msra.mxu0 0.0
        %1294 = vmatprep.subr.mxu0 0.0
        %1295 = vmatpush1.xpose.msra.mxu0 0.0
        %1296 = vmatprep.mubr.f32.mxu0 0.0
        %1297 = vmatmul.mubr.f32.gmra.mrb[0].mxu0 %v1227
        %v1298 = vpop.f32.mrb[0].mxu0
        %v1299 = vadd.f32 0.0, %v1298
        %v1300 = vpop.f32.mrb[0].mxu0
        %1301 = vdwg.mxu0
        %v1303 = vsel %vm1225, %v1218, 0
        %v1306 = vsel %vm1225, %v1222, 0
        %1308 = vmatprep.subr.mxu0 0.0
        %1309 = vmatpush1.xpose.msra.mxu0 %v1306
        %1310 = vmatprep.subr.mxu0 0.0
        %1311 = vmatpush1.xpose.msra.mxu0 0.0
        %1312 = vmatprep.subr.mxu0 0.0
        %1313 = vmatpush1.xpose.msra.mxu0 0.0
        %1314 = vmatprep.subr.mxu0 0.0
        %1315 = vmatpush1.xpose.msra.mxu0 0.0
        %1316 = vmatprep.subr.mxu0 0.0
        %1317 = vmatpush1.xpose.msra.mxu0 0.0
        %1318 = vmatprep.subr.mxu0 0.0
        %1319 = vmatpush1.xpose.msra.mxu0 0.0
        %1320 = vmatprep.subr.mxu0 0.0
        %1321 = vmatpush1.xpose.msra.mxu0 0.0
        %1322 = vmatprep.subr.mxu0 0.0
        %1323 = vmatpush1.xpose.msra.mxu0 0.0
        %1324 = vmatprep.subr.mxu0 0.0
        %1325 = vmatpush1.xpose.msra.mxu0 0.0
        %1326 = vmatprep.subr.mxu0 0.0
        %1327 = vmatpush1.xpose.msra.mxu0 0.0
        %1328 = vmatprep.subr.mxu0 0.0
        %1329 = vmatpush1.xpose.msra.mxu0 0.0
        %1330 = vmatprep.subr.mxu0 0.0
        %1331 = vmatpush1.xpose.msra.mxu0 0.0
        %1332 = vmatprep.subr.mxu0 0.0
        %1333 = vmatpush1.xpose.msra.mxu0 0.0
        %1334 = vmatprep.subr.mxu0 0.0
        %1335 = vmatpush1.xpose.msra.mxu0 0.0
        %1336 = vmatprep.subr.mxu0 0.0
        %1337 = vmatpush1.xpose.msra.mxu0 0.0
        %1338 = vmatprep.subr.mxu0 0.0
        %1339 = vmatpush1.xpose.msra.mxu0 0.0
        %1340 = vmatprep.subr.mxu0 0.0
        %1341 = vmatpush1.xpose.msra.mxu0 0.0
        %1342 = vmatprep.subr.mxu0 0.0
        %1343 = vmatpush1.xpose.msra.mxu0 0.0
        %1344 = vmatprep.subr.mxu0 0.0
        %1345 = vmatpush1.xpose.msra.mxu0 0.0
        %1346 = vmatprep.subr.mxu0 0.0
        %1347 = vmatpush1.xpose.msra.mxu0 0.0
        %1348 = vmatprep.subr.mxu0 0.0
        %1349 = vmatpush1.xpose.msra.mxu0 0.0
        %1350 = vmatprep.subr.mxu0 0.0
        %1351 = vmatpush1.xpose.msra.mxu0 0.0
        %1352 = vmatprep.subr.mxu0 0.0
        %1353 = vmatpush1.xpose.msra.mxu0 0.0
        %1354 = vmatprep.subr.mxu0 0.0
        %1355 = vmatpush1.xpose.msra.mxu0 0.0
        %1356 = vmatprep.subr.mxu0 0.0
        %1357 = vmatpush1.xpose.msra.mxu0 0.0
        %1358 = vmatprep.subr.mxu0 0.0
        %1359 = vmatpush1.xpose.msra.mxu0 0.0
        %1360 = vmatprep.subr.mxu0 0.0
        %1361 = vmatpush1.xpose.msra.mxu0 0.0
        %1362 = vmatprep.subr.mxu0 0.0
        %1363 = vmatpush1.xpose.msra.mxu0 0.0
        %1364 = vmatprep.subr.mxu0 0.0
        %1365 = vmatpush1.xpose.msra.mxu0 0.0
        %1366 = vmatprep.subr.mxu0 0.0
        %1367 = vmatpush1.xpose.msra.mxu0 0.0
        %1368 = vmatprep.subr.mxu0 0.0
        %1369 = vmatpush1.xpose.msra.mxu0 0.0
        %1370 = vmatprep.subr.mxu0 0.0
        %1371 = vmatpush1.xpose.msra.mxu0 0.0
        %1372 = vmatprep.mubr.f32.mxu0 0.0
        %1373 = vmatmul.mubr.f32.gmra.mrb[0].mxu0 %v1303
        %v1374 = vpop.f32.mrb[0].mxu0
        %v1375 = vadd.f32 0.0, %v1374
        %v1376 = vpop.f32.mrb[0].mxu0
        %1377 = vdwg.mxu0
        %v1379 = vsel %vm1225, %v1219, 0
        %v1382 = vsel %vm1225, %v1223, 0
        %1384 = vmatprep.subr.mxu0 0.0
        %1385 = vmatpush1.xpose.msra.mxu0 %v1382
        %1386 = vmatprep.subr.mxu0 0.0
        %1387 = vmatpush1.xpose.msra.mxu0 0.0
        %1388 = vmatprep.subr.mxu0 0.0
        %1389 = vmatpush1.xpose.msra.mxu0 0.0
        %1390 = vmatprep.subr.mxu0 0.0
        %1391 = vmatpush1.xpose.msra.mxu0 0.0
        %1392 = vmatprep.subr.mxu0 0.0
        %1393 = vmatpush1.xpose.msra.mxu0 0.0
        %1394 = vmatprep.subr.mxu0 0.0
        %1395 = vmatpush1.xpose.msra.mxu0 0.0
        %1396 = vmatprep.subr.mxu0 0.0
        %1397 = vmatpush1.xpose.msra.mxu0 0.0
        %1398 = vmatprep.subr.mxu0 0.0
        %1399 = vmatpush1.xpose.msra.mxu0 0.0
        %1400 = vmatprep.subr.mxu0 0.0
        %1401 = vmatpush1.xpose.msra.mxu0 0.0
        %1402 = vmatprep.subr.mxu0 0.0
        %1403 = vmatpush1.xpose.msra.mxu0 0.0
        %1404 = vmatprep.subr.mxu0 0.0
        %1405 = vmatpush1.xpose.msra.mxu0 0.0
        %1406 = vmatprep.subr.mxu0 0.0
        %1407 = vmatpush1.xpose.msra.mxu0 0.0
        %1408 = vmatprep.subr.mxu0 0.0
        %1409 = vmatpush1.xpose.msra.mxu0 0.0
        %1410 = vmatprep.subr.mxu0 0.0
        %1411 = vmatpush1.xpose.msra.mxu0 0.0
        %1412 = vmatprep.subr.mxu0 0.0
        %1413 = vmatpush1.xpose.msra.mxu0 0.0
        %1414 = vmatprep.subr.mxu0 0.0
        %1415 = vmatpush1.xpose.msra.mxu0 0.0
        %1416 = vmatprep.subr.mxu0 0.0
        %1417 = vmatpush1.xpose.msra.mxu0 0.0
        %1418 = vmatprep.subr.mxu0 0.0
        %1419 = vmatpush1.xpose.msra.mxu0 0.0
        %1420 = vmatprep.subr.mxu0 0.0
        %1421 = vmatpush1.xpose.msra.mxu0 0.0
        %1422 = vmatprep.subr.mxu0 0.0
        %1423 = vmatpush1.xpose.msra.mxu0 0.0
        %1424 = vmatprep.subr.mxu0 0.0
        %1425 = vmatpush1.xpose.msra.mxu0 0.0
        %1426 = vmatprep.subr.mxu0 0.0
        %1427 = vmatpush1.xpose.msra.mxu0 0.0
        %1428 = vmatprep.subr.mxu0 0.0
        %1429 = vmatpush1.xpose.msra.mxu0 0.0
        %1430 = vmatprep.subr.mxu0 0.0
        %1431 = vmatpush1.xpose.msra.mxu0 0.0
        %1432 = vmatprep.subr.mxu0 0.0
        %1433 = vmatpush1.xpose.msra.mxu0 0.0
        %1434 = vmatprep.subr.mxu0 0.0
        %1435 = vmatpush1.xpose.msra.mxu0 0.0
        %1436 = vmatprep.subr.mxu0 0.0
        %1437 = vmatpush1.xpose.msra.mxu0 0.0
        %1438 = vmatprep.subr.mxu0 0.0
        %1439 = vmatpush1.xpose.msra.mxu0 0.0
        %1440 = vmatprep.subr.mxu0 0.0
        %1441 = vmatpush1.xpose.msra.mxu0 0.0
        %1442 = vmatprep.subr.mxu0 0.0
        %1443 = vmatpush1.xpose.msra.mxu0 0.0
        %1444 = vmatprep.subr.mxu0 0.0
        %1445 = vmatpush1.xpose.msra.mxu0 0.0
        %1446 = vmatprep.subr.mxu0 0.0
        %1447 = vmatpush1.xpose.msra.mxu0 0.0
        %1448 = vmatprep.mubr.f32.mxu0 0.0
        %1449 = vmatmul.mubr.f32.gmra.mrb[0].mxu0 %v1379
        %v1450 = vpop.f32.mrb[0].mxu0
        %v1451 = vadd.f32 0.0, %v1450
        %v1452 = vpop.f32.mrb[0].mxu0
        %1453 = vdwg.mxu0
        %v1455 = vsel %vm1225, %v1220, 0
        %v1458 = vsel %vm1225, %v1224, 0
        %1460 = vmatprep.subr.mxu0 0.0
        %1461 = vmatpush1.xpose.msra.mxu0 %v1458
        %1462 = vmatprep.subr.mxu0 0.0
        %1463 = vmatpush1.xpose.msra.mxu0 0.0
        %1464 = vmatprep.subr.mxu0 0.0
        %1465 = vmatpush1.xpose.msra.mxu0 0.0
        %1466 = vmatprep.subr.mxu0 0.0
        %1467 = vmatpush1.xpose.msra.mxu0 0.0
        %1468 = vmatprep.subr.mxu0 0.0
        %1469 = vmatpush1.xpose.msra.mxu0 0.0
        %1470 = vmatprep.subr.mxu0 0.0
        %1471 = vmatpush1.xpose.msra.mxu0 0.0
        %1472 = vmatprep.subr.mxu0 0.0
        %1473 = vmatpush1.xpose.msra.mxu0 0.0
        %1474 = vmatprep.subr.mxu0 0.0
        %1475 = vmatpush1.xpose.msra.mxu0 0.0
        %1476 = vmatprep.subr.mxu0 0.0
        %1477 = vmatpush1.xpose.msra.mxu0 0.0
        %1478 = vmatprep.subr.mxu0 0.0
        %1479 = vmatpush1.xpose.msra.mxu0 0.0
        %1480 = vmatprep.subr.mxu0 0.0
        %1481 = vmatpush1.xpose.msra.mxu0 0.0
        %1482 = vmatprep.subr.mxu0 0.0
        %1483 = vmatpush1.xpose.msra.mxu0 0.0
        %1484 = vmatprep.subr.mxu0 0.0
        %1485 = vmatpush1.xpose.msra.mxu0 0.0
        %1486 = vmatprep.subr.mxu0 0.0
        %1487 = vmatpush1.xpose.msra.mxu0 0.0
        %1488 = vmatprep.subr.mxu0 0.0
        %1489 = vmatpush1.xpose.msra.mxu0 0.0
        %1490 = vmatprep.subr.mxu0 0.0
        %1491 = vmatpush1.xpose.msra.mxu0 0.0
        %1492 = vmatprep.subr.mxu0 0.0
        %1493 = vmatpush1.xpose.msra.mxu0 0.0
        %1494 = vmatprep.subr.mxu0 0.0
        %1495 = vmatpush1.xpose.msra.mxu0 0.0
        %1496 = vmatprep.subr.mxu0 0.0
        %1497 = vmatpush1.xpose.msra.mxu0 0.0
        %1498 = vmatprep.subr.mxu0 0.0
        %1499 = vmatpush1.xpose.msra.mxu0 0.0
        %1500 = vmatprep.subr.mxu0 0.0
        %1501 = vmatpush1.xpose.msra.mxu0 0.0
        %1502 = vmatprep.subr.mxu0 0.0
        %1503 = vmatpush1.xpose.msra.mxu0 0.0
        %1504 = vmatprep.subr.mxu0 0.0
        %1505 = vmatpush1.xpose.msra.mxu0 0.0
        %1506 = vmatprep.subr.mxu0 0.0
        %1507 = vmatpush1.xpose.msra.mxu0 0.0
        %1508 = vmatprep.subr.mxu0 0.0
        %1509 = vmatpush1.xpose.msra.mxu0 0.0
        %1510 = vmatprep.subr.mxu0 0.0
        %1511 = vmatpush1.xpose.msra.mxu0 0.0
        %1512 = vmatprep.subr.mxu0 0.0
        %1513 = vmatpush1.xpose.msra.mxu0 0.0
        %1514 = vmatprep.subr.mxu0 0.0
        %1515 = vmatpush1.xpose.msra.mxu0 0.0
        %1516 = vmatprep.subr.mxu0 0.0
        %1517 = vmatpush1.xpose.msra.mxu0 0.0
        %1518 = vmatprep.subr.mxu0 0.0
        %1519 = vmatpush1.xpose.msra.mxu0 0.0
        %1520 = vmatprep.subr.mxu0 0.0
        %1521 = vmatpush1.xpose.msra.mxu0 0.0
        %1522 = vmatprep.subr.mxu0 0.0
        %1523 = vmatpush1.xpose.msra.mxu0 0.0
        %1524 = vmatprep.mubr.f32.mxu0 0.0
        %1525 = vmatmul.mubr.f32.gmra.mrb[0].mxu0 %v1455
        %v1526 = vpop.f32.mrb[0].mxu0
        %v1527 = vadd.f32 0.0, %v1526
        %v1528 = vpop.f32.mrb[0].mxu0
        %1529 = vdwg.mxu0
        %v1530 = vsel %vm1225, %v1299, -inf
        %1531 = vmax.xlane.f32.xlu0 %v1530
        %v1532 = vpop.xlane.xlu0 %1531
        %v1533 = vsel %vm1225, %v1375, -inf
        %1534 = vmax.xlane.f32.xlu0 %v1533
        %v1535 = vpop.xlane.xlu0 %1534
        %v1536 = vsel %vm1225, %v1451, -inf
        %1537 = vmax.xlane.f32.xlu0 %v1536
        %v1538 = vpop.xlane.xlu0 %1537
        %v1539 = vsel %vm1225, %v1527, -inf
        %1540 = vmax.xlane.f32.xlu0 %v1539
        %v1541 = vpop.xlane.xlu0 %1540
        %v1542 = vsub.f32 %v1299, %v1532
        %v1543 = vsub.f32 %v1375, %v1535
        %v1544 = vsub.f32 %v1451, %v1538
        %v1545 = vsub.f32 %v1527, %v1541
        %v1546 = vmul.f32 %v1542, 1.442695
        %v1547 = vpow.pop %v1546
        %v1548 = vmul.f32 %v1543, 1.442695
        %v1549 = vpow.pop %v1548
        %v1550 = vmul.f32 %v1544, 1.442695
        %v1551 = vpow.pop %v1550
        %v1552 = vmul.f32 %v1545, 1.442695
        %v1553 = vpow.pop %v1552
        %v1554 = vsel %vm1225, %v1547, 0.0
        %1555 = vadd.xlane.f32.xlu0 %v1554
        %v1556 = vpop.xlane.xlu0 %1555
        %v1557 = vsel %vm1225, %v1549, 0.0
        %1558 = vadd.xlane.f32.xlu0 %v1557
        %v1559 = vpop.xlane.xlu0 %1558
        %v1560 = vsel %vm1225, %v1551, 0.0
        %1561 = vadd.xlane.f32.xlu0 %v1560
        %v1562 = vpop.xlane.xlu0 %1561
        %v1563 = vsel %vm1225, %v1553, 0.0
        %1564 = vadd.xlane.f32.xlu0 %v1563
        %v1565 = vpop.xlane.xlu0 %1564
        %v1566 = vrcp.pop %v1556
        %v1567 = vrcp.pop %v1559
        %v1568 = vrcp.pop %v1562
        %v1569 = vrcp.pop %v1565
        %v1570 = vmul.f32 %v1547, %v1566
        %v1571 = vmul.f32 %v1549, %v1567
        %v1572 = vmul.f32 %v1551, %v1568
        %v1573 = vmul.f32 %v1553, %v1569
        %1574 = vst.msk [vmem:[%s536] sm:$0xff] %vm1225, %v1570
        %1575 = vst.msk [vmem:[%s536 + $0x8] sm:$0xff] %vm1225, %v1571
        %1576 = vst.msk [vmem:[%s536 + $0x10] sm:$0xff] %vm1225, %v1572
        %1577 = vst.msk [vmem:[%s536 + $0x18] sm:$0xff] %vm1225, %v1573
        %v1578 = vld [vmem:[#allocation3] sm:$0xff]
        %v1579 = vld [vmem:[#allocation3 + $0x8] sm:$0xff]
        %v1580 = vld [vmem:[#allocation3 + $0x10] sm:$0xff]
        %v1581 = vld [vmem:[#allocation3 + $0x18] sm:$0xff]
        %v1583 = vsel %vm1225, %v1570, 0
        %1585 = vmatprep.subr.mxu0 0.0
        %1586 = vmatpush1.msra.mxu0 %v1578
        %1587 = vmatprep.subr.mxu0 0.0
        %1588 = vmatpush1.msra.mxu0 0.0
        %1589 = vmatprep.subr.mxu0 0.0
        %1590 = vmatpush1.msra.mxu0 0.0
        %1591 = vmatprep.subr.mxu0 0.0
        %1592 = vmatpush1.msra.mxu0 0.0
        %1593 = vmatprep.subr.mxu0 0.0
        %1594 = vmatpush1.msra.mxu0 0.0
        %1595 = vmatprep.subr.mxu0 0.0
        %1596 = vmatpush1.msra.mxu0 0.0
        %1597 = vmatprep.subr.mxu0 0.0
        %1598 = vmatpush1.msra.mxu0 0.0
        %1599 = vmatprep.subr.mxu0 0.0
        %1600 = vmatpush1.msra.mxu0 0.0
        %1601 = vmatprep.subr.mxu0 0.0
        %1602 = vmatpush1.msra.mxu0 0.0
        %1603 = vmatprep.subr.mxu0 0.0
        %1604 = vmatpush1.msra.mxu0 0.0
        %1605 = vmatprep.subr.mxu0 0.0
        %1606 = vmatpush1.msra.mxu0 0.0
        %1607 = vmatprep.subr.mxu0 0.0
        %1608 = vmatpush1.msra.mxu0 0.0
        %1609 = vmatprep.subr.mxu0 0.0
        %1610 = vmatpush1.msra.mxu0 0.0
        %1611 = vmatprep.subr.mxu0 0.0
        %1612 = vmatpush1.msra.mxu0 0.0
        %1613 = vmatprep.subr.mxu0 0.0
        %1614 = vmatpush1.msra.mxu0 0.0
        %1615 = vmatprep.subr.mxu0 0.0
        %1616 = vmatpush1.msra.mxu0 0.0
        %1617 = vmatprep.subr.mxu0 0.0
        %1618 = vmatpush1.msra.mxu0 0.0
        %1619 = vmatprep.subr.mxu0 0.0
        %1620 = vmatpush1.msra.mxu0 0.0
        %1621 = vmatprep.subr.mxu0 0.0
        %1622 = vmatpush1.msra.mxu0 0.0
        %1623 = vmatprep.subr.mxu0 0.0
        %1624 = vmatpush1.msra.mxu0 0.0
        %1625 = vmatprep.subr.mxu0 0.0
        %1626 = vmatpush1.msra.mxu0 0.0
        %1627 = vmatprep.subr.mxu0 0.0
        %1628 = vmatpush1.msra.mxu0 0.0
        %1629 = vmatprep.subr.mxu0 0.0
        %1630 = vmatpush1.msra.mxu0 0.0
        %1631 = vmatprep.subr.mxu0 0.0
        %1632 = vmatpush1.msra.mxu0 0.0
        %1633 = vmatprep.subr.mxu0 0.0
        %1634 = vmatpush1.msra.mxu0 0.0
        %1635 = vmatprep.subr.mxu0 0.0
        %1636 = vmatpush1.msra.mxu0 0.0
        %1637 = vmatprep.subr.mxu0 0.0
        %1638 = vmatpush1.msra.mxu0 0.0
        %1639 = vmatprep.subr.mxu0 0.0
        %1640 = vmatpush1.msra.mxu0 0.0
        %1641 = vmatprep.subr.mxu0 0.0
        %1642 = vmatpush1.msra.mxu0 0.0
        %1643 = vmatprep.subr.mxu0 0.0
        %1644 = vmatpush1.msra.mxu0 0.0
        %1645 = vmatprep.subr.mxu0 0.0
        %1646 = vmatpush1.msra.mxu0 0.0
        %1647 = vmatprep.subr.mxu0 0.0
        %1648 = vmatpush1.msra.mxu0 0.0
        %1649 = vmatprep.mubr.f32.mxu0 0.0
        %1650 = vmatmul.mubr.f32.gmra.mrb[0].mxu0 %v1583
        %v1651 = vpop.f32.mrb[0].mxu0
        %v1652 = vadd.f32 0.0, %v1651
        %v1653 = vpop.f32.mrb[0].mxu0
        %1654 = vdwg.mxu0
        %v1656 = vsel %vm1225, %v1571, 0
        %1658 = vmatprep.subr.mxu0 0.0
        %1659 = vmatpush1.msra.mxu0 %v1579
        %1660 = vmatprep.subr.mxu0 0.0
        %1661 = vmatpush1.msra.mxu0 0.0
        %1662 = vmatprep.subr.mxu0 0.0
        %1663 = vmatpush1.msra.mxu0 0.0
        %1664 = vmatprep.subr.mxu0 0.0
        %1665 = vmatpush1.msra.mxu0 0.0
        %1666 = vmatprep.subr.mxu0 0.0
        %1667 = vmatpush1.msra.mxu0 0.0
        %1668 = vmatprep.subr.mxu0 0.0
        %1669 = vmatpush1.msra.mxu0 0.0
        %1670 = vmatprep.subr.mxu0 0.0
        %1671 = vmatpush1.msra.mxu0 0.0
        %1672 = vmatprep.subr.mxu0 0.0
        %1673 = vmatpush1.msra.mxu0 0.0
        %1674 = vmatprep.subr.mxu0 0.0
        %1675 = vmatpush1.msra.mxu0 0.0
        %1676 = vmatprep.subr.mxu0 0.0
        %1677 = vmatpush1.msra.mxu0 0.0
        %1678 = vmatprep.subr.mxu0 0.0
        %1679 = vmatpush1.msra.mxu0 0.0
        %1680 = vmatprep.subr.mxu0 0.0
        %1681 = vmatpush1.msra.mxu0 0.0
        %1682 = vmatprep.subr.mxu0 0.0
        %1683 = vmatpush1.msra.mxu0 0.0
        %1684 = vmatprep.subr.mxu0 0.0
        %1685 = vmatpush1.msra.mxu0 0.0
        %1686 = vmatprep.subr.mxu0 0.0
        %1687 = vmatpush1.msra.mxu0 0.0
        %1688 = vmatprep.subr.mxu0 0.0
        %1689 = vmatpush1.msra.mxu0 0.0
        %1690 = vmatprep.subr.mxu0 0.0
        %1691 = vmatpush1.msra.mxu0 0.0
        %1692 = vmatprep.subr.mxu0 0.0
        %1693 = vmatpush1.msra.mxu0 0.0
        %1694 = vmatprep.subr.mxu0 0.0
        %1695 = vmatpush1.msra.mxu0 0.0
        %1696 = vmatprep.subr.mxu0 0.0
        %1697 = vmatpush1.msra.mxu0 0.0
        %1698 = vmatprep.subr.mxu0 0.0
        %1699 = vmatpush1.msra.mxu0 0.0
        %1700 = vmatprep.subr.mxu0 0.0
        %1701 = vmatpush1.msra.mxu0 0.0
        %1702 = vmatprep.subr.mxu0 0.0
        %1703 = vmatpush1.msra.mxu0 0.0
        %1704 = vmatprep.subr.mxu0 0.0
        %1705 = vmatpush1.msra.mxu0 0.0
        %1706 = vmatprep.subr.mxu0 0.0
        %1707 = vmatpush1.msra.mxu0 0.0
        %1708 = vmatprep.subr.mxu0 0.0
        %1709 = vmatpush1.msra.mxu0 0.0
        %1710 = vmatprep.subr.mxu0 0.0
        %1711 = vmatpush1.msra.mxu0 0.0
        %1712 = vmatprep.subr.mxu0 0.0
        %1713 = vmatpush1.msra.mxu0 0.0
        %1714 = vmatprep.subr.mxu0 0.0
        %1715 = vmatpush1.msra.mxu0 0.0
        %1716 = vmatprep.subr.mxu0 0.0
        %1717 = vmatpush1.msra.mxu0 0.0
        %1718 = vmatprep.subr.mxu0 0.0
        %1719 = vmatpush1.msra.mxu0 0.0
        %1720 = vmatprep.subr.mxu0 0.0
        %1721 = vmatpush1.msra.mxu0 0.0
        %1722 = vmatprep.mubr.f32.mxu0 0.0
        %1723 = vmatmul.mubr.f32.gmra.mrb[0].mxu0 %v1656
        %v1724 = vpop.f32.mrb[0].mxu0
        %v1725 = vadd.f32 0.0, %v1724
        %v1726 = vpop.f32.mrb[0].mxu0
        %1727 = vdwg.mxu0
        %v1729 = vsel %vm1225, %v1572, 0
        %1731 = vmatprep.subr.mxu0 0.0
        %1732 = vmatpush1.msra.mxu0 %v1580
        %1733 = vmatprep.subr.mxu0 0.0
        %1734 = vmatpush1.msra.mxu0 0.0
        %1735 = vmatprep.subr.mxu0 0.0
        %1736 = vmatpush1.msra.mxu0 0.0
        %1737 = vmatprep.subr.mxu0 0.0
        %1738 = vmatpush1.msra.mxu0 0.0
        %1739 = vmatprep.subr.mxu0 0.0
        %1740 = vmatpush1.msra.mxu0 0.0
        %1741 = vmatprep.subr.mxu0 0.0
        %1742 = vmatpush1.msra.mxu0 0.0
        %1743 = vmatprep.subr.mxu0 0.0
        %1744 = vmatpush1.msra.mxu0 0.0
        %1745 = vmatprep.subr.mxu0 0.0
        %1746 = vmatpush1.msra.mxu0 0.0
        %1747 = vmatprep.subr.mxu0 0.0
        %1748 = vmatpush1.msra.mxu0 0.0
        %1749 = vmatprep.subr.mxu0 0.0
        %1750 = vmatpush1.msra.mxu0 0.0
        %1751 = vmatprep.subr.mxu0 0.0
        %1752 = vmatpush1.msra.mxu0 0.0
        %1753 = vmatprep.subr.mxu0 0.0
        %1754 = vmatpush1.msra.mxu0 0.0
        %1755 = vmatprep.subr.mxu0 0.0
        %1756 = vmatpush1.msra.mxu0 0.0
        %1757 = vmatprep.subr.mxu0 0.0
        %1758 = vmatpush1.msra.mxu0 0.0
        %1759 = vmatprep.subr.mxu0 0.0
        %1760 = vmatpush1.msra.mxu0 0.0
        %1761 = vmatprep.subr.mxu0 0.0
        %1762 = vmatpush1.msra.mxu0 0.0
        %1763 = vmatprep.subr.mxu0 0.0
        %1764 = vmatpush1.msra.mxu0 0.0
        %1765 = vmatprep.subr.mxu0 0.0
        %1766 = vmatpush1.msra.mxu0 0.0
        %1767 = vmatprep.subr.mxu0 0.0
        %1768 = vmatpush1.msra.mxu0 0.0
        %1769 = vmatprep.subr.mxu0 0.0
        %1770 = vmatpush1.msra.mxu0 0.0
        %1771 = vmatprep.subr.mxu0 0.0
        %1772 = vmatpush1.msra.mxu0 0.0
        %1773 = vmatprep.subr.mxu0 0.0
        %1774 = vmatpush1.msra.mxu0 0.0
        %1775 = vmatprep.subr.mxu0 0.0
        %1776 = vmatpush1.msra.mxu0 0.0
        %1777 = vmatprep.subr.mxu0 0.0
        %1778 = vmatpush1.msra.mxu0 0.0
        %1779 = vmatprep.subr.mxu0 0.0
        %1780 = vmatpush1.msra.mxu0 0.0
        %1781 = vmatprep.subr.mxu0 0.0
        %1782 = vmatpush1.msra.mxu0 0.0
        %1783 = vmatprep.subr.mxu0 0.0
        %1784 = vmatpush1.msra.mxu0 0.0
        %1785 = vmatprep.subr.mxu0 0.0
        %1786 = vmatpush1.msra.mxu0 0.0
        %1787 = vmatprep.subr.mxu0 0.0
        %1788 = vmatpush1.msra.mxu0 0.0
        %1789 = vmatprep.subr.mxu0 0.0
        %1790 = vmatpush1.msra.mxu0 0.0
        %1791 = vmatprep.subr.mxu0 0.0
        %1792 = vmatpush1.msra.mxu0 0.0
        %1793 = vmatprep.subr.mxu0 0.0
        %1794 = vmatpush1.msra.mxu0 0.0
        %1795 = vmatprep.mubr.f32.mxu0 0.0
        %1796 = vmatmul.mubr.f32.gmra.mrb[0].mxu0 %v1729
        %v1797 = vpop.f32.mrb[0].mxu0
        %v1798 = vadd.f32 0.0, %v1797
        %v1799 = vpop.f32.mrb[0].mxu0
        %1800 = vdwg.mxu0
        %v1802 = vsel %vm1225, %v1573, 0
        %1804 = vmatprep.subr.mxu0 0.0
        %1805 = vmatpush1.msra.mxu0 %v1581
        %1806 = vmatprep.subr.mxu0 0.0
        %1807 = vmatpush1.msra.mxu0 0.0
        %1808 = vmatprep.subr.mxu0 0.0
        %1809 = vmatpush1.msra.mxu0 0.0
        %1810 = vmatprep.subr.mxu0 0.0
        %1811 = vmatpush1.msra.mxu0 0.0
        %1812 = vmatprep.subr.mxu0 0.0
        %1813 = vmatpush1.msra.mxu0 0.0
        %1814 = vmatprep.subr.mxu0 0.0
        %1815 = vmatpush1.msra.mxu0 0.0
        %1816 = vmatprep.subr.mxu0 0.0
        %1817 = vmatpush1.msra.mxu0 0.0
        %1818 = vmatprep.subr.mxu0 0.0
        %1819 = vmatpush1.msra.mxu0 0.0
        %1820 = vmatprep.subr.mxu0 0.0
        %1821 = vmatpush1.msra.mxu0 0.0
        %1822 = vmatprep.subr.mxu0 0.0
        %1823 = vmatpush1.msra.mxu0 0.0
        %1824 = vmatprep.subr.mxu0 0.0
        %1825 = vmatpush1.msra.mxu0 0.0
        %1826 = vmatprep.subr.mxu0 0.0
        %1827 = vmatpush1.msra.mxu0 0.0
        %1828 = vmatprep.subr.mxu0 0.0
        %1829 = vmatpush1.msra.mxu0 0.0
        %1830 = vmatprep.subr.mxu0 0.0
        %1831 = vmatpush1.msra.mxu0 0.0
        %1832 = vmatprep.subr.mxu0 0.0
        %1833 = vmatpush1.msra.mxu0 0.0
        %1834 = vmatprep.subr.mxu0 0.0
        %1835 = vmatpush1.msra.mxu0 0.0
        %1836 = vmatprep.subr.mxu0 0.0
        %1837 = vmatpush1.msra.mxu0 0.0
        %1838 = vmatprep.subr.mxu0 0.0
        %1839 = vmatpush1.msra.mxu0 0.0
        %1840 = vmatprep.subr.mxu0 0.0
        %1841 = vmatpush1.msra.mxu0 0.0
        %1842 = vmatprep.subr.mxu0 0.0
        %1843 = vmatpush1.msra.mxu0 0.0
        %1844 = vmatprep.subr.mxu0 0.0
        %1845 = vmatpush1.msra.mxu0 0.0
        %1846 = vmatprep.subr.mxu0 0.0
        %1847 = vmatpush1.msra.mxu0 0.0
        %1848 = vmatprep.subr.mxu0 0.0
        %1849 = vmatpush1.msra.mxu0 0.0
        %1850 = vmatprep.subr.mxu0 0.0
        %1851 = vmatpush1.msra.mxu0 0.0
        %1852 = vmatprep.subr.mxu0 0.0
        %1853 = vmatpush1.msra.mxu0 0.0
        %1854 = vmatprep.subr.mxu0 0.0
        %1855 = vmatpush1.msra.mxu0 0.0
        %1856 = vmatprep.subr.mxu0 0.0
        %1857 = vmatpush1.msra.mxu0 0.0
        %1858 = vmatprep.subr.mxu0 0.0
        %1859 = vmatpush1.msra.mxu0 0.0
        %1860 = vmatprep.subr.mxu0 0.0
        %1861 = vmatpush1.msra.mxu0 0.0
        %1862 = vmatprep.subr.mxu0 0.0
        %1863 = vmatpush1.msra.mxu0 0.0
        %1864 = vmatprep.subr.mxu0 0.0
        %1865 = vmatpush1.msra.mxu0 0.0
        %1866 = vmatprep.subr.mxu0 0.0
        %1867 = vmatpush1.msra.mxu0 0.0
        %1868 = vmatprep.mubr.f32.mxu0 0.0
        %1869 = vmatmul.mubr.f32.gmra.mrb[0].mxu0 %v1802
        %v1870 = vpop.f32.mrb[0].mxu0
        %v1871 = vadd.f32 0.0, %v1870
        %v1872 = vpop.f32.mrb[0].mxu0
        %1873 = vdwg.mxu0
        %v1874 = vcombine.low %v1652, %v1798
        %v1875 = vcombine.high %v1652, %v1798
        %v1877 = vunpack.c.l.s4 1983009808
        %v1878 = vunpack.c.0.s8 %v1877
        %v1879 = vlaneseq
        %v1880 = vshrl.u32 %v1879, 7
        %v1881 = vsub.s32 %v1878, %v1880
        %v1882 = vrot.slane %v1874, %v1881
        %v1884 = vunpack.c.l.s4 1983009808
        %v1885 = vunpack.c.0.s8 %v1884
        %v1886 = vlaneseq
        %v1887 = vshrl.u32 %v1886, 7
        %v1888 = vsub.s32 %v1885, %v1887
        %v1889 = vrot.slane %v1875, %v1888
        %v1890 = vcombine.low %v1725, %v1871
        %v1891 = vcombine.high %v1725, %v1871
        %v1893 = vunpack.c.l.s4 1983009808
        %v1894 = vunpack.c.0.s8 %v1893
        %v1895 = vlaneseq
        %v1896 = vshrl.u32 %v1895, 7
        %v1897 = vsub.s32 %v1894, %v1896
        %v1898 = vrot.slane %v1890, %v1897
        %v1900 = vunpack.c.l.s4 1983009808
        %v1901 = vunpack.c.0.s8 %v1900
        %v1902 = vlaneseq
        %v1903 = vshrl.u32 %v1902, 7
        %v1904 = vsub.s32 %v1901, %v1903
        %v1905 = vrot.slane %v1891, %v1904
        %v1906 = vcombine.low %v1882, %v1898
        %v1907 = vcombine.high %v1882, %v1898
        %v1909 = vunpack.c.l.s4 1934713408
        %v1910 = vunpack.c.0.s8 %v1909
        %v1911 = vlaneseq
        %v1912 = vshrl.u32 %v1911, 7
        %v1913 = vsub.s32 %v1910, %v1912
        %v1914 = vrot.slane %v1906, %v1913
        %v1916 = vunpack.c.l.s4 1934713408
        %v1917 = vunpack.c.0.s8 %v1916
        %v1918 = vlaneseq
        %v1919 = vshrl.u32 %v1918, 7
        %v1920 = vsub.s32 %v1917, %v1919
        %v1921 = vrot.slane %v1907, %v1920
        %v1922 = vcombine.low %v1889, %v1905
        %v1923 = vcombine.high %v1889, %v1905
        %v1925 = vunpack.c.l.s4 1934713408
        %v1926 = vunpack.c.0.s8 %v1925
        %v1927 = vlaneseq
        %v1928 = vshrl.u32 %v1927, 7
        %v1929 = vsub.s32 %v1926, %v1928
        %v1930 = vrot.slane %v1922, %v1929
        %v1932 = vunpack.c.l.s4 1934713408
        %v1933 = vunpack.c.0.s8 %v1932
        %v1934 = vlaneseq
        %v1935 = vshrl.u32 %v1934, 7
        %v1936 = vsub.s32 %v1933, %v1935
        %v1937 = vrot.slane %v1923, %v1936
        %v1938 = vcombine.high %v1914, 0.0
        %v1939 = vcombine.high %v1921, 0.0
        %v1940 = vcombine.high %v1930, 0.0
        %v1941 = vcombine.high %v1937, 0.0
        %v1942 = vcombine.low %v1914, %v1921
        %v1944 = vunpack.c.l.s4 1983009808
        %v1945 = vunpack.c.0.s8 %v1944
        %v1946 = vlaneseq
        %v1947 = vshrl.u32 %v1946, 7
        %v1948 = vsub.s32 %v1945, %v1947
        %v1949 = vrot.slane %v1942, %v1948
        %v1950 = vcombine.low %v1938, %v1939
        %v1952 = vunpack.c.l.s4 1983009808
        %v1953 = vunpack.c.0.s8 %v1952
        %v1954 = vlaneseq
        %v1955 = vshrl.u32 %v1954, 7
        %v1956 = vsub.s32 %v1953, %v1955
        %v1957 = vrot.slane %v1950, %v1956
        %v1958 = vcombine.low %v1930, %v1937
        %v1960 = vunpack.c.l.s4 1983009808
        %v1961 = vunpack.c.0.s8 %v1960
        %v1962 = vlaneseq
        %v1963 = vshrl.u32 %v1962, 7
        %v1964 = vsub.s32 %v1961, %v1963
        %v1965 = vrot.slane %v1958, %v1964
        %v1966 = vcombine.low %v1940, %v1941
        %v1968 = vunpack.c.l.s4 1983009808
        %v1969 = vunpack.c.0.s8 %v1968
        %v1970 = vlaneseq
        %v1971 = vshrl.u32 %v1970, 7
        %v1972 = vsub.s32 %v1969, %v1971
        %v1973 = vrot.slane %v1966, %v1972
        %v1974 = vcombine.low %v1949, %v1957
        %v1975 = vcombine.high %v1949, %v1957
        %v1977 = vunpack.c.l.s4 1934713408
        %v1978 = vunpack.c.0.s8 %v1977
        %v1979 = vlaneseq
        %v1980 = vshrl.u32 %v1979, 7
        %v1981 = vsub.s32 %v1978, %v1980
        %v1982 = vrot.slane %v1974, %v1981
        %v1984 = vunpack.c.l.s4 1934713408
        %v1985 = vunpack.c.0.s8 %v1984
        %v1986 = vlaneseq
        %v1987 = vshrl.u32 %v1986, 7
        %v1988 = vsub.s32 %v1985, %v1987
        %v1989 = vrot.slane %v1975, %v1988
        %v1990 = vcombine.low %v1965, %v1973
        %v1991 = vcombine.high %v1965, %v1973
        %v1993 = vunpack.c.l.s4 1934713408
        %v1994 = vunpack.c.0.s8 %v1993
        %v1995 = vlaneseq
        %v1996 = vshrl.u32 %v1995, 7
        %v1997 = vsub.s32 %v1994, %v1996
        %v1998 = vrot.slane %v1990, %v1997
        %v2000 = vunpack.c.l.s4 1934713408
        %v2001 = vunpack.c.0.s8 %v2000
        %v2002 = vlaneseq
        %v2003 = vshrl.u32 %v2002, 7
        %v2004 = vsub.s32 %v2001, %v2003
        %v2005 = vrot.slane %v1991, %v2004
        %v2006 = vcombine.low %v1982, %v1998
        %v2007 = vcombine.high %v1982, %v1998
        %v2008 = vcombine.low %v1989, %v2005
        %v2009 = vcombine.high %v1989, %v2005
        %2011 = vrot.lane.b32.xlu0 %v2007, 8
        %v2012 = vpop.permute.xlu0 %2011
        %2015 = vrot.lane.b32.xlu0 %v2008, 16
        %v2016 = vpop.permute.xlu0 %2015
        %2019 = vrot.lane.b32.xlu0 %v2009, 24
        %v2020 = vpop.permute.xlu0 %2019
        %v2022 = vsel %vm1225, %v2006, %v2012
        %vm2023 = vcmask 130048
        %v2024 = vsel %vm2023, %v2022, %v2016
        %vm2025 = vcmask 195584
        %v2026 = vsel %vm2025, %v2024, %v2020
        %v2027 = vld [vmem:[%s4] sm:$0xff]
        %v2028 = vld [vmem:[%s4 + $0x8] sm:$0xff]
        %v2029 = vld [vmem:[%s4 + $0x10] sm:$0xff]
        %v2030 = vld [vmem:[%s4 + $0x18] sm:$0xff]
        %v2031 = vld [vmem:[%s5] sm:$0x1]
        %v2033 = vlaneseq
        %v2034 = vshrl.u32 %v2033, 7
        %v2035 = vsub.s32 0, %v2034
        %v2036 = vrot.slane %v2031, %v2035
        %v2039 = vsel %vm1000, %v2026, 0
        %2041 = vmatprep.subr.mxu0 0.0
        %2042 = vmatpush1.msra.mxu0 %v2027
        %2043 = vmatprep.subr.mxu0 0.0
        %2044 = vmatpush1.msra.mxu0 %v2028
        %2045 = vmatprep.subr.mxu0 0.0
        %2046 = vmatpush1.msra.mxu0 %v2029
        %2047 = vmatprep.subr.mxu0 0.0
        %2048 = vmatpush1.msra.mxu0 %v2030
        %2049 = vmatprep.subr.mxu0 0.0
        %2050 = vmatpush1.msra.mxu0 0.0
        %2051 = vmatprep.subr.mxu0 0.0
        %2052 = vmatpush1.msra.mxu0 0.0
        %2053 = vmatprep.subr.mxu0 0.0
        %2054 = vmatpush1.msra.mxu0 0.0
        %2055 = vmatprep.subr.mxu0 0.0
        %2056 = vmatpush1.msra.mxu0 0.0
        %2057 = vmatprep.subr.mxu0 0.0
        %2058 = vmatpush1.msra.mxu0 0.0
        %2059 = vmatprep.subr.mxu0 0.0
        %2060 = vmatpush1.msra.mxu0 0.0
        %2061 = vmatprep.subr.mxu0 0.0
        %2062 = vmatpush1.msra.mxu0 0.0
        %2063 = vmatprep.subr.mxu0 0.0
        %2064 = vmatpush1.msra.mxu0 0.0
        %2065 = vmatprep.subr.mxu0 0.0
        %2066 = vmatpush1.msra.mxu0 0.0
        %2067 = vmatprep.subr.mxu0 0.0
        %2068 = vmatpush1.msra.mxu0 0.0
        %2069 = vmatprep.subr.mxu0 0.0
        %2070 = vmatpush1.msra.mxu0 0.0
        %2071 = vmatprep.subr.mxu0 0.0
        %2072 = vmatpush1.msra.mxu0 0.0
        %2073 = vmatprep.subr.mxu0 0.0
        %2074 = vmatpush1.msra.mxu0 0.0
        %2075 = vmatprep.subr.mxu0 0.0
        %2076 = vmatpush1.msra.mxu0 0.0
        %2077 = vmatprep.subr.mxu0 0.0
        %2078 = vmatpush1.msra.mxu0 0.0
        %2079 = vmatprep.subr.mxu0 0.0
        %2080 = vmatpush1.msra.mxu0 0.0
        %2081 = vmatprep.subr.mxu0 0.0
        %2082 = vmatpush1.msra.mxu0 0.0
        %2083 = vmatprep.subr.mxu0 0.0
        %2084 = vmatpush1.msra.mxu0 0.0
        %2085 = vmatprep.subr.mxu0 0.0
        %2086 = vmatpush1.msra.mxu0 0.0
        %2087 = vmatprep.subr.mxu0 0.0
        %2088 = vmatpush1.msra.mxu0 0.0
        %2089 = vmatprep.subr.mxu0 0.0
        %2090 = vmatpush1.msra.mxu0 0.0
        %2091 = vmatprep.subr.mxu0 0.0
        %2092 = vmatpush1.msra.mxu0 0.0
        %2093 = vmatprep.subr.mxu0 0.0
        %2094 = vmatpush1.msra.mxu0 0.0
        %2095 = vmatprep.subr.mxu0 0.0
        %2096 = vmatpush1.msra.mxu0 0.0
        %2097 = vmatprep.subr.mxu0 0.0
        %2098 = vmatpush1.msra.mxu0 0.0
        %2099 = vmatprep.subr.mxu0 0.0
        %2100 = vmatpush1.msra.mxu0 0.0
        %2101 = vmatprep.subr.mxu0 0.0
        %2102 = vmatpush1.msra.mxu0 0.0
        %2103 = vmatprep.subr.mxu0 0.0
        %2104 = vmatpush1.msra.mxu0 0.0
        %2105 = vmatprep.mubr.f32.mxu0 0.0
        %2106 = vmatmul.mubr.f32.gmra.mrb[0].mxu0 %v2039
        %v2107 = vpop.f32.mrb[0].mxu0
        %v2108 = vadd.f32 %v2036, %v2107
        %v2109 = vpop.f32.mrb[0].mxu0
        %2110 = vdwg.mxu0
        %v2111 = vadd.f32 %v2108, %v1071
        %v2112 = vld [vmem:[%s6] sm:$0x1]
        %v2113 = vld [vmem:[%s7] sm:$0x1]
        %v2114 = vsel %vm1000, %v2111, 0.0
        %2115 = vadd.xlane.f32.xlu0 %v2114
        %v2116 = vpop.xlane.xlu0 %2115
        %v2117 = vrcp.pop 32.0
        %v2118 = vmul.f32 %v2116, %v2117
        %v2119 = vsub.f32 %v2111, %v2118
        %v2120 = vmul.f32 %v2119, %v2119
        %v2121 = vsel %vm1000, %v2120, 0.0
        %2122 = vadd.xlane.f32.xlu0 %v2121
        %v2123 = vpop.xlane.xlu0 %2122
        %v2124 = vmul.f32 %v2123, %v2117
        %v2125 = vadd.f32 %v2124, 1e-06
        %v2126 = vrsqrt.pop %v2125
        %v2127 = vmul.f32 %v2119, %v2126
        %v2129 = vlaneseq
        %v2130 = vshrl.u32 %v2129, 7
        %v2131 = vsub.s32 0, %v2130
        %v2132 = vrot.slane %v2112, %v2131
        %v2134 = vmul.f32 %v2127, %v2132
        %v2136 = vlaneseq
        %v2137 = vshrl.u32 %v2136, 7
        %v2138 = vsub.s32 0, %v2137
        %v2139 = vrot.slane %v2113, %v2138
        %v2141 = vadd.f32 %v2134, %v2139
        %v2142 = vld [vmem:[%s8] sm:$0xff]
        %v2143 = vld [vmem:[%s8 + $0x8] sm:$0xff]
        %v2144 = vld [vmem:[%s8 + $0x10] sm:$0xff]
        %v2145 = vld [vmem:[%s8 + $0x18] sm:$0xff]
        %v2146 = vld [vmem:[%s9] sm:$0x1]
        %v2148 = vlaneseq
        %v2149 = vshrl.u32 %v2148, 7
        %v2150 = vsub.s32 0, %v2149
        %v2151 = vrot.slane %v2146, %v2150
        %v2154 = vsel %vm1000, %v2141, 0
        %2156 = vmatprep.subr.mxu0 0.0
        %2157 = vmatpush1.msra.mxu0 %v2142
        %2158 = vmatprep.subr.mxu0 0.0
        %2159 = vmatpush1.msra.mxu0 %v2143
        %2160 = vmatprep.subr.mxu0 0.0
        %2161 = vmatpush1.msra.mxu0 %v2144
        %2162 = vmatprep.subr.mxu0 0.0
        %2163 = vmatpush1.msra.mxu0 %v2145
        %2164 = vmatprep.subr.mxu0 0.0
        %2165 = vmatpush1.msra.mxu0 0.0
        %2166 = vmatprep.subr.mxu0 0.0
        %2167 = vmatpush1.msra.mxu0 0.0
        %2168 = vmatprep.subr.mxu0 0.0
        %2169 = vmatpush1.msra.mxu0 0.0
        %2170 = vmatprep.subr.mxu0 0.0
        %2171 = vmatpush1.msra.mxu0 0.0
        %2172 = vmatprep.subr.mxu0 0.0
        %2173 = vmatpush1.msra.mxu0 0.0
        %2174 = vmatprep.subr.mxu0 0.0
        %2175 = vmatpush1.msra.mxu0 0.0
        %2176 = vmatprep.subr.mxu0 0.0
        %2177 = vmatpush1.msra.mxu0 0.0
        %2178 = vmatprep.subr.mxu0 0.0
        %2179 = vmatpush1.msra.mxu0 0.0
        %2180 = vmatprep.subr.mxu0 0.0
        %2181 = vmatpush1.msra.mxu0 0.0
        %2182 = vmatprep.subr.mxu0 0.0
        %2183 = vmatpush1.msra.mxu0 0.0
        %2184 = vmatprep.subr.mxu0 0.0
        %2185 = vmatpush1.msra.mxu0 0.0
        %2186 = vmatprep.subr.mxu0 0.0
        %2187 = vmatpush1.msra.mxu0 0.0
        %2188 = vmatprep.subr.mxu0 0.0
        %2189 = vmatpush1.msra.mxu0 0.0
        %2190 = vmatprep.subr.mxu0 0.0
        %2191 = vmatpush1.msra.mxu0 0.0
        %2192 = vmatprep.subr.mxu0 0.0
        %2193 = vmatpush1.msra.mxu0 0.0
        %2194 = vmatprep.subr.mxu0 0.0
        %2195 = vmatpush1.msra.mxu0 0.0
        %2196 = vmatprep.subr.mxu0 0.0
        %2197 = vmatpush1.msra.mxu0 0.0
        %2198 = vmatprep.subr.mxu0 0.0
        %2199 = vmatpush1.msra.mxu0 0.0
        %2200 = vmatprep.subr.mxu0 0.0
        %2201 = vmatpush1.msra.mxu0 0.0
        %2202 = vmatprep.subr.mxu0 0.0
        %2203 = vmatpush1.msra.mxu0 0.0
        %2204 = vmatprep.subr.mxu0 0.0
        %2205 = vmatpush1.msra.mxu0 0.0
        %2206 = vmatprep.subr.mxu0 0.0
        %2207 = vmatpush1.msra.mxu0 0.0
        %2208 = vmatprep.subr.mxu0 0.0
        %2209 = vmatpush1.msra.mxu0 0.0
        %2210 = vmatprep.subr.mxu0 0.0
        %2211 = vmatpush1.msra.mxu0 0.0
        %2212 = vmatprep.subr.mxu0 0.0
        %2213 = vmatpush1.msra.mxu0 0.0
        %2214 = vmatprep.subr.mxu0 0.0
        %2215 = vmatpush1.msra.mxu0 0.0
        %2216 = vmatprep.subr.mxu0 0.0
        %2217 = vmatpush1.msra.mxu0 0.0
        %2218 = vmatprep.subr.mxu0 0.0
        %2219 = vmatpush1.msra.mxu0 0.0
        %2220 = vmatprep.mubr.f32.mxu0 0.0
        %2221 = vmatmul.mubr.f32.gmra.mrb[0].mxu0 %v2154
        %v2222 = vpop.f32.mrb[0].mxu0
        %v2223 = vadd.f32 %v2151, %v2222
        %v2224 = vpop.f32.mrb[0].mxu0
        %2225 = vdwg.mxu0
        %v2226 = vmax.f32 %v2223, 0.0
        %v2227 = vld [vmem:[%s10] sm:$0xff]
        %v2228 = vld [vmem:[%s10 + $0x8] sm:$0xff]
        %v2229 = vld [vmem:[%s10 + $0x10] sm:$0xff]
        %v2230 = vld [vmem:[%s10 + $0x18] sm:$0xff]
        %v2231 = vld [vmem:[%s10 + $0x20] sm:$0xff]
        %v2232 = vld [vmem:[%s10 + $0x28] sm:$0xff]
        %v2233 = vld [vmem:[%s10 + $0x30] sm:$0xff]
        %v2234 = vld [vmem:[%s10 + $0x38] sm:$0xff]
        %v2235 = vld [vmem:[%s10 + $0x40] sm:$0xff]
        %v2236 = vld [vmem:[%s10 + $0x48] sm:$0xff]
        %v2237 = vld [vmem:[%s10 + $0x50] sm:$0xff]
        %v2238 = vld [vmem:[%s10 + $0x58] sm:$0xff]
        %v2239 = vld [vmem:[%s10 + $0x60] sm:$0xff]
        %v2240 = vld [vmem:[%s10 + $0x68] sm:$0xff]
        %v2241 = vld [vmem:[%s10 + $0x70] sm:$0xff]
        %v2242 = vld [vmem:[%s10 + $0x78] sm:$0xff]
        %v2243 = vld [vmem:[%s11] sm:$0x1]
        %v2245 = vlaneseq
        %v2246 = vshrl.u32 %v2245, 7
        %v2247 = vsub.s32 0, %v2246
        %v2248 = vrot.slane %v2243, %v2247
        %2250 = vmatprep.subr.mxu0 0.0
        %2251 = vmatpush1.msra.mxu0 %v2227
        %2252 = vmatprep.subr.mxu0 0.0
        %2253 = vmatpush1.msra.mxu0 %v2228
        %2254 = vmatprep.subr.mxu0 0.0
        %2255 = vmatpush1.msra.mxu0 %v2229
        %2256 = vmatprep.subr.mxu0 0.0
        %2257 = vmatpush1.msra.mxu0 %v2230
        %2258 = vmatprep.subr.mxu0 0.0
        %2259 = vmatpush1.msra.mxu0 %v2231
        %2260 = vmatprep.subr.mxu0 0.0
        %2261 = vmatpush1.msra.mxu0 %v2232
        %2262 = vmatprep.subr.mxu0 0.0
        %2263 = vmatpush1.msra.mxu0 %v2233
        %2264 = vmatprep.subr.mxu0 0.0
        %2265 = vmatpush1.msra.mxu0 %v2234
        %2266 = vmatprep.subr.mxu0 0.0
        %2267 = vmatpush1.msra.mxu0 %v2235
        %2268 = vmatprep.subr.mxu0 0.0
        %2269 = vmatpush1.msra.mxu0 %v2236
        %2270 = vmatprep.subr.mxu0 0.0
        %2271 = vmatpush1.msra.mxu0 %v2237
        %2272 = vmatprep.subr.mxu0 0.0
        %2273 = vmatpush1.msra.mxu0 %v2238
        %2274 = vmatprep.subr.mxu0 0.0
        %2275 = vmatpush1.msra.mxu0 %v2239
        %2276 = vmatprep.subr.mxu0 0.0
        %2277 = vmatpush1.msra.mxu0 %v2240
        %2278 = vmatprep.subr.mxu0 0.0
        %2279 = vmatpush1.msra.mxu0 %v2241
        %2280 = vmatprep.subr.mxu0 0.0
        %2281 = vmatpush1.msra.mxu0 %v2242
        %2282 = vmatprep.subr.mxu0 0.0
        %2283 = vmatpush1.msra.mxu0 0.0
        %2284 = vmatprep.subr.mxu0 0.0
        %2285 = vmatpush1.msra.mxu0 0.0
        %2286 = vmatprep.subr.mxu0 0.0
        %2287 = vmatpush1.msra.mxu0 0.0
        %2288 = vmatprep.subr.mxu0 0.0
        %2289 = vmatpush1.msra.mxu0 0.0
        %2290 = vmatprep.subr.mxu0 0.0
        %2291 = vmatpush1.msra.mxu0 0.0
        %2292 = vmatprep.subr.mxu0 0.0
        %2293 = vmatpush1.msra.mxu0 0.0
        %2294 = vmatprep.subr.mxu0 0.0
        %2295 = vmatpush1.msra.mxu0 0.0
        %2296 = vmatprep.subr.mxu0 0.0
        %2297 = vmatpush1.msra.mxu0 0.0
        %2298 = vmatprep.subr.mxu0 0.0
        %2299 = vmatpush1.msra.mxu0 0.0
        %2300 = vmatprep.subr.mxu0 0.0
        %2301 = vmatpush1.msra.mxu0 0.0
        %2302 = vmatprep.subr.mxu0 0.0
        %2303 = vmatpush1.msra.mxu0 0.0
        %2304 = vmatprep.subr.mxu0 0.0
        %2305 = vmatpush1.msra.mxu0 0.0
        %2306 = vmatprep.subr.mxu0 0.0
        %2307 = vmatpush1.msra.mxu0 0.0
        %2308 = vmatprep.subr.mxu0 0.0
        %2309 = vmatpush1.msra.mxu0 0.0
        %2310 = vmatprep.subr.mxu0 0.0
        %2311 = vmatpush1.msra.mxu0 0.0
        %2312 = vmatprep.subr.mxu0 0.0
        %2313 = vmatpush1.msra.mxu0 0.0
        %2314 = vmatprep.mubr.f32.mxu0 0.0
        %2315 = vmatmul.mubr.f32.gmra.mrb[0].mxu0 %v2226
        %v2316 = vpop.f32.mrb[0].mxu0
        %v2317 = vadd.f32 %v2248, %v2316
        %v2318 = vpop.f32.mrb[0].mxu0
        %2319 = vdwg.mxu0
        %v2320 = vadd.f32 %v2317, %v2141
        %v2321 = vld [vmem:[%s12] sm:$0x1]
        %v2322 = vld [vmem:[%s13] sm:$0x1]
        %v2323 = vsel %vm1000, %v2320, 0.0
        %2324 = vadd.xlane.f32.xlu0 %v2323
        %v2325 = vpop.xlane.xlu0 %2324
        %v2326 = vmul.f32 %v2325, %v2117
        %v2327 = vsub.f32 %v2320, %v2326
        %v2328 = vmul.f32 %v2327, %v2327
        %v2329 = vsel %vm1000, %v2328, 0.0
        %2330 = vadd.xlane.f32.xlu0 %v2329
        %v2331 = vpop.xlane.xlu0 %2330
        %v2332 = vmul.f32 %v2331, %v2117
        %v2333 = vadd.f32 %v2332, 1e-06
        %v2334 = vrsqrt.pop %v2333
        %v2335 = vmul.f32 %v2327, %v2334
        %v2337 = vlaneseq
        %v2338 = vshrl.u32 %v2337, 7
        %v2339 = vsub.s32 0, %v2338
        %v2340 = vrot.slane %v2321, %v2339
        %v2342 = vmul.f32 %v2335, %v2340
        %v2344 = vlaneseq
        %v2345 = vshrl.u32 %v2344, 7
        %v2346 = vsub.s32 0, %v2345
        %v2347 = vrot.slane %v2322, %v2346
        %v2349 = vadd.f32 %v2342, %v2347
        %2350 = vst.msk [vmem:[%s529] sm:$0xff] %vm1000, %v2349
        %s2351 = sand.u32 %s357, 1
        %s2352 = scalar_lea.sflag [#allocation6], %s2351
        %s2353 = sand.u32 %s357, 1
        %s2354 = smul.addr %s2353, 8
        %s2355 = scalar_lea.vmem [#allocation7], %s2354
        %s2356 = sand.u32 %s385, 1
        %s2357 = scalar_lea.sflag [#allocation9], %s2356
        %s2358 = sand.u32 %s385, 1
        %s2359 = smul.addr %s2358, 32
        %s2360 = scalar_lea.vmem [#allocation8], %s2359
        // Predicated region
        $region85: #{tpu_custom_call.1} parent=75 // pred_check
          %p2361 = pneg %p367
        $region86: #{tpu_custom_call.1} parent=75 // pred_check_branch
          %2363 = sbr.rel (%p2361) target = $region88
        $region87: #{tpu_custom_call.1} parent=75 // pred_region
          %s2365 = ssub.s32 128, 128
          %2366 = vsyncadd %s2352, %s2365
          %s2367 = sadd.s32 %s41, %s40
          %s2368 = smul.addr %s2367, 128
          %s2369 = scalar_lea.hbm %s14, %s2368
          %s2371 = sshll.u32 %s2355, 4
          %s2372 = int_to_ptr.vmem [resolvable:$true] %s2371
          %2374 = dma.vmem_to_hbm [thread:$0]  %s2372, 128, %s2369, %s2352
        $region88: #{tpu_custom_call.1} parent=75 // pred_fallthru
          _
        // Predicated region
        $region89: #{tpu_custom_call.1} parent=75 // pred_check
          %p2375 = pneg %p395
        $region90: #{tpu_custom_call.1} parent=75 // pred_check_branch
          %2377 = sbr.rel (%p2375) target = $region92
        $region91: #{tpu_custom_call.1} parent=75 // pred_region
          %s2379 = ssub.s32 512, 512
          %2380 = vsyncadd %s2357, %s2379
          %s2381 = smul.addr %s40, 4
          %s2382 = sadd.s32 %s41, %s2381
          %s2383 = smul.addr %s2382, 128
          %s2384 = scalar_lea.hbm %s15, %s2383
          %s2385 = sshll.u32 %s2360, 4
          %s2386 = int_to_ptr.vmem [resolvable:$true] %s2385
          %2391 = dma.vmem_to_hbm [thread:$0]  %s2386, 512, %s2384, %s2357, 128, 128, 8
        $region92: #{tpu_custom_call.1} parent=75 // pred_fallthru
          _
      $region76: #{tpu_custom_call.1} parent=5 // pred_fallthru
        _
      %p2392 = scmp.le.s32.totalorder 2, %s31
      // Predicated region
      $region93: #{tpu_custom_call.1} parent=5 // pred_check
        %p2393 = pneg %p2392
      $region94: #{tpu_custom_call.1} parent=5 // pred_check_branch
        %2395 = sbr.rel (%p2393) target = $region96
      $region95: #{tpu_custom_call.1} parent=5 // pred_region
        %s2396 = ssub.s32 %s31, 2
        // Predicated region
        $region97: #{tpu_custom_call.1} parent=95 // pred_check
          %p2397 = pneg %p373
        $region98: #{tpu_custom_call.1} parent=95 // pred_check_branch
          %2399 = sbr.rel (%p2397) target = $region100
        $region99: #{tpu_custom_call.1} parent=95 // pred_region
          %s2400 = sand.u32 %s358, 1
          %s2401 = scalar_lea.sflag [#allocation6], %s2400
          %s2402 = sand.u32 %s358, 1
          %s2403 = smul.addr %s2402, 8
          %s2404 = scalar_lea.vmem [#allocation7], %s2403
          %2405 = dma.done %s2401, 128
        $region100: #{tpu_custom_call.1} parent=95 // pred_fallthru
          _
        // Predicated region
        $region101: #{tpu_custom_call.1} parent=95 // pred_check
          %p2406 = pneg %p401
        $region102: #{tpu_custom_call.1} parent=95 // pred_check_branch
          %2408 = sbr.rel (%p2406) target = $region104
        $region103: #{tpu_custom_call.1} parent=95 // pred_region
          %s2409 = sand.u32 %s386, 1
          %s2410 = scalar_lea.sflag [#allocation9], %s2409
          %s2411 = sand.u32 %s386, 1
          %s2412 = smul.addr %s2411, 32
          %s2413 = scalar_lea.vmem [#allocation8], %s2412
          %2414 = dma.done %s2410, 512
        $region104: #{tpu_custom_call.1} parent=95 // pred_fallthru
          _
      $region96: #{tpu_custom_call.1} parent=5 // pred_fallthru
        _
    $region6: #{tpu_custom_call.1} parent=1 // loop_footer
      %s35 = sadd.s32 1, %s31
    $region7: #{tpu_custom_call.1} parent=1 // loop_footer_branch
      %30 = sbr.rel target = $region3
    $region8: #{tpu_custom_call.1} parent=1 // loop_exit
      _
    %2415 = vsyncpa [#allocation5], 1
    %s2416 = scalar_lea.sflag [#allocation5], 1
    %2417 = vsyncpa %s2416, 1
    %2418 = vsyncpa [#allocation6], 1
    %s2419 = scalar_lea.sflag [#allocation6], 1
    %2420 = vsyncpa %s2419, 1
    %2421 = vsyncpa [#allocation9], 1
    %s2422 = scalar_lea.sflag [#allocation9], 1
    %2423 = vsyncpa %s2422, 1

// kernel: tpu_custom_call.1
$region0: #{tpu_custom_call.1}
  #allocation0 [shape = 'u32[]', space=smem, size = 0x4, offset = 0x4, fixed_abs, tag = 'smem constant byte address 0x4 - core index']
  #allocation1 [shape = 'u32[144,128]{1,0:T(1,128)}', space=vmem, size = 0x12000, scoped, tag = 'internal scratch']
  #allocation2 [shape = 'f32[4,8,8]{2,1,0:T(8,128)}', space=vmem, size = 0x4000, scoped, tag = 'scratch operand']
  #allocation3 [shape = 'f32[4,8,8]{2,1,0:T(8,128)}', space=vmem, size = 0x4000, scoped, tag = 'scratch operand']
  %s0 = inlined_call_operand.hbm [shape: f32[2,8,32], index: 0, kind: input, shape index: {}]
  %s1 = inlined_call_operand.vmem [shape: f32[32,32], index: 1, kind: input, shape index: {}]
  %s2 = inlined_call_operand.vmem [shape: f32[32,32], index: 2, kind: input, shape index: {}]
  %s3 = inlined_call_operand.vmem [shape: f32[32,32], index: 3, kind: input, shape index: {}]
  %s4 = inlined_call_operand.vmem [shape: f32[32,32], index: 4, kind: input, shape index: {}]
  %s5 = inlined_call_operand.vmem [shape: f32[1,32], index: 5, kind: input, shape index: {}]
  %s6 = inlined_call_operand.vmem [shape: f32[1,32], index: 6, kind: input, shape index: {}]
  %s7 = inlined_call_operand.vmem [shape: f32[1,32], index: 7, kind: input, shape index: {}]
  %s8 = inlined_call_operand.vmem [shape: f32[32,128], index: 8, kind: input, shape index: {}]
  %s9 = inlined_call_operand.vmem [shape: f32[1,128], index: 9, kind: input, shape index: {}]
  %s10 = inlined_call_operand.vmem [shape: f32[128,32], index: 10, kind: input, shape index: {}]
  %s11 = inlined_call_operand.vmem [shape: f32[1,32], index: 11, kind: input, shape index: {}]
  %s12 = inlined_call_operand.vmem [shape: f32[1,32], index: 12, kind: input, shape index: {}]
  %s13 = inlined_call_operand.vmem [shape: f32[1,32], index: 13, kind: input, shape index: {}]
  %s14 = inlined_call_operand.hbm [shape: f32[2,8,32], index: 14, kind: output, shape index: {0}]
  %s15 = inlined_call_operand.hbm [shape: f32[2,4,8,8], index: 15, kind: output, shape index: {1}]
  %16 = xla_tuple %s14, %s15
  %s17 = sld [smem:[#allocation0]]
  $region105: #{tpu_custom_call.1} parent=0
    _
  %s19 = ssub.s32 1, %s17
  %s20 = scalar_select 0, %s19, %s17
  $region1: #{tpu_custom_call.1} parent=0
    #allocation4 [shape = 'u8[8192]{0}', space=vmem, size = 0x2000, scoped, tag = 'input window, operand 0']
    #allocation5 [shape = 's32[2]{0}', space=sflag, size = 0x8, scoped, tag = 'scoped memory for tpu_custom_call.1']
    #allocation6 [shape = 's32[2]{0}', space=sflag, size = 0x8, scoped, tag = 'scoped memory for tpu_custom_call.1']
    #allocation7 [shape = 'u8[8192]{0}', space=vmem, size = 0x2000, scoped, tag = 'output window, operand 0']
    #allocation8 [shape = 'u8[32768]{0}', space=vmem, size = 0x8000, scoped, tag = 'output window, operand 1']
    #allocation9 [shape = 's32[2]{0}', space=sflag, size = 0x8, scoped, tag = 'scoped memory for tpu_custom_call.1']
    %21 = vsyncpa [#allocation5], 0
    %s22 = scalar_lea.sflag [#allocation5], 1
    %23 = vsyncpa %s22, 0
    %24 = vsyncpa [#allocation6], 0
    %s25 = scalar_lea.sflag [#allocation6], 1
    %26 = vsyncpa %s25, 0
    %27 = vsyncpa [#allocation9], 0
    %s28 = scalar_lea.sflag [#allocation9], 1
    %29 = vsyncpa %s28, 0
    loop: start=0, step=1, limit=4
    $region2: #{tpu_custom_call.1} parent=1 // loop_pre_header
      _
    $region3: #{tpu_custom_call.1} parent=1 // loop_header
      %s31 = sphi 0, %s35
      %p32 = scmp.ge.s32.totalorder %s31, 4
      %s38 = sphi 0, %s50
      %s39 = sphi 0, %s46
      %s40 = sphi 0, %s38
      %s41 = sphi 0, %s39
      %s42 = sphi 0, %s40
      %s43 = sphi 0, %s41
      %s53 = sphi 0, %s55
      %s56 = sphi 0, %s53
      %s57 = sphi 0, %s56
      %s73 = sphi 0, %s57
      %s77 = sphi 0, %s77
      %s79 = sphi 0, %s77
      %s80 = sphi 0, %s79
      %s94 = sphi 0, %s80
      %s98 = sphi 0, %s98
      %s100 = sphi 0, %s98
      %s101 = sphi 0, %s100
      %s115 = sphi 0, %s101
      %s119 = sphi 0, %s119
      %s121 = sphi 0, %s119
      %s122 = sphi 0, %s121
      %s136 = sphi 0, %s122
      %s140 = sphi 0, %s140
      %s142 = sphi 0, %s140
      %s143 = sphi 0, %s142
      %s157 = sphi 0, %s143
      %s161 = sphi 0, %s161
      %s163 = sphi 0, %s161
      %s164 = sphi 0, %s163
      %s178 = sphi 0, %s164
      %s182 = sphi 0, %s182
      %s184 = sphi 0, %s182
      %s185 = sphi 0, %s184
      %s199 = sphi 0, %s185
      %s203 = sphi 0, %s203
      %s205 = sphi 0, %s203
      %s206 = sphi 0, %s205
      %s220 = sphi 0, %s206
      %s224 = sphi 0, %s224
      %s226 = sphi 0, %s224
      %s227 = sphi 0, %s226
      %s241 = sphi 0, %s227
      %s245 = sphi 0, %s245
      %s247 = sphi 0, %s245
      %s248 = sphi 0, %s247
      %s262 = sphi 0, %s248
      %s266 = sphi 0, %s266
      %s268 = sphi 0, %s266
      %s269 = sphi 0, %s268
      %s283 = sphi 0, %s269
      %s287 = sphi 0, %s287
      %s289 = sphi 0, %s287
      %s290 = sphi 0, %s289
      %s304 = sphi 0, %s290
      %s308 = sphi 0, %s308
      %s310 = sphi 0, %s308
      %s311 = sphi 0, %s310
      %s325 = sphi 0, %s311
      %s329 = sphi 0, %s329
      %s331 = sphi 0, %s329
      %s332 = sphi 0, %s331
      %s346 = sphi 0, %s332
      %s354 = sphi 0, %s356
      %s357 = sphi 0, %s354
      %s358 = sphi 0, %s357
      %s374 = sphi 0, %s358
      %s382 = sphi 0, %s384
      %s385 = sphi 0, %s382
      %s386 = sphi 0, %s385
      %s402 = sphi 0, %s386
    $region4: #{tpu_custom_call.1} parent=1 // loop_header_branch
      %34 = sbr.rel (%p32) target = $region8
    $region5: #{tpu_custom_call.1} parent=1 // loop_body
      %s36 = ssub.s32 %s31, 1
      %s37 = ssub.s32 %s31, 2
      %s44 = sadd.s32 1, %s39
      %p45 = scmp.ge.s32.totalorder %s44, 1
      %s46 = scalar_select %p45, 0, %s44
      %s47 = sadd.s32 1, %s38
      %s48 = scalar_select %p45, %s47, %s38
      %p49 = scmp.ge.s32.totalorder %s48, 2
      %s50 = scalar_select %p49, 0, %s48
      %s51 = ssub.s32 %s38, %s50
      %p52 = scmp.eq.s32.totalorder %s51, 0
      %s54 = sadd.s32 %s53, 1
      %s55 = scalar_select %p52, %s53, %s54
      %p58 = pneg %p52
      %p59 = scmp.eq.s32.totalorder %s31, 1
      %p60 = por %p58, %p59
      %p61 = scmp.ne.s32.totalorder %s53, %s56
      %p62 = scmp.eq.s32.totalorder %s31, 0
      %p63 = por %p61, %p62
      %p64 = scmp.ne.s32.totalorder %s53, %s56
      %p65 = scmp.eq.s32.totalorder %s36, 1
      %p66 = por %p64, %p65
      %p67 = scmp.ne.s32.totalorder %s56, %s57
      %p68 = scmp.eq.s32.totalorder %s36, 0
      %p69 = por %p67, %p68
      %p70 = scmp.ne.s32.totalorder %s56, %s57
      %p71 = scmp.eq.s32.totalorder %s37, 1
      %p72 = por %p70, %p71
      %p74 = scmp.ne.s32.totalorder %s57, %s73
      %p75 = scmp.eq.s32.totalorder %s37, 0
      %p76 = por %p74, %p75
      %s78 = sadd.s32 %s77, 1
      %p81 = scmp.eq.s32.totalorder %s31, 1
      %p82 = scmp.ne.s32.totalorder %s77, %s79
      %p83 = scmp.eq.s32.totalorder %s31, 0
      %p84 = por %p82, %p83
      %p85 = scmp.ne.s32.totalorder %s77, %s79
      %p86 = scmp.eq.s32.totalorder %s36, 1
      %p87 = por %p85, %p86
      %p88 = scmp.ne.s32.totalorder %s79, %s80
      %p89 = scmp.eq.s32.totalorder %s36, 0
      %p90 = por %p88, %p89
      %p91 = scmp.ne.s32.totalorder %s79, %s80
      %p92 = scmp.eq.s32.totalorder %s37, 1
      %p93 = por %p91, %p92
      %p95 = scmp.ne.s32.totalorder %s80, %s94
      %p96 = scmp.eq.s32.totalorder %s37, 0
      %p97 = por %p95, %p96
      %s99 = sadd.s32 %s98, 1
      %p102 = scmp.eq.s32.totalorder %s31, 1
      %p103 = scmp.ne.s32.totalorder %s98, %s100
      %p104 = scmp.eq.s32.totalorder %s31, 0
      %p105 = por %p103, %p104
      %p106 = scmp.ne.s32.totalorder %s98, %s100
      %p107 = scmp.eq.s32.totalorder %s36, 1
      %p108 = por %p106, %p107
      %p109 = scmp.ne.s32.totalorder %s100, %s101
      %p110 = scmp.eq.s32.totalorder %s36, 0
      %p111 = por %p109, %p110
      %p112 = scmp.ne.s32.totalorder %s100, %s101
      %p113 = scmp.eq.s32.totalorder %s37, 1
      %p114 = por %p112, %p113
      %p116 = scmp.ne.s32.totalorder %s101, %s115
      %p117 = scmp.eq.s32.totalorder %s37, 0
      %p118 = por %p116, %p117
      %s120 = sadd.s32 %s119, 1
      %p123 = scmp.eq.s32.totalorder %s31, 1
      %p124 = scmp.ne.s32.totalorder %s119, %s121
      %p125 = scmp.eq.s32.totalorder %s31, 0
      %p126 = por %p124, %p125
      %p127 = scmp.ne.s32.totalorder %s119, %s121
      %p128 = scmp.eq.s32.totalorder %s36, 1
      %p129 = por %p127, %p128
      %p130 = scmp.ne.s32.totalorder %s121, %s122
      %p131 = scmp.eq.s32.totalorder %s36, 0
      %p132 = por %p130, %p131
      %p133 = scmp.ne.s32.totalorder %s121, %s122
      %p134 = scmp.eq.s32.totalorder %s37, 1
      %p135 = por %p133, %p134
      %p137 = scmp.ne.s32.totalorder %s122, %s136
      %p138 = scmp.eq.s32.totalorder %s37, 0
      %p139 = por %p137, %p138
      %s141 = sadd.s32 %s140, 1
      %p144 = scmp.eq.s32.totalorder %s31, 1
      %p145 = scmp.ne.s32.totalorder %s140, %s142
      %p146 = scmp.eq.s32.totalorder %s31, 0
      %p147 = por %p145, %p146
      %p148 = scmp.ne.s32.totalorder %s140, %s142
      %p149 = scmp.eq.s32.totalorder %s36, 1
      %p150 = por %p148, %p149
      %p151 = scmp.ne.s32.totalorder %s142, %s143
      %p152 = scmp.eq.s32.totalorder %s36, 0
      %p153 = por %p151, %p152
      %p154 = scmp.ne.s32.totalorder %s142, %s143
      %p155 = scmp.eq.s32.totalorder %s37, 1
      %p156 = por %p154, %p155
      %p158 = scmp.ne.s32.totalorder %s143, %s157
      %p159 = scmp.eq.s32.totalorder %s37, 0
      %p160 = por %p158, %p159
      %s162 = sadd.s32 %s161, 1
      %p165 = scmp.eq.s32.totalorder %s31, 1
      %p166 = scmp.ne.s32.totalorder %s161, %s163
      %p167 = scmp.eq.s32.totalorder %s31, 0
      %p168 = por %p166, %p167
      %p169 = scmp.ne.s32.totalorder %s161, %s163
      %p170 = scmp.eq.s32.totalorder %s36, 1
      %p171 = por %p169, %p170
      %p172 = scmp.ne.s32.totalorder %s163, %s164
      %p173 = scmp.eq.s32.totalorder %s36, 0
      %p174 = por %p172, %p173
      %p175 = scmp.ne.s32.totalorder %s163, %s164
      %p176 = scmp.eq.s32.totalorder %s37, 1
      %p177 = por %p175, %p176
      %p179 = scmp.ne.s32.totalorder %s164, %s178
      %p180 = scmp.eq.s32.totalorder %s37, 0
      %p181 = por %p179, %p180
      %s183 = sadd.s32 %s182, 1
      %p186 = scmp.eq.s32.totalorder %s31, 1
      %p187 = scmp.ne.s32.totalorder %s182, %s184
      %p188 = scmp.eq.s32.totalorder %s31, 0
      %p189 = por %p187, %p188
      %p190 = scmp.ne.s32.totalorder %s182, %s184
      %p191 = scmp.eq.s32.totalorder %s36, 1
      %p192 = por %p190, %p191
      %p193 = scmp.ne.s32.totalorder %s184, %s185
      %p194 = scmp.eq.s32.totalorder %s36, 0
      %p195 = por %p193, %p194
      %p196 = scmp.ne.s32.totalorder %s184, %s185
      %p197 = scmp.eq.s32.totalorder %s37, 1
      %p198 = por %p196, %p197
      %p200 = scmp.ne.s32.totalorder %s185, %s199
      %p201 = scmp.eq.s32.totalorder %s37, 0
      %p202 = por %p200, %p201
      %s204 = sadd.s32 %s203, 1
      %p207 = scmp.eq.s32.totalorder %s31, 1
      %p208 = scmp.ne.s32.totalorder %s203, %s205
      %p209 = scmp.eq.s32.totalorder %s31, 0
      %p210 = por %p208, %p209
      %p211 = scmp.ne.s32.totalorder %s203, %s205
      %p212 = scmp.eq.s32.totalorder %s36, 1
      %p213 = por %p211, %p212
      %p214 = scmp.ne.s32.totalorder %s205, %s206
      %p215 = scmp.eq.s32.totalorder %s36, 0
      %p216 = por %p214, %p215
      %p217 = scmp.ne.s32.totalorder %s205, %s206
      %p218 = scmp.eq.s32.totalorder %s37, 1
      %p219 = por %p217, %p218
      %p221 = scmp.ne.s32.totalorder %s206, %s220
      %p222 = scmp.eq.s32.totalorder %s37, 0
      %p223 = por %p221, %p222
      %s225 = sadd.s32 %s224, 1
      %p228 = scmp.eq.s32.totalorder %s31, 1
      %p229 = scmp.ne.s32.totalorder %s224, %s226
      %p230 = scmp.eq.s32.totalorder %s31, 0
      %p231 = por %p229, %p230
      %p232 = scmp.ne.s32.totalorder %s224, %s226
      %p233 = scmp.eq.s32.totalorder %s36, 1
      %p234 = por %p232, %p233
      %p235 = scmp.ne.s32.totalorder %s226, %s227
      %p236 = scmp.eq.s32.totalorder %s36, 0
      %p237 = por %p235, %p236
      %p238 = scmp.ne.s32.totalorder %s226, %s227
      %p239 = scmp.eq.s32.totalorder %s37, 1
      %p240 = por %p238, %p239
      %p242 = scmp.ne.s32.totalorder %s227, %s241
      %p243 = scmp.eq.s32.totalorder %s37, 0
      %p244 = por %p242, %p243
      %s246 = sadd.s32 %s245, 1
      %p249 = scmp.eq.s32.totalorder %s31, 1
      %p250 = scmp.ne.s32.totalorder %s245, %s247
      %p251 = scmp.eq.s32.totalorder %s31, 0
      %p252 = por %p250, %p251
      %p253 = scmp.ne.s32.totalorder %s245, %s247
      %p254 = scmp.eq.s32.totalorder %s36, 1
      %p255 = por %p253, %p254
      %p256 = scmp.ne.s32.totalorder %s247, %s248
      %p257 = scmp.eq.s32.totalorder %s36, 0
      %p258 = por %p256, %p257
      %p259 = scmp.ne.s32.totalorder %s247, %s248
      %p260 = scmp.eq.s32.totalorder %s37, 1
      %p261 = por %p259, %p260
      %p263 = scmp.ne.s32.totalorder %s248, %s262
      %p264 = scmp.eq.s32.totalorder %s37, 0
      %p265 = por %p263, %p264
      %s267 = sadd.s32 %s266, 1
      %p270 = scmp.eq.s32.totalorder %s31, 1
      %p271 = scmp.ne.s32.totalorder %s266, %s268
      %p272 = scmp.eq.s32.totalorder %s31, 0
      %p273 = por %p271, %p272
      %p274 = scmp.ne.s32.totalorder %s266, %s268
      %p275 = scmp.eq.s32.totalorder %s36, 1
      %p276 = por %p274, %p275
      %p277 = scmp.ne.s32.totalorder %s268, %s269
      %p278 = scmp.eq.s32.totalorder %s36, 0
      %p279 = por %p277, %p278
      %p280 = scmp.ne.s32.totalorder %s268, %s269
      %p281 = scmp.eq.s32.totalorder %s37, 1
      %p282 = por %p280, %p281
      %p284 = scmp.ne.s32.totalorder %s269, %s283
      %p285 = scmp.eq.s32.totalorder %s37, 0
      %p286 = por %p284, %p285
      %s288 = sadd.s32 %s287, 1
      %p291 = scmp.eq.s32.totalorder %s31, 1
      %p292 = scmp.ne.s32.totalorder %s287, %s289
      %p293 = scmp.eq.s32.totalorder %s31, 0
      %p294 = por %p292, %p293
      %p295 = scmp.ne.s32.totalorder %s287, %s289
      %p296 = scmp.eq.s32.totalorder %s36, 1
      %p297 = por %p295, %p296
      %p298 = scmp.ne.s32.totalorder %s289, %s290
      %p299 = scmp.eq.s32.totalorder %s36, 0
      %p300 = por %p298, %p299
      %p301 = scmp.ne.s32.totalorder %s289, %s290
      %p302 = scmp.eq.s32.totalorder %s37, 1
      %p303 = por %p301, %p302
      %p305 = scmp.ne.s32.totalorder %s290, %s304
      %p306 = scmp.eq.s32.totalorder %s37, 0
      %p307 = por %p305, %p306
      %s309 = sadd.s32 %s308, 1
      %p312 = scmp.eq.s32.totalorder %s31, 1
      %p313 = scmp.ne.s32.totalorder %s308, %s310
      %p314 = scmp.eq.s32.totalorder %s31, 0
      %p315 = por %p313, %p314
      %p316 = scmp.ne.s32.totalorder %s308, %s310
      %p317 = scmp.eq.s32.totalorder %s36, 1
      %p318 = por %p316, %p317
      %p319 = scmp.ne.s32.totalorder %s310, %s311
      %p320 = scmp.eq.s32.totalorder %s36, 0
      %p321 = por %p319, %p320
      %p322 = scmp.ne.s32.totalorder %s310, %s311
      %p323 = scmp.eq.s32.totalorder %s37, 1
      %p324 = por %p322, %p323
      %p326 = scmp.ne.s32.totalorder %s311, %s325
      %p327 = scmp.eq.s32.totalorder %s37, 0
      %p328 = por %p326, %p327
      %s330 = sadd.s32 %s329, 1
      %p333 = scmp.eq.s32.totalorder %s31, 1
      %p334 = scmp.ne.s32.totalorder %s329, %s331
      %p335 = scmp.eq.s32.totalorder %s31, 0
      %p336 = por %p334, %p335
      %p337 = scmp.ne.s32.totalorder %s329, %s331
      %p338 = scmp.eq.s32.totalorder %s36, 1
      %p339 = por %p337, %p338
      %p340 = scmp.ne.s32.totalorder %s331, %s332
      %p341 = scmp.eq.s32.totalorder %s36, 0
      %p342 = por %p340, %p341
      %p343 = scmp.ne.s32.totalorder %s331, %s332
      %p344 = scmp.eq.s32.totalorder %s37, 1
      %p345 = por %p343, %p344
      %p347 = scmp.ne.s32.totalorder %s332, %s346
      %p348 = scmp.eq.s32.totalorder %s37, 0
      %p349 = por %p347, %p348
      %s350 = ssub.s32 %s38, %s50
      %s351 = ssub.s32 %s39, %s46
      %s352 = sor.u32 %s350, %s351
      %p353 = scmp.eq.s32.totalorder %s352, 0
      %s355 = sadd.s32 %s354, 1
      %s356 = scalar_select %p353, %s354, %s355
      %p359 = pneg %p353
      %p360 = scmp.eq.s32.totalorder %s31, 1
      %p361 = por %p359, %p360
      %p362 = scmp.ne.s32.totalorder %s354, %s357
      %p363 = scmp.eq.s32.totalorder %s31, 0
      %p364 = por %p362, %p363
      %p365 = scmp.ne.s32.totalorder %s354, %s357
      %p366 = scmp.eq.s32.totalorder %s36, 1
      %p367 = por %p365, %p366
      %p368 = scmp.ne.s32.totalorder %s357, %s358
      %p369 = scmp.eq.s32.totalorder %s36, 0
      %p370 = por %p368, %p369
      %p371 = scmp.ne.s32.totalorder %s357, %s358
      %p372 = scmp.eq.s32.totalorder %s37, 1
      %p373 = por %p371, %p372
      %p375 = scmp.ne.s32.totalorder %s358, %s374
      %p376 = scmp.eq.s32.totalorder %s37, 0
      %p377 = por %p375, %p376
      %s378 = ssub.s32 %s38, %s50
      %s379 = ssub.s32 %s39, %s46
      %s380 = sor.u32 %s378, %s379
      %p381 = scmp.eq.s32.totalorder %s380, 0
      %s383 = sadd.s32 %s382, 1
      %s384 = scalar_select %p381, %s382, %s383
      %p387 = pneg %p381
      %p388 = scmp.eq.s32.totalorder %s31, 1
      %p389 = por %p387, %p388
      %p390 = scmp.ne.s32.totalorder %s382, %s385
      %p391 = scmp.eq.s32.totalorder %s31, 0
      %p392 = por %p390, %p391
      %p393 = scmp.ne.s32.totalorder %s382, %s385
      %p394 = scmp.eq.s32.totalorder %s36, 1
      %p395 = por %p393, %p394
      %p396 = scmp.ne.s32.totalorder %s385, %s386
      %p397 = scmp.eq.s32.totalorder %s36, 0
      %p398 = por %p396, %p397
      %p399 = scmp.ne.s32.totalorder %s385, %s386
      %p400 = scmp.eq.s32.totalorder %s37, 1
      %p401 = por %p399, %p400
      %p403 = scmp.ne.s32.totalorder %s386, %s402
      %p404 = scmp.eq.s32.totalorder %s37, 0
      %p405 = por %p403, %p404
      %p406 = scmp.le.s32.totalorder 1, %s31
      %p407 = scmp.lt.s32.totalorder %s31, 3
      %p408 = pnand %p406, %p407
      %p409 = pneg %p408
      // Predicated region
      $region9: #{tpu_custom_call.1} parent=5 // pred_check
        _
      $region10: #{tpu_custom_call.1} parent=5 // pred_check_branch
        %411 = sbr.rel (%p408) target = $region12
      $region11: #{tpu_custom_call.1} parent=5 // pred_region
        %s412 = ssub.s32 %s31, 1
        // Predicated region
        $region13: #{tpu_custom_call.1} parent=11 // pred_check
          %p413 = pneg %p90
        $region14: #{tpu_custom_call.1} parent=11 // pred_check_branch
          %415 = sbr.rel (%p413) target = $region16
        $region15: #{tpu_custom_call.1} parent=11 // pred_region
          _
        $region16: #{tpu_custom_call.1} parent=11 // pred_fallthru
          _
        // Predicated region
        $region17: #{tpu_custom_call.1} parent=11 // pred_check
          %p416 = pneg %p111
        $region18: #{tpu_custom_call.1} parent=11 // pred_check_branch
          %418 = sbr.rel (%p416) target = $region20
        $region19: #{tpu_custom_call.1} parent=11 // pred_region
          _
        $region20: #{tpu_custom_call.1} parent=11 // pred_fallthru
          _
        // Predicated region
        $region21: #{tpu_custom_call.1} parent=11 // pred_check
          %p419 = pneg %p132
        $region22: #{tpu_custom_call.1} parent=11 // pred_check_branch
          %421 = sbr.rel (%p419) target = $region24
        $region23: #{tpu_custom_call.1} parent=11 // pred_region
          _
        $region24: #{tpu_custom_call.1} parent=11 // pred_fallthru
          _
        // Predicated region
        $region25: #{tpu_custom_call.1} parent=11 // pred_check
          %p422 = pneg %p153
        $region26: #{tpu_custom_call.1} parent=11 // pred_check_branch
          %424 = sbr.rel (%p422) target = $region28
        $region27: #{tpu_custom_call.1} parent=11 // pred_region
          _
        $region28: #{tpu_custom_call.1} parent=11 // pred_fallthru
          _
        // Predicated region
        $region29: #{tpu_custom_call.1} parent=11 // pred_check
          %p425 = pneg %p174
        $region30: #{tpu_custom_call.1} parent=11 // pred_check_branch
          %427 = sbr.rel (%p425) target = $region32
        $region31: #{tpu_custom_call.1} parent=11 // pred_region
          _
        $region32: #{tpu_custom_call.1} parent=11 // pred_fallthru
          _
        // Predicated region
        $region33: #{tpu_custom_call.1} parent=11 // pred_check
          %p428 = pneg %p195
        $region34: #{tpu_custom_call.1} parent=11 // pred_check_branch
          %430 = sbr.rel (%p428) target = $region36
        $region35: #{tpu_custom_call.1} parent=11 // pred_region
          _
        $region36: #{tpu_custom_call.1} parent=11 // pred_fallthru
          _
        // Predicated region
        $region37: #{tpu_custom_call.1} parent=11 // pred_check
          %p431 = pneg %p216
        $region38: #{tpu_custom_call.1} parent=11 // pred_check_branch
          %433 = sbr.rel (%p431) target = $region40
        $region39: #{tpu_custom_call.1} parent=11 // pred_region
          _
        $region40: #{tpu_custom_call.1} parent=11 // pred_fallthru
          _
        // Predicated region
        $region41: #{tpu_custom_call.1} parent=11 // pred_check
          %p434 = pneg %p237
        $region42: #{tpu_custom_call.1} parent=11 // pred_check_branch
          %436 = sbr.rel (%p434) target = $region44
        $region43: #{tpu_custom_call.1} parent=11 // pred_region
          _
        $region44: #{tpu_custom_call.1} parent=11 // pred_fallthru
          _
        // Predicated region
        $region45: #{tpu_custom_call.1} parent=11 // pred_check
          %p437 = pneg %p258
        $region46: #{tpu_custom_call.1} parent=11 // pred_check_branch
          %439 = sbr.rel (%p437) target = $region48
        $region47: #{tpu_custom_call.1} parent=11 // pred_region
          _
        $region48: #{tpu_custom_call.1} parent=11 // pred_fallthru
          _
        // Predicated region
        $region49: #{tpu_custom_call.1} parent=11 // pred_check
          %p440 = pneg %p279
        $region50: #{tpu_custom_call.1} parent=11 // pred_check_branch
          %442 = sbr.rel (%p440) target = $region52
        $region51: #{tpu_custom_call.1} parent=11 // pred_region
          _
        $region52: #{tpu_custom_call.1} parent=11 // pred_fallthru
          _
        // Predicated region
        $region53: #{tpu_custom_call.1} parent=11 // pred_check
          %p443 = pneg %p300
        $region54: #{tpu_custom_call.1} parent=11 // pred_check_branch
          %445 = sbr.rel (%p443) target = $region56
        $region55: #{tpu_custom_call.1} parent=11 // pred_region
          _
        $region56: #{tpu_custom_call.1} parent=11 // pred_fallthru
          _
        // Predicated region
        $region57: #{tpu_custom_call.1} parent=11 // pred_check
          %p446 = pneg %p321
        $region58: #{tpu_custom_call.1} parent=11 // pred_check_branch
          %448 = sbr.rel (%p446) target = $region60
        $region59: #{tpu_custom_call.1} parent=11 // pred_region
          _
        $region60: #{tpu_custom_call.1} parent=11 // pred_fallthru
          _
        // Predicated region
        $region61: #{tpu_custom_call.1} parent=11 // pred_check
          %p449 = pneg %p342
        $region62: #{tpu_custom_call.1} parent=11 // pred_check_branch
          %451 = sbr.rel (%p449) target = $region64
        $region63: #{tpu_custom_call.1} parent=11 // pred_region
          _
        $region64: #{tpu_custom_call.1} parent=11 // pred_fallthru
          _
      $region12: #{tpu_custom_call.1} parent=5 // pred_fallthru
        _
      %p452 = scmp.lt.s32.totalorder %s31, 2
      // Predicated region
      $region65: #{tpu_custom_call.1} parent=5 // pred_check
        %p453 = pneg %p452
      $region66: #{tpu_custom_call.1} parent=5 // pred_check_branch
        %455 = sbr.rel (%p453) target = $region68
      $region67: #{tpu_custom_call.1} parent=5 // pred_region
        // Predicated region
        $region69: #{tpu_custom_call.1} parent=67 // pred_check
          %p456 = pneg %p63
        $region70: #{tpu_custom_call.1} parent=67 // pred_check_branch
          %458 = sbr.rel (%p456) target = $region72
        $region71: #{tpu_custom_call.1} parent=67 // pred_region
          %s459 = sand.u32 %s53, 1
          %s460 = scalar_lea.sflag [#allocation5], %s459
          %s461 = sand.u32 %s53, 1
          %s462 = smul.addr %s461, 8
          %s463 = scalar_lea.vmem [#allocation4], %s462
          %s465 = ssub.s32 128, 128
          %466 = vsyncadd %s460, %s465
          %s467 = smul.addr %s38, 128
          %s468 = scalar_lea.hbm %s0, %s467
          %s470 = sshll.u32 %s463, 4
          %s471 = int_to_ptr.vmem [resolvable:$true] %s470
          %473 = dma.hbm_to_vmem [thread:$0]  %s468, 128, %s471, %s460
        $region72: #{tpu_custom_call.1} parent=67 // pred_fallthru
          _
      $region68: #{tpu_custom_call.1} parent=5 // pred_fallthru
        _
      %p474 = scmp.le.s32.totalorder 1, %s31
      %p475 = scmp.lt.s32.totalorder %s31, 3
      %p476 = pnand %p474, %p475
      %p477 = pneg %p476
      // Predicated region
      $region73: #{tpu_custom_call.1} parent=5 // pred_check
        _
      $region74: #{tpu_custom_call.1} parent=5 // pred_check_branch
        %479 = sbr.rel (%p476) target = $region76
      $region75: #{tpu_custom_call.1} parent=5 // pred_region
        %s480 = ssub.s32 %s31, 1
        %s481 = sand.u32 %s56, 1
        %s482 = scalar_lea.sflag [#allocation5], %s481
        %s483 = sand.u32 %s56, 1
        %s484 = smul.addr %s483, 8
        %s485 = scalar_lea.vmem [#allocation4], %s484
        // Predicated region
        $region77: #{tpu_custom_call.1} parent=75 // pred_check
          %p486 = pneg %p69
        $region78: #{tpu_custom_call.1} parent=75 // pred_check_branch
          %488 = sbr.rel (%p486) target = $region80
        $region79: #{tpu_custom_call.1} parent=75 // pred_region
          %489 = dma.done %s482, 128
        $region80: #{tpu_custom_call.1} parent=75 // pred_fallthru
          _
        %s490 = sand.u32 %s56, 1
        %s491 = scalar_lea.sflag [#allocation5], %s490
        %s492 = sand.u32 %s56, 1
        %s493 = smul.addr %s492, 8
        %s494 = scalar_lea.vmem [#allocation4], %s493
        %p495 = pneg %p69
        %p496 = pneg %p66
        %p497 = pneg %p90
        %p498 = pneg %p87
        %p499 = pneg %p111
        %p500 = pneg %p108
        %p501 = pneg %p132
        %p502 = pneg %p129
        %p503 = pneg %p153
        %p504 = pneg %p150
        %p505 = pneg %p174
        %p506 = pneg %p171
        %p507 = pneg %p195
        %p508 = pneg %p192
        %p509 = pneg %p216
        %p510 = pneg %p213
        %p511 = pneg %p237
        %p512 = pneg %p234
        %p513 = pneg %p258
        %p514 = pneg %p255
        %p515 = pneg %p279
        %p516 = pneg %p276
        %p517 = pneg %p300
        %p518 = pneg %p297
        %p519 = pneg %p321
        %p520 = pneg %p318
        %p521 = pneg %p342
        %p522 = pneg %p339
        %p523 = pneg %p370
        %p524 = pneg %p367
        %s525 = sand.u32 %s357, 1
        %s526 = scalar_lea.sflag [#allocation6], %s525
        %s527 = sand.u32 %s357, 1
        %s528 = smul.addr %s527, 8
        %s529 = scalar_lea.vmem [#allocation7], %s528
        %p530 = pneg %p398
        %p531 = pneg %p395
        %s532 = sand.u32 %s385, 1
        %s533 = scalar_lea.sflag [#allocation9], %s532
        %s534 = sand.u32 %s385, 1
        %s535 = smul.addr %s534, 32
        %s536 = scalar_lea.vmem [#allocation8], %s535
        %p537 = scmp.eq.s32.totalorder %s41, 0
        // Predicated region
        $region81: #{tpu_custom_call.1} parent=75 // pred_check
          %p538 = pneg %p537
        $region82: #{tpu_custom_call.1} parent=75 // pred_check_branch
          %540 = sbr.rel (%p538) target = $region84
        $region83: #{tpu_custom_call.1} parent=75 // pred_region
          %v541 = vld [vmem:[%s485] sm:$0xff]
          %v542 = vld [vmem:[%s2] sm:$0xff]
          %v543 = vld [vmem:[%s2 + $0x8] sm:$0xff]
          %v544 = vld [vmem:[%s2 + $0x10] sm:$0xff]
          %v545 = vld [vmem:[%s2 + $0x18] sm:$0xff]
          %vm546 = vcmask 261120
          %v548 = vsel %vm546, %v541, 0
          %550 = vmatprep.subr.mxu0 0.0
          %551 = vmatpush1.msra.mxu0 %v542
          %552 = vmatprep.subr.mxu0 0.0
          %553 = vmatpush1.msra.mxu0 %v543
          %554 = vmatprep.subr.mxu0 0.0
          %555 = vmatpush1.msra.mxu0 %v544
          %556 = vmatprep.subr.mxu0 0.0
          %557 = vmatpush1.msra.mxu0 %v545
          %558 = vmatprep.subr.mxu0 0.0
          %559 = vmatpush1.msra.mxu0 0.0
          %560 = vmatprep.subr.mxu0 0.0
          %561 = vmatpush1.msra.mxu0 0.0
          %562 = vmatprep.subr.mxu0 0.0
          %563 = vmatpush1.msra.mxu0 0.0
          %564 = vmatprep.subr.mxu0 0.0
          %565 = vmatpush1.msra.mxu0 0.0
          %566 = vmatprep.subr.mxu0 0.0
          %567 = vmatpush1.msra.mxu0 0.0
          %568 = vmatprep.subr.mxu0 0.0
          %569 = vmatpush1.msra.mxu0 0.0
          %570 = vmatprep.subr.mxu0 0.0
          %571 = vmatpush1.msra.mxu0 0.0
          %572 = vmatprep.subr.mxu0 0.0
          %573 = vmatpush1.msra.mxu0 0.0
          %574 = vmatprep.subr.mxu0 0.0
          %575 = vmatpush1.msra.mxu0 0.0
          %576 = vmatprep.subr.mxu0 0.0
          %577 = vmatpush1.msra.mxu0 0.0
          %578 = vmatprep.subr.mxu0 0.0
          %579 = vmatpush1.msra.mxu0 0.0
          %580 = vmatprep.subr.mxu0 0.0
          %581 = vmatpush1.msra.mxu0 0.0
          %582 = vmatprep.subr.mxu0 0.0
          %583 = vmatpush1.msra.mxu0 0.0
          %584 = vmatprep.subr.mxu0 0.0
          %585 = vmatpush1.msra.mxu0 0.0
          %586 = vmatprep.subr.mxu0 0.0
          %587 = vmatpush1.msra.mxu0 0.0
          %588 = vmatprep.subr.mxu0 0.0
          %589 = vmatpush1.msra.mxu0 0.0
          %590 = vmatprep.subr.mxu0 0.0
          %591 = vmatpush1.msra.mxu0 0.0
          %592 = vmatprep.subr.mxu0 0.0
          %593 = vmatpush1.msra.mxu0 0.0
          %594 = vmatprep.subr.mxu0 0.0
          %595 = vmatpush1.msra.mxu0 0.0
          %596 = vmatprep.subr.mxu0 0.0
          %597 = vmatpush1.msra.mxu0 0.0
          %598 = vmatprep.subr.mxu0 0.0
          %599 = vmatpush1.msra.mxu0 0.0
          %600 = vmatprep.subr.mxu0 0.0
          %601 = vmatpush1.msra.mxu0 0.0
          %602 = vmatprep.subr.mxu0 0.0
          %603 = vmatpush1.msra.mxu0 0.0
          %604 = vmatprep.subr.mxu0 0.0
          %605 = vmatpush1.msra.mxu0 0.0
          %606 = vmatprep.subr.mxu0 0.0
          %607 = vmatpush1.msra.mxu0 0.0
          %608 = vmatprep.subr.mxu0 0.0
          %609 = vmatpush1.msra.mxu0 0.0
          %610 = vmatprep.subr.mxu0 0.0
          %611 = vmatpush1.msra.mxu0 0.0
          %612 = vmatprep.subr.mxu0 0.0
          %613 = vmatpush1.msra.mxu0 0.0
          %614 = vmatprep.mubr.f32.mxu0 0.0
          %615 = vmatmul.mubr.f32.gmra.mrb[0].mxu0 %v548
          %v616 = vpop.f32.mrb[0].mxu0
          %v617 = vadd.f32 0.0, %v616
          %v618 = vpop.f32.mrb[0].mxu0
          %619 = vdwg.mxu0
          %v620 = vld [vmem:[%s3] sm:$0xff]
          %v621 = vld [vmem:[%s3 + $0x8] sm:$0xff]
          %v622 = vld [vmem:[%s3 + $0x10] sm:$0xff]
          %v623 = vld [vmem:[%s3 + $0x18] sm:$0xff]
          %624 = vmatprep.subr.mxu0 0.0
          %625 = vmatpush1.msra.mxu0 %v620
          %626 = vmatprep.subr.mxu0 0.0
          %627 = vmatpush1.msra.mxu0 %v621
          %628 = vmatprep.subr.mxu0 0.0
          %629 = vmatpush1.msra.mxu0 %v622
          %630 = vmatprep.subr.mxu0 0.0
          %631 = vmatpush1.msra.mxu0 %v623
          %632 = vmatprep.subr.mxu0 0.0
          %633 = vmatpush1.msra.mxu0 0.0
          %634 = vmatprep.subr.mxu0 0.0
          %635 = vmatpush1.msra.mxu0 0.0
          %636 = vmatprep.subr.mxu0 0.0
          %637 = vmatpush1.msra.mxu0 0.0
          %638 = vmatprep.subr.mxu0 0.0
          %639 = vmatpush1.msra.mxu0 0.0
          %640 = vmatprep.subr.mxu0 0.0
          %641 = vmatpush1.msra.mxu0 0.0
          %642 = vmatprep.subr.mxu0 0.0
          %643 = vmatpush1.msra.mxu0 0.0
          %644 = vmatprep.subr.mxu0 0.0
          %645 = vmatpush1.msra.mxu0 0.0
          %646 = vmatprep.subr.mxu0 0.0
          %647 = vmatpush1.msra.mxu0 0.0
          %648 = vmatprep.subr.mxu0 0.0
          %649 = vmatpush1.msra.mxu0 0.0
          %650 = vmatprep.subr.mxu0 0.0
          %651 = vmatpush1.msra.mxu0 0.0
          %652 = vmatprep.subr.mxu0 0.0
          %653 = vmatpush1.msra.mxu0 0.0
          %654 = vmatprep.subr.mxu0 0.0
          %655 = vmatpush1.msra.mxu0 0.0
          %656 = vmatprep.subr.mxu0 0.0
          %657 = vmatpush1.msra.mxu0 0.0
          %658 = vmatprep.subr.mxu0 0.0
          %659 = vmatpush1.msra.mxu0 0.0
          %660 = vmatprep.subr.mxu0 0.0
          %661 = vmatpush1.msra.mxu0 0.0
          %662 = vmatprep.subr.mxu0 0.0
          %663 = vmatpush1.msra.mxu0 0.0
          %664 = vmatprep.subr.mxu0 0.0
          %665 = vmatpush1.msra.mxu0 0.0
          %666 = vmatprep.subr.mxu0 0.0
          %667 = vmatpush1.msra.mxu0 0.0
          %668 = vmatprep.subr.mxu0 0.0
          %669 = vmatpush1.msra.mxu0 0.0
          %670 = vmatprep.subr.mxu0 0.0
          %671 = vmatpush1.msra.mxu0 0.0
          %672 = vmatprep.subr.mxu0 0.0
          %673 = vmatpush1.msra.mxu0 0.0
          %674 = vmatprep.subr.mxu0 0.0
          %675 = vmatpush1.msra.mxu0 0.0
          %676 = vmatprep.subr.mxu0 0.0
          %677 = vmatpush1.msra.mxu0 0.0
          %678 = vmatprep.subr.mxu0 0.0
          %679 = vmatpush1.msra.mxu0 0.0
          %680 = vmatprep.subr.mxu0 0.0
          %681 = vmatpush1.msra.mxu0 0.0
          %682 = vmatprep.subr.mxu0 0.0
          %683 = vmatpush1.msra.mxu0 0.0
          %684 = vmatprep.subr.mxu0 0.0
          %685 = vmatpush1.msra.mxu0 0.0
          %686 = vmatprep.subr.mxu0 0.0
          %687 = vmatpush1.msra.mxu0 0.0
          %688 = vmatprep.mubr.f32.mxu0 0.0
          %689 = vmatmul.mubr.f32.gmra.mrb[0].mxu0 %v548
          %v690 = vpop.f32.mrb[0].mxu0
          %v691 = vadd.f32 0.0, %v690
          %v692 = vpop.f32.mrb[0].mxu0
          %693 = vdwg.mxu0
          %695 = vrot.lane.b32.xlu0 %v617, 120
          %v696 = vpop.permute.xlu0 %695
          %698 = vrot.lane.b32.xlu0 %v617, 112
          %v699 = vpop.permute.xlu0 %698
          %701 = vrot.lane.b32.xlu0 %v617, 104
          %v702 = vpop.permute.xlu0 %701
          %v704 = vcombine.low %v617, %v699
          %v705 = vcombine.high %v617, %v699
          %v707 = vunpack.c.l.s4 1983009808
          %v708 = vunpack.c.0.s8 %v707
          %v709 = vlaneseq
          %v710 = vshrl.u32 %v709, 7
          %v711 = vsub.s32 %v708, %v710
          %v712 = vrot.slane %v704, %v711
          %v714 = vunpack.c.l.s4 1983009808
          %v715 = vunpack.c.0.s8 %v714
          %v716 = vlaneseq
          %v717 = vshrl.u32 %v716, 7
          %v718 = vsub.s32 %v715, %v717
          %v719 = vrot.slane %v705, %v718
          %v720 = vcombine.low %v696, %v702
          %v721 = vcombine.high %v696, %v702
          %v723 = vunpack.c.l.s4 1983009808
          %v724 = vunpack.c.0.s8 %v723
          %v725 = vlaneseq
          %v726 = vshrl.u32 %v725, 7
          %v727 = vsub.s32 %v724, %v726
          %v728 = vrot.slane %v720, %v727
          %v730 = vunpack.c.l.s4 1983009808
          %v731 = vunpack.c.0.s8 %v730
          %v732 = vlaneseq
          %v733 = vshrl.u32 %v732, 7
          %v734 = vsub.s32 %v731, %v733
          %v735 = vrot.slane %v721, %v734
          %v736 = vcombine.low %v712, %v728
          %v737 = vcombine.high %v712, %v728
          %v739 = vunpack.c.l.s4 1934713408
          %v740 = vunpack.c.0.s8 %v739
          %v741 = vlaneseq
          %v742 = vshrl.u32 %v741, 7
          %v743 = vsub.s32 %v740, %v742
          %v744 = vrot.slane %v736, %v743
          %v746 = vunpack.c.l.s4 1934713408
          %v747 = vunpack.c.0.s8 %v746
          %v748 = vlaneseq
          %v749 = vshrl.u32 %v748, 7
          %v750 = vsub.s32 %v747, %v749
          %v751 = vrot.slane %v737, %v750
          %v752 = vcombine.low %v719, %v735
          %v753 = vcombine.high %v719, %v735
          %v755 = vunpack.c.l.s4 1934713408
          %v756 = vunpack.c.0.s8 %v755
          %v757 = vlaneseq
          %v758 = vshrl.u32 %v757, 7
          %v759 = vsub.s32 %v756, %v758
          %v760 = vrot.slane %v752, %v759
          %v762 = vunpack.c.l.s4 1934713408
          %v763 = vunpack.c.0.s8 %v762
          %v764 = vlaneseq
          %v765 = vshrl.u32 %v764, 7
          %v766 = vsub.s32 %v763, %v765
          %v767 = vrot.slane %v753, %v766
          %v768 = vcombine.high %v744, 0.0
          %v769 = vcombine.high %v751, 0.0
          %v770 = vcombine.high %v760, 0.0
          %v771 = vcombine.high %v767, 0.0
          %v772 = vcombine.low %v744, %v751
          %v774 = vunpack.c.l.s4 1983009808
          %v775 = vunpack.c.0.s8 %v774
          %v776 = vlaneseq
          %v777 = vshrl.u32 %v776, 7
          %v778 = vsub.s32 %v775, %v777
          %v779 = vrot.slane %v772, %v778
          %v780 = vcombine.low %v768, %v769
          %v782 = vunpack.c.l.s4 1983009808
          %v783 = vunpack.c.0.s8 %v782
          %v784 = vlaneseq
          %v785 = vshrl.u32 %v784, 7
          %v786 = vsub.s32 %v783, %v785
          %v787 = vrot.slane %v780, %v786
          %v788 = vcombine.low %v760, %v767
          %v790 = vunpack.c.l.s4 1983009808
          %v791 = vunpack.c.0.s8 %v790
          %v792 = vlaneseq
          %v793 = vshrl.u32 %v792, 7
          %v794 = vsub.s32 %v791, %v793
          %v795 = vrot.slane %v788, %v794
          %v796 = vcombine.low %v770, %v771
          %v798 = vunpack.c.l.s4 1983009808
          %v799 = vunpack.c.0.s8 %v798
          %v800 = vlaneseq
          %v801 = vshrl.u32 %v800, 7
          %v802 = vsub.s32 %v799, %v801
          %v803 = vrot.slane %v796, %v802
          %v804 = vcombine.low %v779, %v787
          %v805 = vcombine.high %v779, %v787
          %v807 = vunpack.c.l.s4 1934713408
          %v808 = vunpack.c.0.s8 %v807
          %v809 = vlaneseq
          %v810 = vshrl.u32 %v809, 7
          %v811 = vsub.s32 %v808, %v810
          %v812 = vrot.slane %v804, %v811
          %v814 = vunpack.c.l.s4 1934713408
          %v815 = vunpack.c.0.s8 %v814
          %v816 = vlaneseq
          %v817 = vshrl.u32 %v816, 7
          %v818 = vsub.s32 %v815, %v817
          %v819 = vrot.slane %v805, %v818
          %v820 = vcombine.low %v795, %v803
          %v821 = vcombine.high %v795, %v803
          %v823 = vunpack.c.l.s4 1934713408
          %v824 = vunpack.c.0.s8 %v823
          %v825 = vlaneseq
          %v826 = vshrl.u32 %v825, 7
          %v827 = vsub.s32 %v824, %v826
          %v828 = vrot.slane %v820, %v827
          %v830 = vunpack.c.l.s4 1934713408
          %v831 = vunpack.c.0.s8 %v830
          %v832 = vlaneseq
          %v833 = vshrl.u32 %v832, 7
          %v834 = vsub.s32 %v831, %v833
          %v835 = vrot.slane %v821, %v834
          %v836 = vcombine.low %v812, %v828
          %v837 = vcombine.high %v812, %v828
          %v838 = vcombine.low %v819, %v835
          %v839 = vcombine.high %v819, %v835
          %vm840 = vcmask 64512
          %841 = vst.msk [vmem:[#allocation2] sm:$0xff] %vm840, %v836
          %842 = vst.msk [vmem:[#allocation2 + $0x8] sm:$0xff] %vm840, %v837
          %843 = vst.msk [vmem:[#allocation2 + $0x10] sm:$0xff] %vm840, %v838
          %844 = vst.msk [vmem:[#allocation2 + $0x18] sm:$0xff] %vm840, %v839
          %846 = vrot.lane.b32.xlu0 %v691, 120
          %v847 = vpop.permute.xlu0 %846
          %849 = vrot.lane.b32.xlu0 %v691, 112
          %v850 = vpop.permute.xlu0 %849
          %852 = vrot.lane.b32.xlu0 %v691, 104
          %v853 = vpop.permute.xlu0 %852
          %v855 = vcombine.low %v691, %v850
          %v856 = vcombine.high %v691, %v850
          %v858 = vunpack.c.l.s4 1983009808
          %v859 = vunpack.c.0.s8 %v858
          %v860 = vlaneseq
          %v861 = vshrl.u32 %v860, 7
          %v862 = vsub.s32 %v859, %v861
          %v863 = vrot.slane %v855, %v862
          %v865 = vunpack.c.l.s4 1983009808
          %v866 = vunpack.c.0.s8 %v865
          %v867 = vlaneseq
          %v868 = vshrl.u32 %v867, 7
          %v869 = vsub.s32 %v866, %v868
          %v870 = vrot.slane %v856, %v869
          %v871 = vcombine.low %v847, %v853
          %v872 = vcombine.high %v847, %v853
          %v874 = vunpack.c.l.s4 1983009808
          %v875 = vunpack.c.0.s8 %v874
          %v876 = vlaneseq
          %v877 = vshrl.u32 %v876, 7
          %v878 = vsub.s32 %v875, %v877
          %v879 = vrot.slane %v871, %v878
          %v881 = vunpack.c.l.s4 1983009808
          %v882 = vunpack.c.0.s8 %v881
          %v883 = vlaneseq
          %v884 = vshrl.u32 %v883, 7
          %v885 = vsub.s32 %v882, %v884
          %v886 = vrot.slane %v872, %v885
          %v887 = vcombine.low %v863, %v879
          %v888 = vcombine.high %v863, %v879
          %v890 = vunpack.c.l.s4 1934713408
          %v891 = vunpack.c.0.s8 %v890
          %v892 = vlaneseq
          %v893 = vshrl.u32 %v892, 7
          %v894 = vsub.s32 %v891, %v893
          %v895 = vrot.slane %v887, %v894
          %v897 = vunpack.c.l.s4 1934713408
          %v898 = vunpack.c.0.s8 %v897
          %v899 = vlaneseq
          %v900 = vshrl.u32 %v899, 7
          %v901 = vsub.s32 %v898, %v900
          %v902 = vrot.slane %v888, %v901
          %v903 = vcombine.low %v870, %v886
          %v904 = vcombine.high %v870, %v886
          %v906 = vunpack.c.l.s4 1934713408
          %v907 = vunpack.c.0.s8 %v906
          %v908 = vlaneseq
          %v909 = vshrl.u32 %v908, 7
          %v910 = vsub.s32 %v907, %v909
          %v911 = vrot.slane %v903, %v910
          %v913 = vunpack.c.l.s4 1934713408
          %v914 = vunpack.c.0.s8 %v913
          %v915 = vlaneseq
          %v916 = vshrl.u32 %v915, 7
          %v917 = vsub.s32 %v914, %v916
          %v918 = vrot.slane %v904, %v917
          %v919 = vcombine.high %v895, 0.0
          %v920 = vcombine.high %v902, 0.0
          %v921 = vcombine.high %v911, 0.0
          %v922 = vcombine.high %v918, 0.0
          %v923 = vcombine.low %v895, %v902
          %v925 = vunpack.c.l.s4 1983009808
          %v926 = vunpack.c.0.s8 %v925
          %v927 = vlaneseq
          %v928 = vshrl.u32 %v927, 7
          %v929 = vsub.s32 %v926, %v928
          %v930 = vrot.slane %v923, %v929
          %v931 = vcombine.low %v919, %v920
          %v933 = vunpack.c.l.s4 1983009808
          %v934 = vunpack.c.0.s8 %v933
          %v935 = vlaneseq
          %v936 = vshrl.u32 %v935, 7
          %v937 = vsub.s32 %v934, %v936
          %v938 = vrot.slane %v931, %v937
          %v939 = vcombine.low %v911, %v918
          %v941 = vunpack.c.l.s4 1983009808
          %v942 = vunpack.c.0.s8 %v941
          %v943 = vlaneseq
          %v944 = vshrl.u32 %v943, 7
          %v945 = vsub.s32 %v942, %v944
          %v946 = vrot.slane %v939, %v945
          %v947 = vcombine.low %v921, %v922
          %v949 = vunpack.c.l.s4 1983009808
          %v950 = vunpack.c.0.s8 %v949
          %v951 = vlaneseq
          %v952 = vshrl.u32 %v951, 7
          %v953 = vsub.s32 %v950, %v952
          %v954 = vrot.slane %v947, %v953
          %v955 = vcombine.low %v930, %v938
          %v956 = vcombine.high %v930, %v938
          %v958 = vunpack.c.l.s4 1934713408
          %v959 = vunpack.c.0.s8 %v958
          %v960 = vlaneseq
          %v961 = vshrl.u32 %v960, 7
          %v962 = vsub.s32 %v959, %v961
          %v963 = vrot.slane %v955, %v962
          %v965 = vunpack.c.l.s4 1934713408
          %v966 = vunpack.c.0.s8 %v965
          %v967 = vlaneseq
          %v968 = vshrl.u32 %v967, 7
          %v969 = vsub.s32 %v966, %v968
          %v970 = vrot.slane %v956, %v969
          %v971 = vcombine.low %v946, %v954
          %v972 = vcombine.high %v946, %v954
          %v974 = vunpack.c.l.s4 1934713408
          %v975 = vunpack.c.0.s8 %v974
          %v976 = vlaneseq
          %v977 = vshrl.u32 %v976, 7
          %v978 = vsub.s32 %v975, %v977
          %v979 = vrot.slane %v971, %v978
          %v981 = vunpack.c.l.s4 1934713408
          %v982 = vunpack.c.0.s8 %v981
          %v983 = vlaneseq
          %v984 = vshrl.u32 %v983, 7
          %v985 = vsub.s32 %v982, %v984
          %v986 = vrot.slane %v972, %v985
          %v987 = vcombine.low %v963, %v979
          %v988 = vcombine.high %v963, %v979
          %v989 = vcombine.low %v970, %v986
          %v990 = vcombine.high %v970, %v986
          %991 = vst.msk [vmem:[#allocation3] sm:$0xff] %vm840, %v987
          %992 = vst.msk [vmem:[#allocation3 + $0x8] sm:$0xff] %vm840, %v988
          %993 = vst.msk [vmem:[#allocation3 + $0x10] sm:$0xff] %vm840, %v989
          %994 = vst.msk [vmem:[#allocation3 + $0x18] sm:$0xff] %vm840, %v990
        $region84: #{tpu_custom_call.1} parent=75 // pred_fallthru
          _
        %v995 = vld [vmem:[%s485] sm:$0xff]
        %v996 = vld [vmem:[%s1] sm:$0xff]
        %v997 = vld [vmem:[%s1 + $0x8] sm:$0xff]
        %v998 = vld [vmem:[%s1 + $0x10] sm:$0xff]
        %v999 = vld [vmem:[%s1 + $0x18] sm:$0xff]
        %vm1000 = vcmask 261120
        %v1002 = vsel %vm1000, %v995, 0
        %1004 = vmatprep.subr.mxu0 0.0
        %1005 = vmatpush1.msra.mxu0 %v996
        %1006 = vmatprep.subr.mxu0 0.0
        %1007 = vmatpush1.msra.mxu0 %v997
        %1008 = vmatprep.subr.mxu0 0.0
        %1009 = vmatpush1.msra.mxu0 %v998
        %1010 = vmatprep.subr.mxu0 0.0
        %1011 = vmatpush1.msra.mxu0 %v999
        %1012 = vmatprep.subr.mxu0 0.0
        %1013 = vmatpush1.msra.mxu0 0.0
        %1014 = vmatprep.subr.mxu0 0.0
        %1015 = vmatpush1.msra.mxu0 0.0
        %1016 = vmatprep.subr.mxu0 0.0
        %1017 = vmatpush1.msra.mxu0 0.0
        %1018 = vmatprep.subr.mxu0 0.0
        %1019 = vmatpush1.msra.mxu0 0.0
        %1020 = vmatprep.subr.mxu0 0.0
        %1021 = vmatpush1.msra.mxu0 0.0
        %1022 = vmatprep.subr.mxu0 0.0
        %1023 = vmatpush1.msra.mxu0 0.0
        %1024 = vmatprep.subr.mxu0 0.0
        %1025 = vmatpush1.msra.mxu0 0.0
        %1026 = vmatprep.subr.mxu0 0.0
        %1027 = vmatpush1.msra.mxu0 0.0
        %1028 = vmatprep.subr.mxu0 0.0
        %1029 = vmatpush1.msra.mxu0 0.0
        %1030 = vmatprep.subr.mxu0 0.0
        %1031 = vmatpush1.msra.mxu0 0.0
        %1032 = vmatprep.subr.mxu0 0.0
        %1033 = vmatpush1.msra.mxu0 0.0
        %1034 = vmatprep.subr.mxu0 0.0
        %1035 = vmatpush1.msra.mxu0 0.0
        %1036 = vmatprep.subr.mxu0 0.0
        %1037 = vmatpush1.msra.mxu0 0.0
        %1038 = vmatprep.subr.mxu0 0.0
        %1039 = vmatpush1.msra.mxu0 0.0
        %1040 = vmatprep.subr.mxu0 0.0
        %1041 = vmatpush1.msra.mxu0 0.0
        %1042 = vmatprep.subr.mxu0 0.0
        %1043 = vmatpush1.msra.mxu0 0.0
        %1044 = vmatprep.subr.mxu0 0.0
        %1045 = vmatpush1.msra.mxu0 0.0
        %1046 = vmatprep.subr.mxu0 0.0
        %1047 = vmatpush1.msra.mxu0 0.0
        %1048 = vmatprep.subr.mxu0 0.0
        %1049 = vmatpush1.msra.mxu0 0.0
        %1050 = vmatprep.subr.mxu0 0.0
        %1051 = vmatpush1.msra.mxu0 0.0
        %1052 = vmatprep.subr.mxu0 0.0
        %1053 = vmatpush1.msra.mxu0 0.0
        %1054 = vmatprep.subr.mxu0 0.0
        %1055 = vmatpush1.msra.mxu0 0.0
        %1056 = vmatprep.subr.mxu0 0.0
        %1057 = vmatpush1.msra.mxu0 0.0
        %1058 = vmatprep.subr.mxu0 0.0
        %1059 = vmatpush1.msra.mxu0 0.0
        %1060 = vmatprep.subr.mxu0 0.0
        %1061 = vmatpush1.msra.mxu0 0.0
        %1062 = vmatprep.subr.mxu0 0.0
        %1063 = vmatpush1.msra.mxu0 0.0
        %1064 = vmatprep.subr.mxu0 0.0
        %1065 = vmatpush1.msra.mxu0 0.0
        %1066 = vmatprep.subr.mxu0 0.0
        %1067 = vmatpush1.msra.mxu0 0.0
        %1068 = vmatprep.mubr.f32.mxu0 0.0
        %1069 = vmatmul.mubr.f32.gmra.mrb[0].mxu0 %v1002
        %v1070 = vpop.f32.mrb[0].mxu0
        %v1071 = vadd.f32 0.0, %v1070
        %v1072 = vpop.f32.mrb[0].mxu0
        %1073 = vdwg.mxu0
        %v1074 = vmul.f32 %v1071, 5.656854
        %1076 = vrot.lane.b32.xlu0 %v1074, 120
        %v1077 = vpop.permute.xlu0 %1076
        %1079 = vrot.lane.b32.xlu0 %v1074, 112
        %v1080 = vpop.permute.xlu0 %1079
        %1082 = vrot.lane.b32.xlu0 %v1074, 104
        %v1083 = vpop.permute.xlu0 %1082
        %v1085 = vcombine.low %v1074, %v1080
        %v1086 = vcombine.high %v1074, %v1080
        %v1088 = vunpack.c.l.s4 1983009808
        %v1089 = vunpack.c.0.s8 %v1088
        %v1090 = vlaneseq
        %v1091 = vshrl.u32 %v1090, 7
        %v1092 = vsub.s32 %v1089, %v1091
        %v1093 = vrot.slane %v1085, %v1092
        %v1095 = vunpack.c.l.s4 1983009808
        %v1096 = vunpack.c.0.s8 %v1095
        %v1097 = vlaneseq
        %v1098 = vshrl.u32 %v1097, 7
        %v1099 = vsub.s32 %v1096, %v1098
        %v1100 = vrot.slane %v1086, %v1099
        %v1101 = vcombine.low %v1077, %v1083
        %v1102 = vcombine.high %v1077, %v1083
        %v1104 = vunpack.c.l.s4 1983009808
        %v1105 = vunpack.c.0.s8 %v1104
        %v1106 = vlaneseq
        %v1107 = vshrl.u32 %v1106, 7
        %v1108 = vsub.s32 %v1105, %v1107
        %v1109 = vrot.slane %v1101, %v1108
        %v1111 = vunpack.c.l.s4 1983009808
        %v1112 = vunpack.c.0.s8 %v1111
        %v1113 = vlaneseq
        %v1114 = vshrl.u32 %v1113, 7
        %v1115 = vsub.s32 %v1112, %v1114
        %v1116 = vrot.slane %v1102, %v1115
        %v1117 = vcombine.low %v1093, %v1109
        %v1118 = vcombine.high %v1093, %v1109
        %v1120 = vunpack.c.l.s4 1934713408
        %v1121 = vunpack.c.0.s8 %v1120
        %v1122 = vlaneseq
        %v1123 = vshrl.u32 %v1122, 7
        %v1124 = vsub.s32 %v1121, %v1123
        %v1125 = vrot.slane %v1117, %v1124
        %v1127 = vunpack.c.l.s4 1934713408
        %v1128 = vunpack.c.0.s8 %v1127
        %v1129 = vlaneseq
        %v1130 = vshrl.u32 %v1129, 7
        %v1131 = vsub.s32 %v1128, %v1130
        %v1132 = vrot.slane %v1118, %v1131
        %v1133 = vcombine.low %v1100, %v1116
        %v1134 = vcombine.high %v1100, %v1116
        %v1136 = vunpack.c.l.s4 1934713408
        %v1137 = vunpack.c.0.s8 %v1136
        %v1138 = vlaneseq
        %v1139 = vshrl.u32 %v1138, 7
        %v1140 = vsub.s32 %v1137, %v1139
        %v1141 = vrot.slane %v1133, %v1140
        %v1143 = vunpack.c.l.s4 1934713408
        %v1144 = vunpack.c.0.s8 %v1143
        %v1145 = vlaneseq
        %v1146 = vshrl.u32 %v1145, 7
        %v1147 = vsub.s32 %v1144, %v1146
        %v1148 = vrot.slane %v1134, %v1147
        %v1149 = vcombine.high %v1125, 0.0
        %v1150 = vcombine.high %v1132, 0.0
        %v1151 = vcombine.high %v1141, 0.0
        %v1152 = vcombine.high %v1148, 0.0
        %v1153 = vcombine.low %v1125, %v1132
        %v1155 = vunpack.c.l.s4 1983009808
        %v1156 = vunpack.c.0.s8 %v1155
        %v1157 = vlaneseq
        %v1158 = vshrl.u32 %v1157, 7
        %v1159 = vsub.s32 %v1156, %v1158
        %v1160 = vrot.slane %v1153, %v1159
        %v1161 = vcombine.low %v1149, %v1150
        %v1163 = vunpack.c.l.s4 1983009808
        %v1164 = vunpack.c.0.s8 %v1163
        %v1165 = vlaneseq
        %v1166 = vshrl.u32 %v1165, 7
        %v1167 = vsub.s32 %v1164, %v1166
        %v1168 = vrot.slane %v1161, %v1167
        %v1169 = vcombine.low %v1141, %v1148
        %v1171 = vunpack.c.l.s4 1983009808
        %v1172 = vunpack.c.0.s8 %v1171
        %v1173 = vlaneseq
        %v1174 = vshrl.u32 %v1173, 7
        %v1175 = vsub.s32 %v1172, %v1174
        %v1176 = vrot.slane %v1169, %v1175
        %v1177 = vcombine.low %v1151, %v1152
        %v1179 = vunpack.c.l.s4 1983009808
        %v1180 = vunpack.c.0.s8 %v1179
        %v1181 = vlaneseq
        %v1182 = vshrl.u32 %v1181, 7
        %v1183 = vsub.s32 %v1180, %v1182
        %v1184 = vrot.slane %v1177, %v1183
        %v1185 = vcombine.low %v1160, %v1168
        %v1186 = vcombine.high %v1160, %v1168
        %v1188 = vunpack.c.l.s4 1934713408
        %v1189 = vunpack.c.0.s8 %v1188
        %v1190 = vlaneseq
        %v1191 = vshrl.u32 %v1190, 7
        %v1192 = vsub.s32 %v1189, %v1191
        %v1193 = vrot.slane %v1185, %v1192
        %v1195 = vunpack.c.l.s4 1934713408
        %v1196 = vunpack.c.0.s8 %v1195
        %v1197 = vlaneseq
        %v1198 = vshrl.u32 %v1197, 7
        %v1199 = vsub.s32 %v1196, %v1198
        %v1200 = vrot.slane %v1186, %v1199
        %v1201 = vcombine.low %v1176, %v1184
        %v1202 = vcombine.high %v1176, %v1184
        %v1204 = vunpack.c.l.s4 1934713408
        %v1205 = vunpack.c.0.s8 %v1204
        %v1206 = vlaneseq
        %v1207 = vshrl.u32 %v1206, 7
        %v1208 = vsub.s32 %v1205, %v1207
        %v1209 = vrot.slane %v1201, %v1208
        %v1211 = vunpack.c.l.s4 1934713408
        %v1212 = vunpack.c.0.s8 %v1211
        %v1213 = vlaneseq
        %v1214 = vshrl.u32 %v1213, 7
        %v1215 = vsub.s32 %v1212, %v1214
        %v1216 = vrot.slane %v1202, %v1215
        %v1217 = vcombine.low %v1193, %v1209
        %v1218 = vcombine.high %v1193, %v1209
        %v1219 = vcombine.low %v1200, %v1216
        %v1220 = vcombine.high %v1200, %v1216
        %v1221 = vld [vmem:[#allocation2] sm:$0xff]
        %v1222 = vld [vmem:[#allocation2 + $0x8] sm:$0xff]
        %v1223 = vld [vmem:[#allocation2 + $0x10] sm:$0xff]
        %v1224 = vld [vmem:[#allocation2 + $0x18] sm:$0xff]
        %vm1225 = vcmask 64512
        %v1227 = vsel %vm1225, %v1217, 0
        %v1230 = vsel %vm1225, %v1221, 0
        %1232 = vmatprep.subr.mxu0 0.0
        %1233 = vmatpush1.xpose.msra.mxu0 %v1230
        %1234 = vmatprep.subr.mxu0 0.0
        %1235 = vmatpush1.xpose.msra.mxu0 0.0
        %1236 = vmatprep.subr.mxu0 0.0
        %1237 = vmatpush1.xpose.msra.mxu0 0.0
        %1238 = vmatprep.subr.mxu0 0.0
        %1239 = vmatpush1.xpose.msra.mxu0 0.0
        %1240 = vmatprep.subr.mxu0 0.0
        %1241 = vmatpush1.xpose.msra.mxu0 0.0
        %1242 = vmatprep.subr.mxu0 0.0
        %1243 = vmatpush1.xpose.msra.mxu0 0.0
        %1244 = vmatprep.subr.mxu0 0.0
        %1245 = vmatpush1.xpose.msra.mxu0 0.0
        %1246 = vmatprep.subr.mxu0 0.0
        %1247 = vmatpush1.xpose.msra.mxu0 0.0
        %1248 = vmatprep.subr.mxu0 0.0
        %1249 = vmatpush1.xpose.msra.mxu0 0.0
        %1250 = vmatprep.subr.mxu0 0.0
        %1251 = vmatpush1.xpose.msra.mxu0 0.0
        %1252 = vmatprep.subr.mxu0 0.0
        %1253 = vmatpush1.xpose.msra.mxu0 0.0
        %1254 = vmatprep.subr.mxu0 0.0
        %1255 = vmatpush1.xpose.msra.mxu0 0.0
        %1256 = vmatprep.subr.mxu0 0.0
        %1257 = vmatpush1.xpose.msra.mxu0 0.0
        %1258 = vmatprep.subr.mxu0 0.0
        %1259 = vmatpush1.xpose.msra.mxu0 0.0
        %1260 = vmatprep.subr.mxu0 0.0
        %1261 = vmatpush1.xpose.msra.mxu0 0.0
        %1262 = vmatprep.subr.mxu0 0.0
        %1263 = vmatpush1.xpose.msra.mxu0 0.0
        %1264 = vmatprep.subr.mxu0 0.0
        %1265 = vmatpush1.xpose.msra.mxu0 0.0
        %1266 = vmatprep.subr.mxu0 0.0
        %1267 = vmatpush1.xpose.msra.mxu0 0.0
        %1268 = vmatprep.subr.mxu0 0.0
        %1269 = vmatpush1.xpose.msra.mxu0 0.0
        %1270 = vmatprep.subr.mxu0 0.0
        %1271 = vmatpush1.xpose.msra.mxu0 0.0
        %1272 = vmatprep.subr.mxu0 0.0
        %1273 = vmatpush1.xpose.msra.mxu0 0.0
        %1274 = vmatprep.subr.mxu0 0.0
        %1275 = vmatpush1.xpose.msra.mxu0 0.0
        %1276 = vmatprep.subr.mxu0 0.0
        %1277 = vmatpush1.xpose.msra.mxu0 0.0
        %1278 = vmatprep.subr.mxu0 0.0
        %1279 = vmatpush1.xpose.msra.mxu0 0.0
        %1280 = vmatprep.subr.mxu0 0.0
        %1281 = vmatpush1.xpose.msra.mxu0 0.0
        %1282 = vmatprep.subr.mxu0 0.0
        %1283 = vmatpush1.xpose.msra.mxu0 0.0
        %1284 = vmatprep.subr.mxu0 0.0
        %1285 = vmatpush1.xpose.msra.mxu0 0.0
        %1286 = vmatprep.subr.mxu0 0.0
        %1287 = vmatpush1.xpose.msra.mxu0 0.0
        %1288 = vmatprep.subr.mxu0 0.0
        %1289 = vmatpush1.xpose.msra.mxu0 0.0
        %1290 = vmatprep.subr.mxu0 0.0
        %1291 = vmatpush1.xpose.msra.mxu0 0.0
        %1292 = vmatprep.subr.mxu0 0.0
        %1293 = vmatpush1.xpose.msra.mxu0 0.0
        %1294 = vmatprep.subr.mxu0 0.0
        %1295 = vmatpush1.xpose.msra.mxu0 0.0
        %1296 = vmatprep.mubr.f32.mxu0 0.0
        %1297 = vmatmul.mubr.f32.gmra.mrb[0].mxu0 %v1227
        %v1298 = vpop.f32.mrb[0].mxu0
        %v1299 = vadd.f32 0.0, %v1298
        %v1300 = vpop.f32.mrb[0].mxu0
        %1301 = vdwg.mxu0
        %v1303 = vsel %vm1225, %v1218, 0
        %v1306 = vsel %vm1225, %v1222, 0
        %1308 = vmatprep.subr.mxu0 0.0
        %1309 = vmatpush1.xpose.msra.mxu0 %v1306
        %1310 = vmatprep.subr.mxu0 0.0
        %1311 = vmatpush1.xpose.msra.mxu0 0.0
        %1312 = vmatprep.subr.mxu0 0.0
        %1313 = vmatpush1.xpose.msra.mxu0 0.0
        %1314 = vmatprep.subr.mxu0 0.0
        %1315 = vmatpush1.xpose.msra.mxu0 0.0
        %1316 = vmatprep.subr.mxu0 0.0
        %1317 = vmatpush1.xpose.msra.mxu0 0.0
        %1318 = vmatprep.subr.mxu0 0.0
        %1319 = vmatpush1.xpose.msra.mxu0 0.0
        %1320 = vmatprep.subr.mxu0 0.0
        %1321 = vmatpush1.xpose.msra.mxu0 0.0
        %1322 = vmatprep.subr.mxu0 0.0
        %1323 = vmatpush1.xpose.msra.mxu0 0.0
        %1324 = vmatprep.subr.mxu0 0.0
        %1325 = vmatpush1.xpose.msra.mxu0 0.0
        %1326 = vmatprep.subr.mxu0 0.0
        %1327 = vmatpush1.xpose.msra.mxu0 0.0
        %1328 = vmatprep.subr.mxu0 0.0
        %1329 = vmatpush1.xpose.msra.mxu0 0.0
        %1330 = vmatprep.subr.mxu0 0.0
        %1331 = vmatpush1.xpose.msra.mxu0 0.0
        %1332 = vmatprep.subr.mxu0 0.0
        %1333 = vmatpush1.xpose.msra.mxu0 0.0
        %1334 = vmatprep.subr.mxu0 0.0
        %1335 = vmatpush1.xpose.msra.mxu0 0.0
        %1336 = vmatprep.subr.mxu0 0.0
        %1337 = vmatpush1.xpose.msra.mxu0 0.0
        %1338 = vmatprep.subr.mxu0 0.0
        %1339 = vmatpush1.xpose.msra.mxu0 0.0
        %1340 = vmatprep.subr.mxu0 0.0
        %1341 = vmatpush1.xpose.msra.mxu0 0.0
        %1342 = vmatprep.subr.mxu0 0.0
        %1343 = vmatpush1.xpose.msra.mxu0 0.0
        %1344 = vmatprep.subr.mxu0 0.0
        %1345 = vmatpush1.xpose.msra.mxu0 0.0
        %1346 = vmatprep.subr.mxu0 0.0
        %1347 = vmatpush1.xpose.msra.mxu0 0.0
        %1348 = vmatprep.subr.mxu0 0.0
        %1349 = vmatpush1.xpose.msra.mxu0 0.0
        %1350 = vmatprep.subr.mxu0 0.0
        %1351 = vmatpush1.xpose.msra.mxu0 0.0
        %1352 = vmatprep.subr.mxu0 0.0
        %1353 = vmatpush1.xpose.msra.mxu0 0.0
        %1354 = vmatprep.subr.mxu0 0.0
        %1355 = vmatpush1.xpose.msra.mxu0 0.0
        %1356 = vmatprep.subr.mxu0 0.0
        %1357 = vmatpush1.xpose.msra.mxu0 0.0
        %1358 = vmatprep.subr.mxu0 0.0
        %1359 = vmatpush1.xpose.msra.mxu0 0.0
        %1360 = vmatprep.subr.mxu0 0.0
        %1361 = vmatpush1.xpose.msra.mxu0 0.0
        %1362 = vmatprep.subr.mxu0 0.0
        %1363 = vmatpush1.xpose.msra.mxu0 0.0
        %1364 = vmatprep.subr.mxu0 0.0
        %1365 = vmatpush1.xpose.msra.mxu0 0.0
        %1366 = vmatprep.subr.mxu0 0.0
        %1367 = vmatpush1.xpose.msra.mxu0 0.0
        %1368 = vmatprep.subr.mxu0 0.0
        %1369 = vmatpush1.xpose.msra.mxu0 0.0
        %1370 = vmatprep.subr.mxu0 0.0
        %1371 = vmatpush1.xpose.msra.mxu0 0.0
        %1372 = vmatprep.mubr.f32.mxu0 0.0
        %1373 = vmatmul.mubr.f32.gmra.mrb[0].mxu0 %v1303
        %v1374 = vpop.f32.mrb[0].mxu0
        %v1375 = vadd.f32 0.0, %v1374
        %v1376 = vpop.f32.mrb[0].mxu0
        %1377 = vdwg.mxu0
        %v1379 = vsel %vm1225, %v1219, 0
        %v1382 = vsel %vm1225, %v1223, 0
        %1384 = vmatprep.subr.mxu0 0.0
        %1385 = vmatpush1.xpose.msra.mxu0 %v1382
        %1386 = vmatprep.subr.mxu0 0.0
        %1387 = vmatpush1.xpose.msra.mxu0 0.0
        %1388 = vmatprep.subr.mxu0 0.0
        %1389 = vmatpush1.xpose.msra.mxu0 0.0
        %1390 = vmatprep.subr.mxu0 0.0
        %1391 = vmatpush1.xpose.msra.mxu0 0.0
        %1392 = vmatprep.subr.mxu0 0.0
        %1393 = vmatpush1.xpose.msra.mxu0 0.0
        %1394 = vmatprep.subr.mxu0 0.0
        %1395 = vmatpush1.xpose.msra.mxu0 0.0
        %1396 = vmatprep.subr.mxu0 0.0
        %1397 = vmatpush1.xpose.msra.mxu0 0.0
        %1398 = vmatprep.subr.mxu0 0.0
        %1399 = vmatpush1.xpose.msra.mxu0 0.0
        %1400 = vmatprep.subr.mxu0 0.0
        %1401 = vmatpush1.xpose.msra.mxu0 0.0
        %1402 = vmatprep.subr.mxu0 0.0
        %1403 = vmatpush1.xpose.msra.mxu0 0.0
        %1404 = vmatprep.subr.mxu0 0.0
        %1405 = vmatpush1.xpose.msra.mxu0 0.0
        %1406 = vmatprep.subr.mxu0 0.0
        %1407 = vmatpush1.xpose.msra.mxu0 0.0
        %1408 = vmatprep.subr.mxu0 0.0
        %1409 = vmatpush1.xpose.msra.mxu0 0.0
        %1410 = vmatprep.subr.mxu0 0.0
        %1411 = vmatpush1.xpose.msra.mxu0 0.0
        %1412 = vmatprep.subr.mxu0 0.0
        %1413 = vmatpush1.xpose.msra.mxu0 0.0
        %1414 = vmatprep.subr.mxu0 0.0
        %1415 = vmatpush1.xpose.msra.mxu0 0.0
        %1416 = vmatprep.subr.mxu0 0.0
        %1417 = vmatpush1.xpose.msra.mxu0 0.0
        %1418 = vmatprep.subr.mxu0 0.0
        %1419 = vmatpush1.xpose.msra.mxu0 0.0
        %1420 = vmatprep.subr.mxu0 0.0
        %1421 = vmatpush1.xpose.msra.mxu0 0.0
        %1422 = vmatprep.subr.mxu0 0.0
        %1423 = vmatpush1.xpose.msra.mxu0 0.0
        %1424 = vmatprep.subr.mxu0 0.0
        %1425 = vmatpush1.xpose.msra.mxu0 0.0
        %1426 = vmatprep.subr.mxu0 0.0
        %1427 = vmatpush1.xpose.msra.mxu0 0.0
        %1428 = vmatprep.subr.mxu0 0.0
        %1429 = vmatpush1.xpose.msra.mxu0 0.0
        %1430 = vmatprep.subr.mxu0 0.0
        %1431 = vmatpush1.xpose.msra.mxu0 0.0
        %1432 = vmatprep.subr.mxu0 0.0
        %1433 = vmatpush1.xpose.msra.mxu0 0.0
        %1434 = vmatprep.subr.mxu0 0.0
        %1435 = vmatpush1.xpose.msra.mxu0 0.0
        %1436 = vmatprep.subr.mxu0 0.0
        %1437 = vmatpush1.xpose.msra.mxu0 0.0
        %1438 = vmatprep.subr.mxu0 0.0
        %1439 = vmatpush1.xpose.msra.mxu0 0.0
        %1440 = vmatprep.subr.mxu0 0.0
        %1441 = vmatpush1.xpose.msra.mxu0 0.0
        %1442 = vmatprep.subr.mxu0 0.0
        %1443 = vmatpush1.xpose.msra.mxu0 0.0
        %1444 = vmatprep.subr.mxu0 0.0
        %1445 = vmatpush1.xpose.msra.mxu0 0.0
        %1446 = vmatprep.subr.mxu0 0.0
        %1447 = vmatpush1.xpose.msra.mxu0 0.0
        %1448 = vmatprep.mubr.f32.mxu0 0.0
        %1449 = vmatmul.mubr.f32.gmra.mrb[0].mxu0 %v1379
        %v1450 = vpop.f32.mrb[0].mxu0
        %v1451 = vadd.f32 0.0, %v1450
        %v1452 = vpop.f32.mrb[0].mxu0
        %1453 = vdwg.mxu0
        %v1455 = vsel %vm1225, %v1220, 0
        %v1458 = vsel %vm1225, %v1224, 0
        %1460 = vmatprep.subr.mxu0 0.0
        %1461 = vmatpush1.xpose.msra.mxu0 %v1458
        %1462 = vmatprep.subr.mxu0 0.0
        %1463 = vmatpush1.xpose.msra.mxu0 0.0
        %1464 = vmatprep.subr.mxu0 0.0
        %1465 = vmatpush1.xpose.msra.mxu0 0.0
        %1466 = vmatprep.subr.mxu0 0.0
        %1467 = vmatpush1.xpose.msra.mxu0 0.0
        %1468 = vmatprep.subr.mxu0 0.0
        %1469 = vmatpush1.xpose.msra.mxu0 0.0
        %1470 = vmatprep.subr.mxu0 0.0
        %1471 = vmatpush1.xpose.msra.mxu0 0.0
        %1472 = vmatprep.subr.mxu0 0.0
        %1473 = vmatpush1.xpose.msra.mxu0 0.0
        %1474 = vmatprep.subr.mxu0 0.0
        %1475 = vmatpush1.xpose.msra.mxu0 0.0
        %1476 = vmatprep.subr.mxu0 0.0
        %1477 = vmatpush1.xpose.msra.mxu0 0.0
        %1478 = vmatprep.subr.mxu0 0.0
        %1479 = vmatpush1.xpose.msra.mxu0 0.0
        %1480 = vmatprep.subr.mxu0 0.0
        %1481 = vmatpush1.xpose.msra.mxu0 0.0
        %1482 = vmatprep.subr.mxu0 0.0
        %1483 = vmatpush1.xpose.msra.mxu0 0.0
        %1484 = vmatprep.subr.mxu0 0.0
        %1485 = vmatpush1.xpose.msra.mxu0 0.0
        %1486 = vmatprep.subr.mxu0 0.0
        %1487 = vmatpush1.xpose.msra.mxu0 0.0
        %1488 = vmatprep.subr.mxu0 0.0
        %1489 = vmatpush1.xpose.msra.mxu0 0.0
        %1490 = vmatprep.subr.mxu0 0.0
        %1491 = vmatpush1.xpose.msra.mxu0 0.0
        %1492 = vmatprep.subr.mxu0 0.0
        %1493 = vmatpush1.xpose.msra.mxu0 0.0
        %1494 = vmatprep.subr.mxu0 0.0
        %1495 = vmatpush1.xpose.msra.mxu0 0.0
        %1496 = vmatprep.subr.mxu0 0.0
        %1497 = vmatpush1.xpose.msra.mxu0 0.0
        %1498 = vmatprep.subr.mxu0 0.0
        %1499 = vmatpush1.xpose.msra.mxu0 0.0
        %1500 = vmatprep.subr.mxu0 0.0
        %1501 = vmatpush1.xpose.msra.mxu0 0.0
        %1502 = vmatprep.subr.mxu0 0.0
        %1503 = vmatpush1.xpose.msra.mxu0 0.0
        %1504 = vmatprep.subr.mxu0 0.0
        %1505 = vmatpush1.xpose.msra.mxu0 0.0
        %1506 = vmatprep.subr.mxu0 0.0
        %1507 = vmatpush1.xpose.msra.mxu0 0.0
        %1508 = vmatprep.subr.mxu0 0.0
        %1509 = vmatpush1.xpose.msra.mxu0 0.0
        %1510 = vmatprep.subr.mxu0 0.0
        %1511 = vmatpush1.xpose.msra.mxu0 0.0
        %1512 = vmatprep.subr.mxu0 0.0
        %1513 = vmatpush1.xpose.msra.mxu0 0.0
        %1514 = vmatprep.subr.mxu0 0.0
        %1515 = vmatpush1.xpose.msra.mxu0 0.0
        %1516 = vmatprep.subr.mxu0 0.0
        %1517 = vmatpush1.xpose.msra.mxu0 0.0
        %1518 = vmatprep.subr.mxu0 0.0
        %1519 = vmatpush1.xpose.msra.mxu0 0.0
        %1520 = vmatprep.subr.mxu0 0.0
        %1521 = vmatpush1.xpose.msra.mxu0 0.0
        %1522 = vmatprep.subr.mxu0 0.0
        %1523 = vmatpush1.xpose.msra.mxu0 0.0
        %1524 = vmatprep.mubr.f32.mxu0 0.0
        %1525 = vmatmul.mubr.f32.gmra.mrb[0].mxu0 %v1455
        %v1526 = vpop.f32.mrb[0].mxu0
        %v1527 = vadd.f32 0.0, %v1526
        %v1528 = vpop.f32.mrb[0].mxu0
        %1529 = vdwg.mxu0
        %v1530 = vsel %vm1225, %v1299, -inf
        %1531 = vmax.xlane.f32.xlu0 %v1530
        %v1532 = vpop.xlane.xlu0 %1531
        %v1533 = vsel %vm1225, %v1375, -inf
        %1534 = vmax.xlane.f32.xlu0 %v1533
        %v1535 = vpop.xlane.xlu0 %1534
        %v1536 = vsel %vm1225, %v1451, -inf
        %1537 = vmax.xlane.f32.xlu0 %v1536
        %v1538 = vpop.xlane.xlu0 %1537
        %v1539 = vsel %vm1225, %v1527, -inf
        %1540 = vmax.xlane.f32.xlu0 %v1539
        %v1541 = vpop.xlane.xlu0 %1540
        %v1542 = vsub.f32 %v1299, %v1532
        %v1543 = vsub.f32 %v1375, %v1535
        %v1544 = vsub.f32 %v1451, %v1538
        %v1545 = vsub.f32 %v1527, %v1541
        %v1546 = vmul.f32 %v1542, 1.442695
        %v1547 = vpow.pop %v1546
        %v1548 = vmul.f32 %v1543, 1.442695
        %v1549 = vpow.pop %v1548
        %v1550 = vmul.f32 %v1544, 1.442695
        %v1551 = vpow.pop %v1550
        %v1552 = vmul.f32 %v1545, 1.442695
        %v1553 = vpow.pop %v1552
        %v1554 = vsel %vm1225, %v1547, 0.0
        %1555 = vadd.xlane.f32.xlu0 %v1554
        %v1556 = vpop.xlane.xlu0 %1555
        %v1557 = vsel %vm1225, %v1549, 0.0
        %1558 = vadd.xlane.f32.xlu0 %v1557
        %v1559 = vpop.xlane.xlu0 %1558
        %v1560 = vsel %vm1225, %v1551, 0.0
        %1561 = vadd.xlane.f32.xlu0 %v1560
        %v1562 = vpop.xlane.xlu0 %1561
        %v1563 = vsel %vm1225, %v1553, 0.0
        %1564 = vadd.xlane.f32.xlu0 %v1563
        %v1565 = vpop.xlane.xlu0 %1564
        %v1566 = vrcp.pop %v1556
        %v1567 = vrcp.pop %v1559
        %v1568 = vrcp.pop %v1562
        %v1569 = vrcp.pop %v1565
        %v1570 = vmul.f32 %v1547, %v1566
        %v1571 = vmul.f32 %v1549, %v1567
        %v1572 = vmul.f32 %v1551, %v1568
        %v1573 = vmul.f32 %v1553, %v1569
        %1574 = vst.msk [vmem:[%s536] sm:$0xff] %vm1225, %v1570
        %1575 = vst.msk [vmem:[%s536 + $0x8] sm:$0xff] %vm1225, %v1571
        %1576 = vst.msk [vmem:[%s536 + $0x10] sm:$0xff] %vm1225, %v1572
        %1577 = vst.msk [vmem:[%s536 + $0x18] sm:$0xff] %vm1225, %v1573
        %v1578 = vld [vmem:[#allocation3] sm:$0xff]
        %v1579 = vld [vmem:[#allocation3 + $0x8] sm:$0xff]
        %v1580 = vld [vmem:[#allocation3 + $0x10] sm:$0xff]
        %v1581 = vld [vmem:[#allocation3 + $0x18] sm:$0xff]
        %v1583 = vsel %vm1225, %v1570, 0
        %1585 = vmatprep.subr.mxu0 0.0
        %1586 = vmatpush1.msra.mxu0 %v1578
        %1587 = vmatprep.subr.mxu0 0.0
        %1588 = vmatpush1.msra.mxu0 0.0
        %1589 = vmatprep.subr.mxu0 0.0
        %1590 = vmatpush1.msra.mxu0 0.0
        %1591 = vmatprep.subr.mxu0 0.0
        %1592 = vmatpush1.msra.mxu0 0.0
        %1593 = vmatprep.subr.mxu0 0.0
        %1594 = vmatpush1.msra.mxu0 0.0
        %1595 = vmatprep.subr.mxu0 0.0
        %1596 = vmatpush1.msra.mxu0 0.0
        %1597 = vmatprep.subr.mxu0 0.0
        %1598 = vmatpush1.msra.mxu0 0.0
        %1599 = vmatprep.subr.mxu0 0.0
        %1600 = vmatpush1.msra.mxu0 0.0
        %1601 = vmatprep.subr.mxu0 0.0
        %1602 = vmatpush1.msra.mxu0 0.0
        %1603 = vmatprep.subr.mxu0 0.0
        %1604 = vmatpush1.msra.mxu0 0.0
        %1605 = vmatprep.subr.mxu0 0.0
        %1606 = vmatpush1.msra.mxu0 0.0
        %1607 = vmatprep.subr.mxu0 0.0
        %1608 = vmatpush1.msra.mxu0 0.0
        %1609 = vmatprep.subr.mxu0 0.0
        %1610 = vmatpush1.msra.mxu0 0.0
        %1611 = vmatprep.subr.mxu0 0.0
        %1612 = vmatpush1.msra.mxu0 0.0
        %1613 = vmatprep.subr.mxu0 0.0
        %1614 = vmatpush1.msra.mxu0 0.0
        %1615 = vmatprep.subr.mxu0 0.0
        %1616 = vmatpush1.msra.mxu0 0.0
        %1617 = vmatprep.subr.mxu0 0.0
        %1618 = vmatpush1.msra.mxu0 0.0
        %1619 = vmatprep.subr.mxu0 0.0
        %1620 = vmatpush1.msra.mxu0 0.0
        %1621 = vmatprep.subr.mxu0 0.0
        %1622 = vmatpush1.msra.mxu0 0.0
        %1623 = vmatprep.subr.mxu0 0.0
        %1624 = vmatpush1.msra.mxu0 0.0
        %1625 = vmatprep.subr.mxu0 0.0
        %1626 = vmatpush1.msra.mxu0 0.0
        %1627 = vmatprep.subr.mxu0 0.0
        %1628 = vmatpush1.msra.mxu0 0.0
        %1629 = vmatprep.subr.mxu0 0.0
        %1630 = vmatpush1.msra.mxu0 0.0
        %1631 = vmatprep.subr.mxu0 0.0
        %1632 = vmatpush1.msra.mxu0 0.0
        %1633 = vmatprep.subr.mxu0 0.0
        %1634 = vmatpush1.msra.mxu0 0.0
        %1635 = vmatprep.subr.mxu0 0.0
        %1636 = vmatpush1.msra.mxu0 0.0
        %1637 = vmatprep.subr.mxu0 0.0
        %1638 = vmatpush1.msra.mxu0 0.0
        %1639 = vmatprep.subr.mxu0 0.0
        %1640 = vmatpush1.msra.mxu0 0.0
        %1641 = vmatprep.subr.mxu0 0.0
        %1642 = vmatpush1.msra.mxu0 0.0
        %1643 = vmatprep.subr.mxu0 0.0
        %1644 = vmatpush1.msra.mxu0 0.0
        %1645 = vmatprep.subr.mxu0 0.0
        %1646 = vmatpush1.msra.mxu0 0.0
        %1647 = vmatprep.subr.mxu0 0.0
        %1648 = vmatpush1.msra.mxu0 0.0
        %1649 = vmatprep.mubr.f32.mxu0 0.0
        %1650 = vmatmul.mubr.f32.gmra.mrb[0].mxu0 %v1583
        %v1651 = vpop.f32.mrb[0].mxu0
        %v1652 = vadd.f32 0.0, %v1651
        %v1653 = vpop.f32.mrb[0].mxu0
        %1654 = vdwg.mxu0
        %v1656 = vsel %vm1225, %v1571, 0
        %1658 = vmatprep.subr.mxu0 0.0
        %1659 = vmatpush1.msra.mxu0 %v1579
        %1660 = vmatprep.subr.mxu0 0.0
        %1661 = vmatpush1.msra.mxu0 0.0
        %1662 = vmatprep.subr.mxu0 0.0
        %1663 = vmatpush1.msra.mxu0 0.0
        %1664 = vmatprep.subr.mxu0 0.0
        %1665 = vmatpush1.msra.mxu0 0.0
        %1666 = vmatprep.subr.mxu0 0.0
        %1667 = vmatpush1.msra.mxu0 0.0
        %1668 = vmatprep.subr.mxu0 0.0
        %1669 = vmatpush1.msra.mxu0 0.0
        %1670 = vmatprep.subr.mxu0 0.0
        %1671 = vmatpush1.msra.mxu0 0.0
        %1672 = vmatprep.subr.mxu0 0.0
        %1673 = vmatpush1.msra.mxu0 0.0
        %1674 = vmatprep.subr.mxu0 0.0
        %1675 = vmatpush1.msra.mxu0 0.0
        %1676 = vmatprep.subr.mxu0 0.0
        %1677 = vmatpush1.msra.mxu0 0.0
        %1678 = vmatprep.subr.mxu0 0.0
        %1679 = vmatpush1.msra.mxu0 0.0
        %1680 = vmatprep.subr.mxu0 0.0
        %1681 = vmatpush1.msra.mxu0 0.0
        %1682 = vmatprep.subr.mxu0 0.0
        %1683 = vmatpush1.msra.mxu0 0.0
        %1684 = vmatprep.subr.mxu0 0.0
        %1685 = vmatpush1.msra.mxu0 0.0
        %1686 = vmatprep.subr.mxu0 0.0
        %1687 = vmatpush1.msra.mxu0 0.0
        %1688 = vmatprep.subr.mxu0 0.0
        %1689 = vmatpush1.msra.mxu0 0.0
        %1690 = vmatprep.subr.mxu0 0.0
        %1691 = vmatpush1.msra.mxu0 0.0
        %1692 = vmatprep.subr.mxu0 0.0
        %1693 = vmatpush1.msra.mxu0 0.0
        %1694 = vmatprep.subr.mxu0 0.0
        %1695 = vmatpush1.msra.mxu0 0.0
        %1696 = vmatprep.subr.mxu0 0.0
        %1697 = vmatpush1.msra.mxu0 0.0
        %1698 = vmatprep.subr.mxu0 0.0
        %1699 = vmatpush1.msra.mxu0 0.0
        %1700 = vmatprep.subr.mxu0 0.0
        %1701 = vmatpush1.msra.mxu0 0.0
        %1702 = vmatprep.subr.mxu0 0.0
        %1703 = vmatpush1.msra.mxu0 0.0
        %1704 = vmatprep.subr.mxu0 0.0
        %1705 = vmatpush1.msra.mxu0 0.0
        %1706 = vmatprep.subr.mxu0 0.0
        %1707 = vmatpush1.msra.mxu0 0.0
        %1708 = vmatprep.subr.mxu0 0.0
        %1709 = vmatpush1.msra.mxu0 0.0
        %1710 = vmatprep.subr.mxu0 0.0
        %1711 = vmatpush1.msra.mxu0 0.0
        %1712 = vmatprep.subr.mxu0 0.0
        %1713 = vmatpush1.msra.mxu0 0.0
        %1714 = vmatprep.subr.mxu0 0.0
        %1715 = vmatpush1.msra.mxu0 0.0
        %1716 = vmatprep.subr.mxu0 0.0
        %1717 = vmatpush1.msra.mxu0 0.0
        %1718 = vmatprep.subr.mxu0 0.0
        %1719 = vmatpush1.msra.mxu0 0.0
        %1720 = vmatprep.subr.mxu0 0.0
        %1721 = vmatpush1.msra.mxu0 0.0
        %1722 = vmatprep.mubr.f32.mxu0 0.0
        %1723 = vmatmul.mubr.f32.gmra.mrb[0].mxu0 %v1656
        %v1724 = vpop.f32.mrb[0].mxu0
        %v1725 = vadd.f32 0.0, %v1724
        %v1726 = vpop.f32.mrb[0].mxu0
        %1727 = vdwg.mxu0
        %v1729 = vsel %vm1225, %v1572, 0
        %1731 = vmatprep.subr.mxu0 0.0
        %1732 = vmatpush1.msra.mxu0 %v1580
        %1733 = vmatprep.subr.mxu0 0.0
        %1734 = vmatpush1.msra.mxu0 0.0
        %1735 = vmatprep.subr.mxu0 0.0
        %1736 = vmatpush1.msra.mxu0 0.0
        %1737 = vmatprep.subr.mxu0 0.0
        %1738 = vmatpush1.msra.mxu0 0.0
        %1739 = vmatprep.subr.mxu0 0.0
        %1740 = vmatpush1.msra.mxu0 0.0
        %1741 = vmatprep.subr.mxu0 0.0
        %1742 = vmatpush1.msra.mxu0 0.0
        %1743 = vmatprep.subr.mxu0 0.0
        %1744 = vmatpush1.msra.mxu0 0.0
        %1745 = vmatprep.subr.mxu0 0.0
        %1746 = vmatpush1.msra.mxu0 0.0
        %1747 = vmatprep.subr.mxu0 0.0
        %1748 = vmatpush1.msra.mxu0 0.0
        %1749 = vmatprep.subr.mxu0 0.0
        %1750 = vmatpush1.msra.mxu0 0.0
        %1751 = vmatprep.subr.mxu0 0.0
        %1752 = vmatpush1.msra.mxu0 0.0
        %1753 = vmatprep.subr.mxu0 0.0
        %1754 = vmatpush1.msra.mxu0 0.0
        %1755 = vmatprep.subr.mxu0 0.0
        %1756 = vmatpush1.msra.mxu0 0.0
        %1757 = vmatprep.subr.mxu0 0.0
        %1758 = vmatpush1.msra.mxu0 0.0
        %1759 = vmatprep.subr.mxu0 0.0
        %1760 = vmatpush1.msra.mxu0 0.0
        %1761 = vmatprep.subr.mxu0 0.0
        %1762 = vmatpush1.msra.mxu0 0.0
        %1763 = vmatprep.subr.mxu0 0.0
        %1764 = vmatpush1.msra.mxu0 0.0
        %1765 = vmatprep.subr.mxu0 0.0
        %1766 = vmatpush1.msra.mxu0 0.0
        %1767 = vmatprep.subr.mxu0 0.0
        %1768 = vmatpush1.msra.mxu0 0.0
        %1769 = vmatprep.subr.mxu0 0.0
        %1770 = vmatpush1.msra.mxu0 0.0
        %1771 = vmatprep.subr.mxu0 0.0
        %1772 = vmatpush1.msra.mxu0 0.0
        %1773 = vmatprep.subr.mxu0 0.0
        %1774 = vmatpush1.msra.mxu0 0.0
        %1775 = vmatprep.subr.mxu0 0.0
        %1776 = vmatpush1.msra.mxu0 0.0
        %1777 = vmatprep.subr.mxu0 0.0
        %1778 = vmatpush1.msra.mxu0 0.0
        %1779 = vmatprep.subr.mxu0 0.0
        %1780 = vmatpush1.msra.mxu0 0.0
        %1781 = vmatprep.subr.mxu0 0.0
        %1782 = vmatpush1.msra.mxu0 0.0
        %1783 = vmatprep.subr.mxu0 0.0
        %1784 = vmatpush1.msra.mxu0 0.0
        %1785 = vmatprep.subr.mxu0 0.0
        %1786 = vmatpush1.msra.mxu0 0.0
        %1787 = vmatprep.subr.mxu0 0.0
        %1788 = vmatpush1.msra.mxu0 0.0
        %1789 = vmatprep.subr.mxu0 0.0
        %1790 = vmatpush1.msra.mxu0 0.0
        %1791 = vmatprep.subr.mxu0 0.0
        %1792 = vmatpush1.msra.mxu0 0.0
        %1793 = vmatprep.subr.mxu0 0.0
        %1794 = vmatpush1.msra.mxu0 0.0
        %1795 = vmatprep.mubr.f32.mxu0 0.0
        %1796 = vmatmul.mubr.f32.gmra.mrb[0].mxu0 %v1729
        %v1797 = vpop.f32.mrb[0].mxu0
        %v1798 = vadd.f32 0.0, %v1797
        %v1799 = vpop.f32.mrb[0].mxu0
        %1800 = vdwg.mxu0
        %v1802 = vsel %vm1225, %v1573, 0
        %1804 = vmatprep.subr.mxu0 0.0
        %1805 = vmatpush1.msra.mxu0 %v1581
        %1806 = vmatprep.subr.mxu0 0.0
        %1807 = vmatpush1.msra.mxu0 0.0
        %1808 = vmatprep.subr.mxu0 0.0
        %1809 = vmatpush1.msra.mxu0 0.0
        %1810 = vmatprep.subr.mxu0 0.0
        %1811 = vmatpush1.msra.mxu0 0.0
        %1812 = vmatprep.subr.mxu0 0.0
        %1813 = vmatpush1.msra.mxu0 0.0
        %1814 = vmatprep.subr.mxu0 0.0
        %1815 = vmatpush1.msra.mxu0 0.0
        %1816 = vmatprep.subr.mxu0 0.0
        %1817 = vmatpush1.msra.mxu0 0.0
        %1818 = vmatprep.subr.mxu0 0.0
        %1819 = vmatpush1.msra.mxu0 0.0
        %1820 = vmatprep.subr.mxu0 0.0
        %1821 = vmatpush1.msra.mxu0 0.0
        %1822 = vmatprep.subr.mxu0 0.0
        %1823 = vmatpush1.msra.mxu0 0.0
        %1824 = vmatprep.subr.mxu0 0.0
        %1825 = vmatpush1.msra.mxu0 0.0
        %1826 = vmatprep.subr.mxu0 0.0
        %1827 = vmatpush1.msra.mxu0 0.0
        %1828 = vmatprep.subr.mxu0 0.0
        %1829 = vmatpush1.msra.mxu0 0.0
        %1830 = vmatprep.subr.mxu0 0.0
        %1831 = vmatpush1.msra.mxu0 0.0
        %1832 = vmatprep.subr.mxu0 0.0
        %1833 = vmatpush1.msra.mxu0 0.0
        %1834 = vmatprep.subr.mxu0 0.0
        %1835 = vmatpush1.msra.mxu0 0.0
        %1836 = vmatprep.subr.mxu0 0.0
        %1837 = vmatpush1.msra.mxu0 0.0
        %1838 = vmatprep.subr.mxu0 0.0
        %1839 = vmatpush1.msra.mxu0 0.0
        %1840 = vmatprep.subr.mxu0 0.0
        %1841 = vmatpush1.msra.mxu0 0.0
        %1842 = vmatprep.subr.mxu0 0.0
        %1843 = vmatpush1.msra.mxu0 0.0
        %1844 = vmatprep.subr.mxu0 0.0
        %1845 = vmatpush1.msra.mxu0 0.0
        %1846 = vmatprep.subr.mxu0 0.0
        %1847 = vmatpush1.msra.mxu0 0.0
        %1848 = vmatprep.subr.mxu0 0.0
        %1849 = vmatpush1.msra.mxu0 0.0
        %1850 = vmatprep.subr.mxu0 0.0
        %1851 = vmatpush1.msra.mxu0 0.0
        %1852 = vmatprep.subr.mxu0 0.0
        %1853 = vmatpush1.msra.mxu0 0.0
        %1854 = vmatprep.subr.mxu0 0.0
        %1855 = vmatpush1.msra.mxu0 0.0
        %1856 = vmatprep.subr.mxu0 0.0
        %1857 = vmatpush1.msra.mxu0 0.0
        %1858 = vmatprep.subr.mxu0 0.0
        %1859 = vmatpush1.msra.mxu0 0.0
        %1860 = vmatprep.subr.mxu0 0.0
        %1861 = vmatpush1.msra.mxu0 0.0
        %1862 = vmatprep.subr.mxu0 0.0
        %1863 = vmatpush1.msra.mxu0 0.0
        %1864 = vmatprep.subr.mxu0 0.0
        %1865 = vmatpush1.msra.mxu0 0.0
        %1866 = vmatprep.subr.mxu0 0.0
        %1867 = vmatpush1.msra.mxu0 0.0
        %1868 = vmatprep.mubr.f32.mxu0 0.0
        %1869 = vmatmul.mubr.f32.gmra.mrb[0].mxu0 %v1802
        %v1870 = vpop.f32.mrb[0].mxu0
        %v1871 = vadd.f32 0.0, %v1870
        %v1872 = vpop.f32.mrb[0].mxu0
        %1873 = vdwg.mxu0
        %v1874 = vcombine.low %v1652, %v1798
        %v1875 = vcombine.high %v1652, %v1798
        %v1877 = vunpack.c.l.s4 1983009808
        %v1878 = vunpack.c.0.s8 %v1877
        %v1879 = vlaneseq
        %v1880 = vshrl.u32 %v1879, 7
        %v1881 = vsub.s32 %v1878, %v1880
        %v1882 = vrot.slane %v1874, %v1881
        %v1884 = vunpack.c.l.s4 1983009808
        %v1885 = vunpack.c.0.s8 %v1884
        %v1886 = vlaneseq
        %v1887 = vshrl.u32 %v1886, 7
        %v1888 = vsub.s32 %v1885, %v1887
        %v1889 = vrot.slane %v1875, %v1888
        %v1890 = vcombine.low %v1725, %v1871
        %v1891 = vcombine.high %v1725, %v1871
        %v1893 = vunpack.c.l.s4 1983009808
        %v1894 = vunpack.c.0.s8 %v1893
        %v1895 = vlaneseq
        %v1896 = vshrl.u32 %v1895, 7
        %v1897 = vsub.s32 %v1894, %v1896
        %v1898 = vrot.slane %v1890, %v1897
        %v1900 = vunpack.c.l.s4 1983009808
        %v1901 = vunpack.c.0.s8 %v1900
        %v1902 = vlaneseq
        %v1903 = vshrl.u32 %v1902, 7
        %v1904 = vsub.s32 %v1901, %v1903
        %v1905 = vrot.slane %v1891, %v1904
        %v1906 = vcombine.low %v1882, %v1898
        %v1907 = vcombine.high %v1882, %v1898
        %v1909 = vunpack.c.l.s4 1934713408
        %v1910 = vunpack.c.0.s8 %v1909
        %v1911 = vlaneseq
        %v1912 = vshrl.u32 %v1911, 7
        %v1913 = vsub.s32 %v1910, %v1912
        %v1914 = vrot.slane %v1906, %v1913
        %v1916 = vunpack.c.l.s4 1934713408
        %v1917 = vunpack.c.0.s8 %v1916
        %v1918 = vlaneseq
        %v1919 = vshrl.u32 %v1918, 7
        %v1920 = vsub.s32 %v1917, %v1919
        %v1921 = vrot.slane %v1907, %v1920
        %v1922 = vcombine.low %v1889, %v1905
        %v1923 = vcombine.high %v1889, %v1905
        %v1925 = vunpack.c.l.s4 1934713408
        %v1926 = vunpack.c.0.s8 %v1925
        %v1927 = vlaneseq
        %v1928 = vshrl.u32 %v1927, 7
        %v1929 = vsub.s32 %v1926, %v1928
        %v1930 = vrot.slane %v1922, %v1929
        %v1932 = vunpack.c.l.s4 1934713408
        %v1933 = vunpack.c.0.s8 %v1932
        %v1934 = vlaneseq
        %v1935 = vshrl.u32 %v1934, 7
        %v1936 = vsub.s32 %v1933, %v1935
        %v1937 = vrot.slane %v1923, %v1936
        %v1938 = vcombine.high %v1914, 0.0
        %v1939 = vcombine.high %v1921, 0.0
        %v1940 = vcombine.high %v1930, 0.0
        %v1941 = vcombine.high %v1937, 0.0
        %v1942 = vcombine.low %v1914, %v1921
        %v1944 = vunpack.c.l.s4 1983009808
        %v1945 = vunpack.c.0.s8 %v1944
        %v1946 = vlaneseq
        %v1947 = vshrl.u32 %v1946, 7
        %v1948 = vsub.s32 %v1945, %v1947
        %v1949 = vrot.slane %v1942, %v1948
        %v1950 = vcombine.low %v1938, %v1939
        %v1952 = vunpack.c.l.s4 1983009808
        %v1953 = vunpack.c.0.s8 %v1952
        %v1954 = vlaneseq
        %v1955 = vshrl.u32 %v1954, 7
        %v1956 = vsub.s32 %v1953, %v1955
        %v1957 = vrot.slane %v1950, %v1956
        %v1958 = vcombine.low %v1930, %v1937
        %v1960 = vunpack.c.l.s4 1983009808
        %v1961 = vunpack.c.0.s8 %v1960
        %v1962 = vlaneseq
        %v1963 = vshrl.u32 %v1962, 7
        %v1964 = vsub.s32 %v1961, %v1963
        %v1965 = vrot.slane %v1958, %v1964
        %v1966 = vcombine.low %v1940, %v1941
        %v1968 = vunpack.c.l.s4 1983009808
        %v1969 = vunpack.c.0.s8 %v1968
        %v1970 = vlaneseq
        %v1971 = vshrl.u32 %v1970, 7
        %v1972 = vsub.s32 %v1969, %v1971
        %v1973 = vrot.slane %v1966, %v1972
        %v1974 = vcombine.low %v1949, %v1957
        %v1975 = vcombine.high %v1949, %v1957
        %v1977 = vunpack.c.l.s4 1934713408
        %v1978 = vunpack.c.0.s8 %v1977
        %v1979 = vlaneseq
        %v1980 = vshrl.u32 %v1979, 7
        %v1981 = vsub.s32 %v1978, %v1980
        %v1982 = vrot.slane %v1974, %v1981
        %v1984 = vunpack.c.l.s4 1934713408
        %v1985 = vunpack.c.0.s8 %v1984
        %v1986 = vlaneseq
        %v1987 = vshrl.u32 %v1986, 7
        %v1988 = vsub.s32 %v1985, %v1987
        %v1989 = vrot.slane %v1975, %v1988
        %v1990 = vcombine.low %v1965, %v1973
        %v1991 = vcombine.high %v1965, %v1973
        %v1993 = vunpack.c.l.s4 1934713408
        %v1994 = vunpack.c.0.s8 %v1993
        %v1995 = vlaneseq
        %v1996 = vshrl.u32 %v1995, 7
        %v1997 = vsub.s32 %v1994, %v1996
        %v1998 = vrot.slane %v1990, %v1997
        %v2000 = vunpack.c.l.s4 1934713408
        %v2001 = vunpack.c.0.s8 %v2000
        %v2002 = vlaneseq
        %v2003 = vshrl.u32 %v2002, 7
        %v2004 = vsub.s32 %v2001, %v2003
        %v2005 = vrot.slane %v1991, %v2004
        %v2006 = vcombine.low %v1982, %v1998
        %v2007 = vcombine.high %v1982, %v1998
        %v2008 = vcombine.low %v1989, %v2005
        %v2009 = vcombine.high %v1989, %v2005
        %2011 = vrot.lane.b32.xlu0 %v2007, 8
        %v2012 = vpop.permute.xlu0 %2011
        %2015 = vrot.lane.b32.xlu0 %v2008, 16
        %v2016 = vpop.permute.xlu0 %2015
        %2019 = vrot.lane.b32.xlu0 %v2009, 24
        %v2020 = vpop.permute.xlu0 %2019
        %v2022 = vsel %vm1225, %v2006, %v2012
        %vm2023 = vcmask 130048
        %v2024 = vsel %vm2023, %v2022, %v2016
        %vm2025 = vcmask 195584
        %v2026 = vsel %vm2025, %v2024, %v2020
        %v2027 = vld [vmem:[%s4] sm:$0xff]
        %v2028 = vld [vmem:[%s4 + $0x8] sm:$0xff]
        %v2029 = vld [vmem:[%s4 + $0x10] sm:$0xff]
        %v2030 = vld [vmem:[%s4 + $0x18] sm:$0xff]
        %v2031 = vld [vmem:[%s5] sm:$0x1]
        %v2033 = vlaneseq
        %v2034 = vshrl.u32 %v2033, 7
        %v2035 = vsub.s32 0, %v2034
        %v2036 = vrot.slane %v2031, %v2035
        %v2039 = vsel %vm1000, %v2026, 0
        %2041 = vmatprep.subr.mxu0 0.0
        %2042 = vmatpush1.msra.mxu0 %v2027
        %2043 = vmatprep.subr.mxu0 0.0
        %2044 = vmatpush1.msra.mxu0 %v2028
        %2045 = vmatprep.subr.mxu0 0.0
        %2046 = vmatpush1.msra.mxu0 %v2029
        %2047 = vmatprep.subr.mxu0 0.0
        %2048 = vmatpush1.msra.mxu0 %v2030
        %2049 = vmatprep.subr.mxu0 0.0
        %2050 = vmatpush1.msra.mxu0 0.0
        %2051 = vmatprep.subr.mxu0 0.0
        %2052 = vmatpush1.msra.mxu0 0.0
        %2053 = vmatprep.subr.mxu0 0.0
        %2054 = vmatpush1.msra.mxu0 0.0
        %2055 = vmatprep.subr.mxu0 0.0
        %2056 = vmatpush1.msra.mxu0 0.0
        %2057 = vmatprep.subr.mxu0 0.0
        %2058 = vmatpush1.msra.mxu0 0.0
        %2059 = vmatprep.subr.mxu0 0.0
        %2060 = vmatpush1.msra.mxu0 0.0
        %2061 = vmatprep.subr.mxu0 0.0
        %2062 = vmatpush1.msra.mxu0 0.0
        %2063 = vmatprep.subr.mxu0 0.0
        %2064 = vmatpush1.msra.mxu0 0.0
        %2065 = vmatprep.subr.mxu0 0.0
        %2066 = vmatpush1.msra.mxu0 0.0
        %2067 = vmatprep.subr.mxu0 0.0
        %2068 = vmatpush1.msra.mxu0 0.0
        %2069 = vmatprep.subr.mxu0 0.0
        %2070 = vmatpush1.msra.mxu0 0.0
        %2071 = vmatprep.subr.mxu0 0.0
        %2072 = vmatpush1.msra.mxu0 0.0
        %2073 = vmatprep.subr.mxu0 0.0
        %2074 = vmatpush1.msra.mxu0 0.0
        %2075 = vmatprep.subr.mxu0 0.0
        %2076 = vmatpush1.msra.mxu0 0.0
        %2077 = vmatprep.subr.mxu0 0.0
        %2078 = vmatpush1.msra.mxu0 0.0
        %2079 = vmatprep.subr.mxu0 0.0
        %2080 = vmatpush1.msra.mxu0 0.0
        %2081 = vmatprep.subr.mxu0 0.0
        %2082 = vmatpush1.msra.mxu0 0.0
        %2083 = vmatprep.subr.mxu0 0.0
        %2084 = vmatpush1.msra.mxu0 0.0
        %2085 = vmatprep.subr.mxu0 0.0
        %2086 = vmatpush1.msra.mxu0 0.0
        %2087 = vmatprep.subr.mxu0 0.0
        %2088 = vmatpush1.msra.mxu0 0.0
        %2089 = vmatprep.subr.mxu0 0.0
        %2090 = vmatpush1.msra.mxu0 0.0
        %2091 = vmatprep.subr.mxu0 0.0
        %2092 = vmatpush1.msra.mxu0 0.0
        %2093 = vmatprep.subr.mxu0 0.0
        %2094 = vmatpush1.msra.mxu0 0.0
        %2095 = vmatprep.subr.mxu0 0.0
        %2096 = vmatpush1.msra.mxu0 0.0
        %2097 = vmatprep.subr.mxu0 0.0
        %2098 = vmatpush1.msra.mxu0 0.0
        %2099 = vmatprep.subr.mxu0 0.0
        %2100 = vmatpush1.msra.mxu0 0.0
        %2101 = vmatprep.subr.mxu0 0.0
        %2102 = vmatpush1.msra.mxu0 0.0
        %2103 = vmatprep.subr.mxu0 0.0
        %2104 = vmatpush1.msra.mxu0 0.0
        %2105 = vmatprep.mubr.f32.mxu0 0.0
        %2106 = vmatmul.mubr.f32.gmra.mrb[0].mxu0 %v2039
        %v2107 = vpop.f32.mrb[0].mxu0
        %v2108 = vadd.f32 %v2036, %v2107
        %v2109 = vpop.f32.mrb[0].mxu0
        %2110 = vdwg.mxu0
        %v2111 = vadd.f32 %v2108, %v1071
        %v2112 = vld [vmem:[%s6] sm:$0x1]
        %v2113 = vld [vmem:[%s7] sm:$0x1]
        %v2114 = vsel %vm1000, %v2111, 0.0
        %2115 = vadd.xlane.f32.xlu0 %v2114
        %v2116 = vpop.xlane.xlu0 %2115
        %v2117 = vrcp.pop 32.0
        %v2118 = vmul.f32 %v2116, %v2117
        %v2119 = vsub.f32 %v2111, %v2118
        %v2120 = vmul.f32 %v2119, %v2119
        %v2121 = vsel %vm1000, %v2120, 0.0
        %2122 = vadd.xlane.f32.xlu0 %v2121
        %v2123 = vpop.xlane.xlu0 %2122
        %v2124 = vmul.f32 %v2123, %v2117
        %v2125 = vadd.f32 %v2124, 1e-06
        %v2126 = vrsqrt.pop %v2125
        %v2127 = vmul.f32 %v2119, %v2126
        %v2129 = vlaneseq
        %v2130 = vshrl.u32 %v2129, 7
        %v2131 = vsub.s32 0, %v2130
        %v2132 = vrot.slane %v2112, %v2131
        %v2134 = vmul.f32 %v2127, %v2132
        %v2136 = vlaneseq
        %v2137 = vshrl.u32 %v2136, 7
        %v2138 = vsub.s32 0, %v2137
        %v2139 = vrot.slane %v2113, %v2138
        %v2141 = vadd.f32 %v2134, %v2139
        %v2142 = vld [vmem:[%s8] sm:$0xff]
        %v2143 = vld [vmem:[%s8 + $0x8] sm:$0xff]
        %v2144 = vld [vmem:[%s8 + $0x10] sm:$0xff]
        %v2145 = vld [vmem:[%s8 + $0x18] sm:$0xff]
        %v2146 = vld [vmem:[%s9] sm:$0x1]
        %v2148 = vlaneseq
        %v2149 = vshrl.u32 %v2148, 7
        %v2150 = vsub.s32 0, %v2149
        %v2151 = vrot.slane %v2146, %v2150
        %v2154 = vsel %vm1000, %v2141, 0
        %2156 = vmatprep.subr.mxu0 0.0
        %2157 = vmatpush1.msra.mxu0 %v2142
        %2158 = vmatprep.subr.mxu0 0.0
        %2159 = vmatpush1.msra.mxu0 %v2143
        %2160 = vmatprep.subr.mxu0 0.0
        %2161 = vmatpush1.msra.mxu0 %v2144
        %2162 = vmatprep.subr.mxu0 0.0
        %2163 = vmatpush1.msra.mxu0 %v2145
        %2164 = vmatprep.subr.mxu0 0.0
        %2165 = vmatpush1.msra.mxu0 0.0
        %2166 = vmatprep.subr.mxu0 0.0
        %2167 = vmatpush1.msra.mxu0 0.0
        %2168 = vmatprep.subr.mxu0 0.0
        %2169 = vmatpush1.msra.mxu0 0.0
        %2170 = vmatprep.subr.mxu0 0.0
        %2171 = vmatpush1.msra.mxu0 0.0
        %2172 = vmatprep.subr.mxu0 0.0
        %2173 = vmatpush1.msra.mxu0 0.0
        %2174 = vmatprep.subr.mxu0 0.0
        %2175 = vmatpush1.msra.mxu0 0.0
        %2176 = vmatprep.subr.mxu0 0.0
        %2177 = vmatpush1.msra.mxu0 0.0
        %2178 = vmatprep.subr.mxu0 0.0
        %2179 = vmatpush1.msra.mxu0 0.0
        %2180 = vmatprep.subr.mxu0 0.0
        %2181 = vmatpush1.msra.mxu0 0.0
        %2182 = vmatprep.subr.mxu0 0.0
        %2183 = vmatpush1.msra.mxu0 0.0
        %2184 = vmatprep.subr.mxu0 0.0
        %2185 = vmatpush1.msra.mxu0 0.0
        %2186 = vmatprep.subr.mxu0 0.0
        %2187 = vmatpush1.msra.mxu0 0.0
        %2188 = vmatprep.subr.mxu0 0.0
        %2189 = vmatpush1.msra.mxu0 0.0
        %2190 = vmatprep.subr.mxu0 0.0
        %2191 = vmatpush1.msra.mxu0 0.0
        %2192 = vmatprep.subr.mxu0 0.0
        %2193 = vmatpush1.msra.mxu0 0.0
        %2194 = vmatprep.subr.mxu0 0.0
        %2195 = vmatpush1.msra.mxu0 0.0
        %2196 = vmatprep.subr.mxu0 0.0
        %2197 = vmatpush1.msra.mxu0 0.0
        %2198 = vmatprep.subr.mxu0 0.0
        %2199 = vmatpush1.msra.mxu0 0.0
        %2200 = vmatprep.subr.mxu0 0.0
        %2201 = vmatpush1.msra.mxu0 0.0
        %2202 = vmatprep.subr.mxu0 0.0
        %2203 = vmatpush1.msra.mxu0 0.0
        %2204 = vmatprep.subr.mxu0 0.0
        %2205 = vmatpush1.msra.mxu0 0.0
        %2206 = vmatprep.subr.mxu0 0.0
        %2207 = vmatpush1.msra.mxu0 0.0
        %2208 = vmatprep.subr.mxu0 0.0
        %2209 = vmatpush1.msra.mxu0 0.0
        %2210 = vmatprep.subr.mxu0 0.0
        %2211 = vmatpush1.msra.mxu0 0.0
        %2212 = vmatprep.subr.mxu0 0.0
        %2213 = vmatpush1.msra.mxu0 0.0
        %2214 = vmatprep.subr.mxu0 0.0
        %2215 = vmatpush1.msra.mxu0 0.0
        %2216 = vmatprep.subr.mxu0 0.0
        %2217 = vmatpush1.msra.mxu0 0.0
        %2218 = vmatprep.subr.mxu0 0.0
        %2219 = vmatpush1.msra.mxu0 0.0
        %2220 = vmatprep.mubr.f32.mxu0 0.0
        %2221 = vmatmul.mubr.f32.gmra.mrb[0].mxu0 %v2154
        %v2222 = vpop.f32.mrb[0].mxu0
        %v2223 = vadd.f32 %v2151, %v2222
        %v2224 = vpop.f32.mrb[0].mxu0
        %2225 = vdwg.mxu0
        %v2226 = vmax.f32 %v2223, 0.0
        %v2227 = vld [vmem:[%s10] sm:$0xff]
        %v2228 = vld [vmem:[%s10 + $0x8] sm:$0xff]
        %v2229 = vld [vmem:[%s10 + $0x10] sm:$0xff]
        %v2230 = vld [vmem:[%s10 + $0x18] sm:$0xff]
        %v2231 = vld [vmem:[%s10 + $0x20] sm:$0xff]
        %v2232 = vld [vmem:[%s10 + $0x28] sm:$0xff]
        %v2233 = vld [vmem:[%s10 + $0x30] sm:$0xff]
        %v2234 = vld [vmem:[%s10 + $0x38] sm:$0xff]
        %v2235 = vld [vmem:[%s10 + $0x40] sm:$0xff]
        %v2236 = vld [vmem:[%s10 + $0x48] sm:$0xff]
        %v2237 = vld [vmem:[%s10 + $0x50] sm:$0xff]
        %v2238 = vld [vmem:[%s10 + $0x58] sm:$0xff]
        %v2239 = vld [vmem:[%s10 + $0x60] sm:$0xff]
        %v2240 = vld [vmem:[%s10 + $0x68] sm:$0xff]
        %v2241 = vld [vmem:[%s10 + $0x70] sm:$0xff]
        %v2242 = vld [vmem:[%s10 + $0x78] sm:$0xff]
        %v2243 = vld [vmem:[%s11] sm:$0x1]
        %v2245 = vlaneseq
        %v2246 = vshrl.u32 %v2245, 7
        %v2247 = vsub.s32 0, %v2246
        %v2248 = vrot.slane %v2243, %v2247
        %2250 = vmatprep.subr.mxu0 0.0
        %2251 = vmatpush1.msra.mxu0 %v2227
        %2252 = vmatprep.subr.mxu0 0.0
        %2253 = vmatpush1.msra.mxu0 %v2228
        %2254 = vmatprep.subr.mxu0 0.0
        %2255 = vmatpush1.msra.mxu0 %v2229
        %2256 = vmatprep.subr.mxu0 0.0
        %2257 = vmatpush1.msra.mxu0 %v2230
        %2258 = vmatprep.subr.mxu0 0.0
        %2259 = vmatpush1.msra.mxu0 %v2231
        %2260 = vmatprep.subr.mxu0 0.0
        %2261 = vmatpush1.msra.mxu0 %v2232
        %2262 = vmatprep.subr.mxu0 0.0
        %2263 = vmatpush1.msra.mxu0 %v2233
        %2264 = vmatprep.subr.mxu0 0.0
        %2265 = vmatpush1.msra.mxu0 %v2234
        %2266 = vmatprep.subr.mxu0 0.0
        %2267 = vmatpush1.msra.mxu0 %v2235
        %2268 = vmatprep.subr.mxu0 0.0
        %2269 = vmatpush1.msra.mxu0 %v2236
        %2270 = vmatprep.subr.mxu0 0.0
        %2271 = vmatpush1.msra.mxu0 %v2237
        %2272 = vmatprep.subr.mxu0 0.0
        %2273 = vmatpush1.msra.mxu0 %v2238
        %2274 = vmatprep.subr.mxu0 0.0
        %2275 = vmatpush1.msra.mxu0 %v2239
        %2276 = vmatprep.subr.mxu0 0.0
        %2277 = vmatpush1.msra.mxu0 %v2240
        %2278 = vmatprep.subr.mxu0 0.0
        %2279 = vmatpush1.msra.mxu0 %v2241
        %2280 = vmatprep.subr.mxu0 0.0
        %2281 = vmatpush1.msra.mxu0 %v2242
        %2282 = vmatprep.subr.mxu0 0.0
        %2283 = vmatpush1.msra.mxu0 0.0
        %2284 = vmatprep.subr.mxu0 0.0
        %2285 = vmatpush1.msra.mxu0 0.0
        %2286 = vmatprep.subr.mxu0 0.0
        %2287 = vmatpush1.msra.mxu0 0.0
        %2288 = vmatprep.subr.mxu0 0.0
        %2289 = vmatpush1.msra.mxu0 0.0
        %2290 = vmatprep.subr.mxu0 0.0
        %2291 = vmatpush1.msra.mxu0 0.0
        %2292 = vmatprep.subr.mxu0 0.0
        %2293 = vmatpush1.msra.mxu0 0.0
        %2294 = vmatprep.subr.mxu0 0.0
        %2295 = vmatpush1.msra.mxu0 0.0
        %2296 = vmatprep.subr.mxu0 0.0
        %2297 = vmatpush1.msra.mxu0 0.0
        %2298 = vmatprep.subr.mxu0 0.0
        %2299 = vmatpush1.msra.mxu0 0.0
        %2300 = vmatprep.subr.mxu0 0.0
        %2301 = vmatpush1.msra.mxu0 0.0
        %2302 = vmatprep.subr.mxu0 0.0
        %2303 = vmatpush1.msra.mxu0 0.0
        %2304 = vmatprep.subr.mxu0 0.0
        %2305 = vmatpush1.msra.mxu0 0.0
        %2306 = vmatprep.subr.mxu0 0.0
        %2307 = vmatpush1.msra.mxu0 0.0
        %2308 = vmatprep.subr.mxu0 0.0
        %2309 = vmatpush1.msra.mxu0 0.0
        %2310 = vmatprep.subr.mxu0 0.0
        %2311 = vmatpush1.msra.mxu0 0.0
        %2312 = vmatprep.subr.mxu0 0.0
        %2313 = vmatpush1.msra.mxu0 0.0
        %2314 = vmatprep.mubr.f32.mxu0 0.0
        %2315 = vmatmul.mubr.f32.gmra.mrb[0].mxu0 %v2226
        %v2316 = vpop.f32.mrb[0].mxu0
        %v2317 = vadd.f32 %v2248, %v2316
        %v2318 = vpop.f32.mrb[0].mxu0
        %2319 = vdwg.mxu0
        %v2320 = vadd.f32 %v2317, %v2141
        %v2321 = vld [vmem:[%s12] sm:$0x1]
        %v2322 = vld [vmem:[%s13] sm:$0x1]
        %v2323 = vsel %vm1000, %v2320, 0.0
        %2324 = vadd.xlane.f32.xlu0 %v2323
        %v2325 = vpop.xlane.xlu0 %2324
        %v2326 = vmul.f32 %v2325, %v2117
        %v2327 = vsub.f32 %v2320, %v2326
        %v2328 = vmul.f32 %v2327, %v2327
        %v2329 = vsel %vm1000, %v2328, 0.0
        %2330 = vadd.xlane.f32.xlu0 %v2329
        %v2331 = vpop.xlane.xlu0 %2330
        %v2332 = vmul.f32 %v2331, %v2117
        %v2333 = vadd.f32 %v2332, 1e-06
        %v2334 = vrsqrt.pop %v2333
        %v2335 = vmul.f32 %v2327, %v2334
        %v2337 = vlaneseq
        %v2338 = vshrl.u32 %v2337, 7
        %v2339 = vsub.s32 0, %v2338
        %v2340 = vrot.slane %v2321, %v2339
        %v2342 = vmul.f32 %v2335, %v2340
        %v2344 = vlaneseq
        %v2345 = vshrl.u32 %v2344, 7
        %v2346 = vsub.s32 0, %v2345
        %v2347 = vrot.slane %v2322, %v2346
        %v2349 = vadd.f32 %v2342, %v2347
        %2350 = vst.msk [vmem:[%s529] sm:$0xff] %vm1000, %v2349
        %s2351 = sand.u32 %s357, 1
        %s2352 = scalar_lea.sflag [#allocation6], %s2351
        %s2353 = sand.u32 %s357, 1
        %s2354 = smul.addr %s2353, 8
        %s2355 = scalar_lea.vmem [#allocation7], %s2354
        %s2356 = sand.u32 %s385, 1
        %s2357 = scalar_lea.sflag [#allocation9], %s2356
        %s2358 = sand.u32 %s385, 1
        %s2359 = smul.addr %s2358, 32
        %s2360 = scalar_lea.vmem [#allocation8], %s2359
        // Predicated region
        $region85: #{tpu_custom_call.1} parent=75 // pred_check
          %p2361 = pneg %p367
        $region86: #{tpu_custom_call.1} parent=75 // pred_check_branch
          %2363 = sbr.rel (%p2361) target = $region88
        $region87: #{tpu_custom_call.1} parent=75 // pred_region
          %s2365 = ssub.s32 128, 128
          %2366 = vsyncadd %s2352, %s2365
          %s2367 = sadd.s32 %s41, %s40
          %s2368 = smul.addr %s2367, 128
          %s2369 = scalar_lea.hbm %s14, %s2368
          %s2371 = sshll.u32 %s2355, 4
          %s2372 = int_to_ptr.vmem [resolvable:$true] %s2371
          %2374 = dma.vmem_to_hbm [thread:$0]  %s2372, 128, %s2369, %s2352
        $region88: #{tpu_custom_call.1} parent=75 // pred_fallthru
          _
        // Predicated region
        $region89: #{tpu_custom_call.1} parent=75 // pred_check
          %p2375 = pneg %p395
        $region90: #{tpu_custom_call.1} parent=75 // pred_check_branch
          %2377 = sbr.rel (%p2375) target = $region92
        $region91: #{tpu_custom_call.1} parent=75 // pred_region
          %s2379 = ssub.s32 512, 512
          %2380 = vsyncadd %s2357, %s2379
          %s2381 = smul.addr %s40, 4
          %s2382 = sadd.s32 %s41, %s2381
          %s2383 = smul.addr %s2382, 128
          %s2384 = scalar_lea.hbm %s15, %s2383
          %s2385 = sshll.u32 %s2360, 4
          %s2386 = int_to_ptr.vmem [resolvable:$true] %s2385
          %2391 = dma.vmem_to_hbm [thread:$0]  %s2386, 512, %s2384, %s2357, 128, 128, 8
        $region92: #{tpu_custom_call.1} parent=75 // pred_fallthru
          _
      $region76: #{tpu_custom_call.1} parent=5 // pred_fallthru
        _
      %p2392 = scmp.le.s32.totalorder 2, %s31
      // Predicated region
      $region93: #{tpu_custom_call.1} parent=5 // pred_check
        %p2393 = pneg %p2392
      $region94: #{tpu_custom_call.1} parent=5 // pred_check_branch
        %2395 = sbr.rel (%p2393) target = $region96
      $region95: #{tpu_custom_call.1} parent=5 // pred_region
        %s2396 = ssub.s32 %s31, 2
        // Predicated region
        $region97: #{tpu_custom_call.1} parent=95 // pred_check
          %p2397 = pneg %p373
        $region98: #{tpu_custom_call.1} parent=95 // pred_check_branch
          %2399 = sbr.rel (%p2397) target = $region100
        $region99: #{tpu_custom_call.1} parent=95 // pred_region
          %s2400 = sand.u32 %s358, 1
          %s2401 = scalar_lea.sflag [#allocation6], %s2400
          %s2402 = sand.u32 %s358, 1
          %s2403 = smul.addr %s2402, 8
          %s2404 = scalar_lea.vmem [#allocation7], %s2403
          %2405 = dma.done %s2401, 128
        $region100: #{tpu_custom_call.1} parent=95 // pred_fallthru
          _
        // Predicated region
        $region101: #{tpu_custom_call.1} parent=95 // pred_check
          %p2406 = pneg %p401
        $region102: #{tpu_custom_call.1} parent=95 // pred_check_branch
          %2408 = sbr.rel (%p2406) target = $region104
        $region103: #{tpu_custom_call.1} parent=95 // pred_region
          %s2409 = sand.u32 %s386, 1
          %s2410 = scalar_lea.sflag [#allocation9], %s2409
          %s2411 = sand.u32 %s386, 1
          %s2412 = smul.addr %s2411, 32
          %s2413 = scalar_lea.vmem [#allocation8], %s2412
          %2414 = dma.done %s2410, 512
        $region104: #{tpu_custom_call.1} parent=95 // pred_fallthru
          _
      $region96: #{tpu_custom_call.1} parent=5 // pred_fallthru
        _
    $region6: #{tpu_custom_call.1} parent=1 // loop_footer
      %s35 = sadd.s32 1, %s31
    $region7: #{tpu_custom_call.1} parent=1 // loop_footer_branch
      %30 = sbr.rel target = $region3
    $region8: #{tpu_custom_call.1} parent=1 // loop_exit
      _
    %2415 = vsyncpa [#allocation5], 1
    %s2416 = scalar_lea.sflag [#allocation5], 1
    %2417 = vsyncpa %s2416, 1
    %2418 = vsyncpa [#allocation6], 1
    %s2419 = scalar_lea.sflag [#allocation6], 1
    %2420 = vsyncpa %s2419, 1
    %2421 = vsyncpa [#allocation9], 1
    %s2422 = scalar_lea.sflag [#allocation9], 1
    %2423 = vsyncpa %s2422, 1

</llo_original>
